<compile_context>
chip_gen: v7x
topology: tpu7x:2x2x1
jax: 0.10.0
libtpu: 0.0.40
codegen_flags: <defaults>
</compile_context>

<pallas_src>
import functools

import jax
import jax.numpy as jnp
from jax.experimental import pallas as pl
from jax.experimental.pallas import tpu as pltpu


def _dpcnn_kernel(emb_ref, wr_ref, br_ref, wc_ref, bc_ref, wfc_ref, bfc_ref, out_ref):
    """One batch tile.  emb_ref: [S, TB, Ep] bf16 (time-major).  out_ref: [TB, Cp] f32."""
    # Hoist all weight / bias loads out of the unrolled block loop (no per-conv reloads).
    wr, br = wr_ref[...], br_ref[...]
    wc, bc = wc_ref[...], bc_ref[...]
    wfc, bfc = wfc_ref[...], bfc_ref[...]

    emb = emb_ref[...]                                  # [S, TB, Ep] bf16
    S, TB, _Ep = emb.shape

    def conv3(x, w, b):
        # x: [H, TB, Cin]; w: [3*Cin, Cout] bf16; b: [1, Cout] f32 -> [H-2, TB, Cout] f32.
        # The 3 taps are folded into K (im2col); with Cin a multiple of 128 each tap
        # occupies its own 128-lane group, so the lane concat is alignment-free.
        xb = x.astype(jnp.bfloat16)                     # bf16 MXU operands, f32 accumulate
        L = xb.shape[0] - 2
        win = jnp.concatenate([xb[0:L], xb[1:L + 1], xb[2:L + 2]], axis=-1)  # [L, TB, 3*Cin]
        y = jnp.einsum('lbk,kf->lbf', win, w, preferred_element_type=jnp.float32)
        return y + b                                    # bias [1, Cout] broadcasts (f32)

    def pad_h(x, top, bot):
        # Zero-pad along the leading (time) dim only; never touches lanes/sublanes.
        parts = []
        if top:
            parts.append(jnp.zeros((top,) + x.shape[1:], x.dtype))
        parts.append(x)
        if bot:
            parts.append(jnp.zeros((bot,) + x.shape[1:], x.dtype))
        return jnp.concatenate(parts, axis=0) if len(parts) > 1 else x

    # ---- stem: conv_region -> pad1 -> relu -> conv -> pad1 -> relu -> conv ----
    x = conv3(emb, wr, br)                              # [S-2, TB, Fp] f32
    x = jnp.maximum(pad_h(x, 1, 1), 0.0)                # pad-then-relu == relu-then-pad (0s)
    x = conv3(x, wc, bc)                                # [S-2, TB, Fp]
    x = jnp.maximum(pad_h(x, 1, 1), 0.0)
    x = conv3(x, wc, bc)                                # [S-2, TB, Fp]

    # ---- repeated downsampling blocks; static shapes => unrolled at trace time ----
    # TODO(synk): for production S (256+) stage this loop through one [S, TB, Fp] VMEM
    #             scratch with in-place slice stores to bound live ranges of the unroll.
    H = x.shape[0]
    while H >= 2:
        xp = pad_h(x, 0, 1)                             # padding2 (bottom)  [H+1, TB, Fp]
        Hp = H + 1
        Lp = (Hp - 3) // 2 + 1                          # MaxPool2d((3,1), stride=2) length
        # Pool window t covers rows [2t, 2t+1, 2t+2].  Regroup rows in pairs along the
        # leading dim (no lane/sublane movement) and take elementwise maxima.  The max row
        # read below is 2*Lp <= Hp-1, so the (up to one) dummy row added here is NEVER
        # part of any max -- zero padding cannot corrupt negative activations.
        E2 = 2 * (Lp + 1)
        xe = pad_h(xp, 0, E2 - Hp)
        pr = xe.reshape(Lp + 1, 2, TB, xe.shape[-1])
        px = jnp.maximum(jnp.maximum(pr[0:Lp, 0], pr[0:Lp, 1]), pr[1:Lp + 1, 0])  # [Lp,TB,Fp]

        y = jnp.maximum(pad_h(px, 1, 1), 0.0)
        y = conv3(y, wc, bc)
        y = jnp.maximum(pad_h(y, 1, 1), 0.0)
        y = conv3(y, wc, bc)
        x = y + px                                      # residual (f32)
        H = x.shape[0]

    # x: [1, TB, Fp] -> squeeze time -> fc (bf16 operands, f32 accumulate, lane-dense Cp).
    # TODO(synk): torch's x.squeeze() would also drop the batch dim when B == 1.
    feat = x[0].astype(jnp.bfloat16)                    # [TB, Fp]
    out_ref[...] = jnp.dot(feat, wfc, preferred_element_type=jnp.float32) + bfc  # [TB, Cp]


def _round_up(n, m):
    return ((n + m - 1) // m) * m


def _vmem_budget_and_limit():
    """(batch-tile working-set budget, vmem_limit_bytes) selected per chip generation."""
    try:
        phys = pltpu.get_tpu_info().vmem_capacity_bytes
    except Exception:
        phys = 64 << 20                                 # conservative (v7x-sized) fallback
    if phys >= (100 << 20):                             # v5e / v6e: 128 MiB physical VMEM
        return 64 << 20, 100 << 20
    return 20 << 20, 48 << 20                           # v7x: 64 MiB physical VMEM


def _pick_batch_tile(B, S, Ep, Fp, budget_bytes, *, want_two_steps=True):
    """Largest batch tile fitting the budget; prefers multiples of 16 (bf16 sublane pack)."""
    per_row = (2 * 2 * S * Ep                           # bf16 emb block, double buffered
               + 2 * 3 * S * Ep                         # bf16 im2col window of region conv
               + 4 * 10 * S * Fp)                       # f32 conv-stack / pool / residual temps
    cap = max(1, int(budget_bytes // max(per_row, 1)))
    target = min(B, cap)
    if want_two_steps and B >= 32 and B % 2 == 0:       # keep both v7x TensorCores busy
        target = min(target, max(16, B // 2))
    best, best8, best16 = 1, None, None
    for tb in range(1, target + 1):
        if B % tb:
            continue
        best = tb
        if tb % 8 == 0:
            best8 = tb
        if tb % 16 == 0:
            best16 = tb
    return best16 or best8 or best


@functools.partial(jax.jit, static_argnames=("batch_tile",))
def dpcnn_forward(text, text_lengths, params, *, batch_tile=None):
    del text_lengths                                    # unused by the PyTorch forward too
    B, S = text.shape
    assert S >= 3, "DPCNN requires seq_len >= 3"
    E = params['embedding'].shape[1]
    F = params['conv_w'].shape[-1]
    C = params['fc_w'].shape[-1]
    Ep, Fp, Cp = _round_up(E, 128), _round_up(F, 128), _round_up(C, 128)

    # --- param prep: zero-pad channel dims to lane width, cast MXU operands to bf16 ---
    emb_tbl = jnp.pad(params['embedding'], ((0, 0), (0, Ep - E))).astype(jnp.bfloat16)
    wr = jnp.pad(params['conv_region_w'],
                 ((0, 0), (0, Ep - E), (0, Fp - F))).reshape(3 * Ep, Fp).astype(jnp.bfloat16)
    br = jnp.pad(params['conv_region_b'], ((0, 0), (0, Fp - F))).astype(jnp.float32)
    wc = jnp.pad(params['conv_w'],
                 ((0, 0), (0, Fp - F), (0, Fp - F))).reshape(3 * Fp, Fp).astype(jnp.bfloat16)
    bc = jnp.pad(params['conv_b'], ((0, 0), (0, Fp - F))).astype(jnp.float32)
    wfc = jnp.pad(params['fc_w'], ((0, Fp - F), (0, Cp - C))).astype(jnp.bfloat16)
    bfc = jnp.pad(params['fc_b'], ((0, 0), (0, Cp - C))).astype(jnp.float32)

    # Gather embeddings DIRECTLY into time-major [S, B, Ep] (only the int32 ids are
    # transposed; no [B,S,E] activation transpose round-trip through HBM).
    # TODO(synk): bigger win is to scalar-prefetch the ids and DMA-gather inside the kernel.
    emb_t = jnp.take(emb_tbl, text.T, axis=0)           # [S, B, Ep] bf16

    budget, vmem_limit = _vmem_budget_and_limit()
    if batch_tile is None:
        batch_tile = _pick_batch_tile(B, S, Ep, Fp, budget)
    assert B % batch_tile == 0, (B, batch_tile)
    grid = (B // batch_tile,)

    # Rough cost hint so XLA schedules the gather / padding around the kernel sensibly.
    conv_rows, H = 2 * (S - 2), S - 2
    while H >= 2:
        H = (H - 2) // 2 + 1                            # post-block time length
        conv_rows += 2 * H
    flops = 2 * B * ((S - 2) * 3 * Ep * Fp + conv_rows * 3 * Fp * Fp + Fp * Cp)
    bytes_accessed = (2 * B * S * Ep + 2 * (3 * Ep * Fp + 3 * Fp * Fp + Fp * Cp)
                      + 4 * (2 * Fp + Cp) + 4 * B * Cp)
    cost = pl.CostEstimate(flops=int(flops), transcendentals=0,
                           bytes_accessed=int(bytes_accessed))

    out = pl.pallas_call(
        _dpcnn_kernel,
        out_shape=jax.ShapeDtypeStruct((B, Cp), jnp.float32),
        grid_spec=pltpu.PrefetchScalarGridSpec(
            num_scalar_prefetch=0,
            grid=grid,
            in_specs=[
                pl.BlockSpec((S, batch_tile, Ep), lambda i: (0, i, 0)),  # emb tile per step
                pl.BlockSpec((3 * Ep, Fp), lambda i: (0, 0)),            # region conv W (bf16)
                pl.BlockSpec((1, Fp), lambda i: (0, 0)),                 # region conv b (f32)
                pl.BlockSpec((3 * Fp, Fp), lambda i: (0, 0)),            # conv W (bf16)
                pl.BlockSpec((1, Fp), lambda i: (0, 0)),                 # conv b (f32)
                pl.BlockSpec((Fp, Cp), lambda i: (0, 0)),                # fc W (bf16)
                pl.BlockSpec((1, Cp), lambda i: (0, 0)),                 # fc b (f32)
            ],
            out_specs=pl.BlockSpec((batch_tile, Cp), lambda i: (i, 0)),
        ),
        compiler_params=pltpu.CompilerParams(
            dimension_semantics=("parallel",),
            vmem_limit_bytes=vmem_limit,
        ),
        cost_estimate=cost,
    )(emb_t, wr, br, wc, bc, wfc, bfc)
    return out[:, :C]                                   # drop lane padding of the class dim


def dpcnn_reference(text, params):
    """Pure-JAX f32 reference mirroring the PyTorch forward (eval mode)."""
    emb = jnp.take(params['embedding'], text, axis=0).astype(jnp.float32)   # [B, S, E]
    wr = params['conv_region_w']        # [3, E, F]
    br = params['conv_region_b'][0]
    wc = params['conv_w']               # [3, F, F]
    bc = params['conv_b'][0]

    def conv(x, w, b):                  # x: [B, H, Cin] -> [B, H-2, Cout]
        L = x.shape[1] - 2
        return sum(jnp.einsum('blc,cf->blf', x[:, k:k + L], w[k]) for k in range(3)) + b

    def pad_h(x, top, bot):
        return jnp.pad(x, ((0, 0), (top, bot), (0, 0)))

    x = conv(emb, wr, br)
    x = jnp.maximum(pad_h(x, 1, 1), 0.0)
    x = conv(x, wc, bc)
    x = jnp.maximum(pad_h(x, 1, 1), 0.0)
    x = conv(x, wc, bc)
    while x.shape[1] >= 2:
        xp = pad_h(x, 0, 1)
        Lp = (xp.shape[1] - 3) // 2 + 1
        px = jnp.stack([jnp.max(xp[:, 2 * t:2 * t + 3], axis=1) for t in range(Lp)], axis=1)
        y = jnp.maximum(pad_h(px, 1, 1), 0.0)
        y = conv(y, wc, bc)
        y = jnp.maximum(pad_h(y, 1, 1), 0.0)
        y = conv(y, wc, bc)
        x = y + px
    feat = x[:, 0, :]
    return feat @ params['fc_w'] + params['fc_b'][0]


def init_params(key, vocab_size, embedding_dim, num_filters, num_classes, pad_index=0):
    ks = jax.random.split(key, 7)
    emb = 0.1 * jax.random.normal(ks[0], (vocab_size, embedding_dim), jnp.float32)
    emb = emb.at[pad_index].set(0.0)   # nn.Embedding(padding_idx=pad_index)
    return {
        'embedding': emb,
        # PyTorch conv_region weight is [F, 1, 3, E]; stored here as [3, E, F] (tap, in, out).
        'conv_region_w': 0.1 * jax.random.normal(
            ks[1], (3, embedding_dim, num_filters), jnp.float32),
        'conv_region_b': 0.1 * jax.random.normal(ks[2], (1, num_filters), jnp.float32),
        # PyTorch conv weight is [F, F, 3, 1]; stored here as [3, F, F] (tap, in, out).
        'conv_w': 0.1 * jax.random.normal(
            ks[3], (3, num_filters, num_filters), jnp.float32),
        'conv_b': 0.1 * jax.random.normal(ks[4], (1, num_filters), jnp.float32),
        # PyTorch Linear weight is [C, F]; stored as the transpose [F, C].
        'fc_w': 0.1 * jax.random.normal(ks[5], (num_filters, num_classes), jnp.float32),
        'fc_b': 0.1 * jax.random.normal(ks[6], (1, num_classes), jnp.float32),
    }


if __name__ == "__main__":
    vocab_size = 20
    embedding_dim = 32
    num_filters = 8
    num_classes = 4
    batch, seq_len = 32, 16
    batch_tile = 16         # grid = (2,): exercises the pipelined batch grid / megacore split

    key = jax.random.PRNGKey(0)
    k_param, k_text = jax.random.split(key)
    params = init_params(k_param, vocab_size, embedding_dim, num_filters, num_classes)

    text = jax.random.randint(k_text, (batch, seq_len), 0, vocab_size, dtype=jnp.int32)
    text_lengths = jnp.full((batch,), seq_len, dtype=jnp.int32)

    out = dpcnn_forward(text, text_lengths, params, batch_tile=batch_tile)
    out = jax.block_until_ready(out)

    ref = dpcnn_reference(text, params)
    assert out.shape == (batch, num_classes), out.shape
    # bf16 MXU operands vs. f32 reference -> loosened tolerance.
    assert jnp.allclose(out, ref, atol=2e-2, rtol=2e-2), (out, ref)

    print("KERNEL_OK")
</pallas_src>

<mosaic_0001>
module attributes {stable_mosaic.version = 11 : i64} {
  func.func @_dpcnn_kernel(%arg0: i32, %arg1: memref<16x16x128xbf16, #tpu.memory_space<vmem>>, %arg2: memref<384x128xbf16, #tpu.memory_space<vmem>>, %arg3: memref<1x128xf32, #tpu.memory_space<vmem>>, %arg4: memref<384x128xbf16, #tpu.memory_space<vmem>>, %arg5: memref<1x128xf32, #tpu.memory_space<vmem>>, %arg6: memref<128x128xbf16, #tpu.memory_space<vmem>>, %arg7: memref<1x128xf32, #tpu.memory_space<vmem>>, %arg8: memref<16x128xf32, #tpu.memory_space<vmem>>) attributes {dimension_semantics = [#tpu.dimension_semantics<parallel>], iteration_bounds = array<i64: 2>, scalar_prefetch = 0 : i64, scratch_operands = 0 : i64, tpu.core_type = #tpu.core_type<tc>, window_params = [{transform_indices = @transform_0, window_bounds = array<i64: 16, 16, 128>}, {pipeline_mode = #tpu.pipeline_mode<synchronous>, transform_indices = @transform_1, window_bounds = array<i64: 384, 128>}, {pipeline_mode = #tpu.pipeline_mode<synchronous>, transform_indices = @transform_2, window_bounds = array<i64: 1, 128>}, {pipeline_mode = #tpu.pipeline_mode<synchronous>, transform_indices = @transform_3, window_bounds = array<i64: 384, 128>}, {pipeline_mode = #tpu.pipeline_mode<synchronous>, transform_indices = @transform_4, window_bounds = array<i64: 1, 128>}, {pipeline_mode = #tpu.pipeline_mode<synchronous>, transform_indices = @transform_5, window_bounds = array<i64: 128, 128>}, {pipeline_mode = #tpu.pipeline_mode<synchronous>, transform_indices = @transform_6, window_bounds = array<i64: 1, 128>}, {transform_indices = @transform_7, window_bounds = array<i64: 16, 128>}]} {
    %c0 = arith.constant 0 : index
    %c0_0 = arith.constant 0 : index
    %0 = vector.load %arg2[%c0, %c0_0] : memref<384x128xbf16, #tpu.memory_space<vmem>>, vector<384x128xbf16>
    %c0_1 = arith.constant 0 : index
    %c0_2 = arith.constant 0 : index
    %1 = vector.load %arg3[%c0_1, %c0_2] : memref<1x128xf32, #tpu.memory_space<vmem>>, vector<1x128xf32>
    %c0_3 = arith.constant 0 : index
    %c0_4 = arith.constant 0 : index
    %2 = vector.load %arg4[%c0_3, %c0_4] : memref<384x128xbf16, #tpu.memory_space<vmem>>, vector<384x128xbf16>
    %c0_5 = arith.constant 0 : index
    %c0_6 = arith.constant 0 : index
    %3 = vector.load %arg5[%c0_5, %c0_6] : memref<1x128xf32, #tpu.memory_space<vmem>>, vector<1x128xf32>
    %c0_7 = arith.constant 0 : index
    %c0_8 = arith.constant 0 : index
    %4 = vector.load %arg6[%c0_7, %c0_8] : memref<128x128xbf16, #tpu.memory_space<vmem>>, vector<128x128xbf16>
    %c0_9 = arith.constant 0 : index
    %c0_10 = arith.constant 0 : index
    %5 = vector.load %arg7[%c0_9, %c0_10] : memref<1x128xf32, #tpu.memory_space<vmem>>, vector<1x128xf32>
    %c0_11 = arith.constant 0 : index
    %c0_12 = arith.constant 0 : index
    %c0_13 = arith.constant 0 : index
    %6 = vector.load %arg1[%c0_11, %c0_12, %c0_13] : memref<16x16x128xbf16, #tpu.memory_space<vmem>>, vector<16x16x128xbf16>
    %7 = vector.extract_strided_slice %6 {offsets = [0, 0, 0], sizes = [14, 16, 128], strides = [1, 1, 1]} : vector<16x16x128xbf16> to vector<14x16x128xbf16>
    %8 = vector.extract_strided_slice %6 {offsets = [1, 0, 0], sizes = [14, 16, 128], strides = [1, 1, 1]} : vector<16x16x128xbf16> to vector<14x16x128xbf16>
    %9 = vector.extract_strided_slice %6 {offsets = [2, 0, 0], sizes = [14, 16, 128], strides = [1, 1, 1]} : vector<16x16x128xbf16> to vector<14x16x128xbf16>
    %10 = tpu.concatenate %7, %8, %9 in 2 : vector<14x16x128xbf16>, vector<14x16x128xbf16>, vector<14x16x128xbf16> -> vector<14x16x384xbf16>
    "tpu.trace_start"() <{level = 10 : i32, message = "lbk,kf->lbf"}> : () -> ()
    %cst = arith.constant dense<0.000000e+00> : vector<14x16x128xf32>
    %11 = tpu.matmul %10, %0, %cst {dimension_numbers = #tpu.dot_dimension_numbers<[2], [0], [0, 1], [1], [0, 0, 0, 1, 1, 1], [], []>} : vector<14x16x384xbf16>, vector<384x128xbf16>, vector<14x16x128xf32> -> vector<14x16x128xf32>
    "tpu.trace_stop"() : () -> ()
    %12 = vector.shape_cast %1 : vector<1x128xf32> to vector<1x1x128xf32>
    %13 = vector.broadcast %12 : vector<1x1x128xf32> to vector<14x16x128xf32>
    %14 = arith.addf %11, %13 : vector<14x16x128xf32>
    %cst_14 = arith.constant 0.000000e+00 : f32
    %15 = vector.broadcast %cst_14 : f32 to vector<1x16x128xf32>
    %cst_15 = arith.constant 0.000000e+00 : f32
    %16 = vector.broadcast %cst_15 : f32 to vector<1x16x128xf32>
    %17 = tpu.concatenate %15, %14, %16 in 0 : vector<1x16x128xf32>, vector<14x16x128xf32>, vector<1x16x128xf32> -> vector<16x16x128xf32>
    %cst_16 = arith.constant 0.000000e+00 : f32
    %18 = vector.broadcast %cst_16 : f32 to vector<16x16x128xf32>
    %19 = arith.maximumf %17, %18 : vector<16x16x128xf32>
    %20 = arith.truncf %19 : vector<16x16x128xf32> to vector<16x16x128xbf16>
    %21 = vector.extract_strided_slice %20 {offsets = [0, 0, 0], sizes = [14, 16, 128], strides = [1, 1, 1]} : vector<16x16x128xbf16> to vector<14x16x128xbf16>
    %22 = vector.extract_strided_slice %20 {offsets = [1, 0, 0], sizes = [14, 16, 128], strides = [1, 1, 1]} : vector<16x16x128xbf16> to vector<14x16x128xbf16>
    %23 = vector.extract_strided_slice %20 {offsets = [2, 0, 0], sizes = [14, 16, 128], strides = [1, 1, 1]} : vector<16x16x128xbf16> to vector<14x16x128xbf16>
    %24 = tpu.concatenate %21, %22, %23 in 2 : vector<14x16x128xbf16>, vector<14x16x128xbf16>, vector<14x16x128xbf16> -> vector<14x16x384xbf16>
    "tpu.trace_start"() <{level = 10 : i32, message = "lbk,kf->lbf"}> : () -> ()
    %cst_17 = arith.constant dense<0.000000e+00> : vector<14x16x128xf32>
    %25 = tpu.matmul %24, %2, %cst_17 {dimension_numbers = #tpu.dot_dimension_numbers<[2], [0], [0, 1], [1], [0, 0, 0, 1, 1, 1], [], []>} : vector<14x16x384xbf16>, vector<384x128xbf16>, vector<14x16x128xf32> -> vector<14x16x128xf32>
    "tpu.trace_stop"() : () -> ()
    %26 = vector.shape_cast %3 : vector<1x128xf32> to vector<1x1x128xf32>
    %27 = vector.broadcast %26 : vector<1x1x128xf32> to vector<14x16x128xf32>
    %28 = arith.addf %25, %27 : vector<14x16x128xf32>
    %cst_18 = arith.constant 0.000000e+00 : f32
    %29 = vector.broadcast %cst_18 : f32 to vector<1x16x128xf32>
    %cst_19 = arith.constant 0.000000e+00 : f32
    %30 = vector.broadcast %cst_19 : f32 to vector<1x16x128xf32>
    %31 = tpu.concatenate %29, %28, %30 in 0 : vector<1x16x128xf32>, vector<14x16x128xf32>, vector<1x16x128xf32> -> vector<16x16x128xf32>
    %cst_20 = arith.constant 0.000000e+00 : f32
    %32 = vector.broadcast %cst_20 : f32 to vector<16x16x128xf32>
    %33 = arith.maximumf %31, %32 : vector<16x16x128xf32>
    %34 = arith.truncf %33 : vector<16x16x128xf32> to vector<16x16x128xbf16>
    %35 = vector.extract_strided_slice %34 {offsets = [0, 0, 0], sizes = [14, 16, 128], strides = [1, 1, 1]} : vector<16x16x128xbf16> to vector<14x16x128xbf16>
    %36 = vector.extract_strided_slice %34 {offsets = [1, 0, 0], sizes = [14, 16, 128], strides = [1, 1, 1]} : vector<16x16x128xbf16> to vector<14x16x128xbf16>
    %37 = vector.extract_strided_slice %34 {offsets = [2, 0, 0], sizes = [14, 16, 128], strides = [1, 1, 1]} : vector<16x16x128xbf16> to vector<14x16x128xbf16>
    %38 = tpu.concatenate %35, %36, %37 in 2 : vector<14x16x128xbf16>, vector<14x16x128xbf16>, vector<14x16x128xbf16> -> vector<14x16x384xbf16>
    "tpu.trace_start"() <{level = 10 : i32, message = "lbk,kf->lbf"}> : () -> ()
    %cst_21 = arith.constant dense<0.000000e+00> : vector<14x16x128xf32>
    %39 = tpu.matmul %38, %2, %cst_21 {dimension_numbers = #tpu.dot_dimension_numbers<[2], [0], [0, 1], [1], [0, 0, 0, 1, 1, 1], [], []>} : vector<14x16x384xbf16>, vector<384x128xbf16>, vector<14x16x128xf32> -> vector<14x16x128xf32>
    "tpu.trace_stop"() : () -> ()
    %40 = vector.shape_cast %3 : vector<1x128xf32> to vector<1x1x128xf32>
    %41 = vector.broadcast %40 : vector<1x1x128xf32> to vector<14x16x128xf32>
    %42 = arith.addf %39, %41 : vector<14x16x128xf32>
    %cst_22 = arith.constant 0.000000e+00 : f32
    %43 = vector.broadcast %cst_22 : f32 to vector<1x16x128xf32>
    %44 = tpu.concatenate %42, %43 in 0 : vector<14x16x128xf32>, vector<1x16x128xf32> -> vector<15x16x128xf32>
    %cst_23 = arith.constant 0.000000e+00 : f32
    %45 = vector.broadcast %cst_23 : f32 to vector<1x16x128xf32>
    %46 = tpu.concatenate %44, %45 in 0 : vector<15x16x128xf32>, vector<1x16x128xf32> -> vector<16x16x128xf32>
    %47 = vector.shape_cast %46 : vector<16x16x128xf32> to vector<8x2x16x128xf32>
    %48 = vector.extract_strided_slice %47 {offsets = [0, 0, 0, 0], sizes = [7, 1, 16, 128], strides = [1, 1, 1, 1]} : vector<8x2x16x128xf32> to vector<7x1x16x128xf32>
    %49 = vector.shape_cast %48 : vector<7x1x16x128xf32> to vector<7x16x128xf32>
    %50 = vector.extract_strided_slice %47 {offsets = [0, 1, 0, 0], sizes = [7, 1, 16, 128], strides = [1, 1, 1, 1]} : vector<8x2x16x128xf32> to vector<7x1x16x128xf32>
    %51 = vector.shape_cast %50 : vector<7x1x16x128xf32> to vector<7x16x128xf32>
    %52 = arith.maximumf %49, %51 : vector<7x16x128xf32>
    %53 = vector.extract_strided_slice %47 {offsets = [1, 0, 0, 0], sizes = [7, 1, 16, 128], strides = [1, 1, 1, 1]} : vector<8x2x16x128xf32> to vector<7x1x16x128xf32>
    %54 = vector.shape_cast %53 : vector<7x1x16x128xf32> to vector<7x16x128xf32>
    %55 = arith.maximumf %52, %54 : vector<7x16x128xf32>
    %cst_24 = arith.constant 0.000000e+00 : f32
    %56 = vector.broadcast %cst_24 : f32 to vector<1x16x128xf32>
    %cst_25 = arith.constant 0.000000e+00 : f32
    %57 = vector.broadcast %cst_25 : f32 to vector<1x16x128xf32>
    %58 = tpu.concatenate %56, %55, %57 in 0 : vector<1x16x128xf32>, vector<7x16x128xf32>, vector<1x16x128xf32> -> vector<9x16x128xf32>
    %cst_26 = arith.constant 0.000000e+00 : f32
    %59 = vector.broadcast %cst_26 : f32 to vector<9x16x128xf32>
    %60 = arith.maximumf %58, %59 : vector<9x16x128xf32>
    %61 = arith.truncf %60 : vector<9x16x128xf32> to vector<9x16x128xbf16>
    %62 = vector.extract_strided_slice %61 {offsets = [0, 0, 0], sizes = [7, 16, 128], strides = [1, 1, 1]} : vector<9x16x128xbf16> to vector<7x16x128xbf16>
    %63 = vector.extract_strided_slice %61 {offsets = [1, 0, 0], sizes = [7, 16, 128], strides = [1, 1, 1]} : vector<9x16x128xbf16> to vector<7x16x128xbf16>
    %64 = vector.extract_strided_slice %61 {offsets = [2, 0, 0], sizes = [7, 16, 128], strides = [1, 1, 1]} : vector<9x16x128xbf16> to vector<7x16x128xbf16>
    %65 = tpu.concatenate %62, %63, %64 in 2 : vector<7x16x128xbf16>, vector<7x16x128xbf16>, vector<7x16x128xbf16> -> vector<7x16x384xbf16>
    "tpu.trace_start"() <{level = 10 : i32, message = "lbk,kf->lbf"}> : () -> ()
    %cst_27 = arith.constant dense<0.000000e+00> : vector<7x16x128xf32>
    %66 = tpu.matmul %65, %2, %cst_27 {dimension_numbers = #tpu.dot_dimension_numbers<[2], [0], [0, 1], [1], [0, 0, 0, 1, 1, 1], [], []>} : vector<7x16x384xbf16>, vector<384x128xbf16>, vector<7x16x128xf32> -> vector<7x16x128xf32>
    "tpu.trace_stop"() : () -> ()
    %67 = vector.shape_cast %3 : vector<1x128xf32> to vector<1x1x128xf32>
    %68 = vector.broadcast %67 : vector<1x1x128xf32> to vector<7x16x128xf32>
    %69 = arith.addf %66, %68 : vector<7x16x128xf32>
    %cst_28 = arith.constant 0.000000e+00 : f32
    %70 = vector.broadcast %cst_28 : f32 to vector<1x16x128xf32>
    %cst_29 = arith.constant 0.000000e+00 : f32
    %71 = vector.broadcast %cst_29 : f32 to vector<1x16x128xf32>
    %72 = tpu.concatenate %70, %69, %71 in 0 : vector<1x16x128xf32>, vector<7x16x128xf32>, vector<1x16x128xf32> -> vector<9x16x128xf32>
    %cst_30 = arith.constant 0.000000e+00 : f32
    %73 = vector.broadcast %cst_30 : f32 to vector<9x16x128xf32>
    %74 = arith.maximumf %72, %73 : vector<9x16x128xf32>
    %75 = arith.truncf %74 : vector<9x16x128xf32> to vector<9x16x128xbf16>
    %76 = vector.extract_strided_slice %75 {offsets = [0, 0, 0], sizes = [7, 16, 128], strides = [1, 1, 1]} : vector<9x16x128xbf16> to vector<7x16x128xbf16>
    %77 = vector.extract_strided_slice %75 {offsets = [1, 0, 0], sizes = [7, 16, 128], strides = [1, 1, 1]} : vector<9x16x128xbf16> to vector<7x16x128xbf16>
    %78 = vector.extract_strided_slice %75 {offsets = [2, 0, 0], sizes = [7, 16, 128], strides = [1, 1, 1]} : vector<9x16x128xbf16> to vector<7x16x128xbf16>
    %79 = tpu.concatenate %76, %77, %78 in 2 : vector<7x16x128xbf16>, vector<7x16x128xbf16>, vector<7x16x128xbf16> -> vector<7x16x384xbf16>
    "tpu.trace_start"() <{level = 10 : i32, message = "lbk,kf->lbf"}> : () -> ()
    %cst_31 = arith.constant dense<0.000000e+00> : vector<7x16x128xf32>
    %80 = tpu.matmul %79, %2, %cst_31 {dimension_numbers = #tpu.dot_dimension_numbers<[2], [0], [0, 1], [1], [0, 0, 0, 1, 1, 1], [], []>} : vector<7x16x384xbf16>, vector<384x128xbf16>, vector<7x16x128xf32> -> vector<7x16x128xf32>
    "tpu.trace_stop"() : () -> ()
    %81 = vector.shape_cast %3 : vector<1x128xf32> to vector<1x1x128xf32>
    %82 = vector.broadcast %81 : vector<1x1x128xf32> to vector<7x16x128xf32>
    %83 = arith.addf %80, %82 : vector<7x16x128xf32>
    %84 = arith.addf %83, %55 : vector<7x16x128xf32>
    %cst_32 = arith.constant 0.000000e+00 : f32
    %85 = vector.broadcast %cst_32 : f32 to vector<1x16x128xf32>
    %86 = tpu.concatenate %84, %85 in 0 : vector<7x16x128xf32>, vector<1x16x128xf32> -> vector<8x16x128xf32>
    %87 = vector.shape_cast %86 : vector<8x16x128xf32> to vector<4x2x16x128xf32>
    %88 = vector.extract_strided_slice %87 {offsets = [0, 0, 0, 0], sizes = [3, 1, 16, 128], strides = [1, 1, 1, 1]} : vector<4x2x16x128xf32> to vector<3x1x16x128xf32>
    %89 = vector.shape_cast %88 : vector<3x1x16x128xf32> to vector<3x16x128xf32>
    %90 = vector.extract_strided_slice %87 {offsets = [0, 1, 0, 0], sizes = [3, 1, 16, 128], strides = [1, 1, 1, 1]} : vector<4x2x16x128xf32> to vector<3x1x16x128xf32>
    %91 = vector.shape_cast %90 : vector<3x1x16x128xf32> to vector<3x16x128xf32>
    %92 = arith.maximumf %89, %91 : vector<3x16x128xf32>
    %93 = vector.extract_strided_slice %87 {offsets = [1, 0, 0, 0], sizes = [3, 1, 16, 128], strides = [1, 1, 1, 1]} : vector<4x2x16x128xf32> to vector<3x1x16x128xf32>
    %94 = vector.shape_cast %93 : vector<3x1x16x128xf32> to vector<3x16x128xf32>
    %95 = arith.maximumf %92, %94 : vector<3x16x128xf32>
    %cst_33 = arith.constant 0.000000e+00 : f32
    %96 = vector.broadcast %cst_33 : f32 to vector<1x16x128xf32>
    %cst_34 = arith.constant 0.000000e+00 : f32
    %97 = vector.broadcast %cst_34 : f32 to vector<1x16x128xf32>
    %98 = tpu.concatenate %96, %95, %97 in 0 : vector<1x16x128xf32>, vector<3x16x128xf32>, vector<1x16x128xf32> -> vector<5x16x128xf32>
    %cst_35 = arith.constant 0.000000e+00 : f32
    %99 = vector.broadcast %cst_35 : f32 to vector<5x16x128xf32>
    %100 = arith.maximumf %98, %99 : vector<5x16x128xf32>
    %101 = arith.truncf %100 : vector<5x16x128xf32> to vector<5x16x128xbf16>
    %102 = vector.extract_strided_slice %101 {offsets = [0, 0, 0], sizes = [3, 16, 128], strides = [1, 1, 1]} : vector<5x16x128xbf16> to vector<3x16x128xbf16>
    %103 = vector.extract_strided_slice %101 {offsets = [1, 0, 0], sizes = [3, 16, 128], strides = [1, 1, 1]} : vector<5x16x128xbf16> to vector<3x16x128xbf16>
    %104 = vector.extract_strided_slice %101 {offsets = [2, 0, 0], sizes = [3, 16, 128], strides = [1, 1, 1]} : vector<5x16x128xbf16> to vector<3x16x128xbf16>
    %105 = tpu.concatenate %102, %103, %104 in 2 : vector<3x16x128xbf16>, vector<3x16x128xbf16>, vector<3x16x128xbf16> -> vector<3x16x384xbf16>
    "tpu.trace_start"() <{level = 10 : i32, message = "lbk,kf->lbf"}> : () -> ()
    %cst_36 = arith.constant dense<0.000000e+00> : vector<3x16x128xf32>
    %106 = tpu.matmul %105, %2, %cst_36 {dimension_numbers = #tpu.dot_dimension_numbers<[2], [0], [0, 1], [1], [0, 0, 0, 1, 1, 1], [], []>} : vector<3x16x384xbf16>, vector<384x128xbf16>, vector<3x16x128xf32> -> vector<3x16x128xf32>
    "tpu.trace_stop"() : () -> ()
    %107 = vector.shape_cast %3 : vector<1x128xf32> to vector<1x1x128xf32>
    %108 = vector.broadcast %107 : vector<1x1x128xf32> to vector<3x16x128xf32>
    %109 = arith.addf %106, %108 : vector<3x16x128xf32>
    %cst_37 = arith.constant 0.000000e+00 : f32
    %110 = vector.broadcast %cst_37 : f32 to vector<1x16x128xf32>
    %cst_38 = arith.constant 0.000000e+00 : f32
    %111 = vector.broadcast %cst_38 : f32 to vector<1x16x128xf32>
    %112 = tpu.concatenate %110, %109, %111 in 0 : vector<1x16x128xf32>, vector<3x16x128xf32>, vector<1x16x128xf32> -> vector<5x16x128xf32>
    %cst_39 = arith.constant 0.000000e+00 : f32
    %113 = vector.broadcast %cst_39 : f32 to vector<5x16x128xf32>
    %114 = arith.maximumf %112, %113 : vector<5x16x128xf32>
    %115 = arith.truncf %114 : vector<5x16x128xf32> to vector<5x16x128xbf16>
    %116 = vector.extract_strided_slice %115 {offsets = [0, 0, 0], sizes = [3, 16, 128], strides = [1, 1, 1]} : vector<5x16x128xbf16> to vector<3x16x128xbf16>
    %117 = vector.extract_strided_slice %115 {offsets = [1, 0, 0], sizes = [3, 16, 128], strides = [1, 1, 1]} : vector<5x16x128xbf16> to vector<3x16x128xbf16>
    %118 = vector.extract_strided_slice %115 {offsets = [2, 0, 0], sizes = [3, 16, 128], strides = [1, 1, 1]} : vector<5x16x128xbf16> to vector<3x16x128xbf16>
    %119 = tpu.concatenate %116, %117, %118 in 2 : vector<3x16x128xbf16>, vector<3x16x128xbf16>, vector<3x16x128xbf16> -> vector<3x16x384xbf16>
    "tpu.trace_start"() <{level = 10 : i32, message = "lbk,kf->lbf"}> : () -> ()
    %cst_40 = arith.constant dense<0.000000e+00> : vector<3x16x128xf32>
    %120 = tpu.matmul %119, %2, %cst_40 {dimension_numbers = #tpu.dot_dimension_numbers<[2], [0], [0, 1], [1], [0, 0, 0, 1, 1, 1], [], []>} : vector<3x16x384xbf16>, vector<384x128xbf16>, vector<3x16x128xf32> -> vector<3x16x128xf32>
    "tpu.trace_stop"() : () -> ()
    %121 = vector.shape_cast %3 : vector<1x128xf32> to vector<1x1x128xf32>
    %122 = vector.broadcast %121 : vector<1x1x128xf32> to vector<3x16x128xf32>
    %123 = arith.addf %120, %122 : vector<3x16x128xf32>
    %124 = arith.addf %123, %95 : vector<3x16x128xf32>
    %cst_41 = arith.constant 0.000000e+00 : f32
    %125 = vector.broadcast %cst_41 : f32 to vector<1x16x128xf32>
    %126 = tpu.concatenate %124, %125 in 0 : vector<3x16x128xf32>, vector<1x16x128xf32> -> vector<4x16x128xf32>
    %127 = vector.shape_cast %126 : vector<4x16x128xf32> to vector<2x2x16x128xf32>
    %128 = vector.extract_strided_slice %127 {offsets = [0, 0, 0, 0], sizes = [1, 1, 16, 128], strides = [1, 1, 1, 1]} : vector<2x2x16x128xf32> to vector<1x1x16x128xf32>
    %129 = vector.shape_cast %128 : vector<1x1x16x128xf32> to vector<1x16x128xf32>
    %130 = vector.extract_strided_slice %127 {offsets = [0, 1, 0, 0], sizes = [1, 1, 16, 128], strides = [1, 1, 1, 1]} : vector<2x2x16x128xf32> to vector<1x1x16x128xf32>
    %131 = vector.shape_cast %130 : vector<1x1x16x128xf32> to vector<1x16x128xf32>
    %132 = arith.maximumf %129, %131 : vector<1x16x128xf32>
    %133 = vector.extract_strided_slice %127 {offsets = [1, 0, 0, 0], sizes = [1, 1, 16, 128], strides = [1, 1, 1, 1]} : vector<2x2x16x128xf32> to vector<1x1x16x128xf32>
    %134 = vector.shape_cast %133 : vector<1x1x16x128xf32> to vector<1x16x128xf32>
    %135 = arith.maximumf %132, %134 : vector<1x16x128xf32>
    %cst_42 = arith.constant 0.000000e+00 : f32
    %136 = vector.broadcast %cst_42 : f32 to vector<1x16x128xf32>
    %cst_43 = arith.constant 0.000000e+00 : f32
    %137 = vector.broadcast %cst_43 : f32 to vector<1x16x128xf32>
    %138 = tpu.concatenate %136, %135, %137 in 0 : vector<1x16x128xf32>, vector<1x16x128xf32>, vector<1x16x128xf32> -> vector<3x16x128xf32>
    %cst_44 = arith.constant 0.000000e+00 : f32
    %139 = vector.broadcast %cst_44 : f32 to vector<3x16x128xf32>
    %140 = arith.maximumf %138, %139 : vector<3x16x128xf32>
    %141 = arith.truncf %140 : vector<3x16x128xf32> to vector<3x16x128xbf16>
    %142 = vector.extract_strided_slice %141 {offsets = [0, 0, 0], sizes = [1, 16, 128], strides = [1, 1, 1]} : vector<3x16x128xbf16> to vector<1x16x128xbf16>
    %143 = vector.extract_strided_slice %141 {offsets = [1, 0, 0], sizes = [1, 16, 128], strides = [1, 1, 1]} : vector<3x16x128xbf16> to vector<1x16x128xbf16>
    %144 = vector.extract_strided_slice %141 {offsets = [2, 0, 0], sizes = [1, 16, 128], strides = [1, 1, 1]} : vector<3x16x128xbf16> to vector<1x16x128xbf16>
    %145 = tpu.concatenate %142, %143, %144 in 2 : vector<1x16x128xbf16>, vector<1x16x128xbf16>, vector<1x16x128xbf16> -> vector<1x16x384xbf16>
    "tpu.trace_start"() <{level = 10 : i32, message = "lbk,kf->lbf"}> : () -> ()
    %cst_45 = arith.constant dense<0.000000e+00> : vector<1x16x128xf32>
    %146 = tpu.matmul %145, %2, %cst_45 {dimension_numbers = #tpu.dot_dimension_numbers<[2], [0], [0, 1], [1], [0, 0, 0, 1, 1, 1], [], []>} : vector<1x16x384xbf16>, vector<384x128xbf16>, vector<1x16x128xf32> -> vector<1x16x128xf32>
    "tpu.trace_stop"() : () -> ()
    %147 = vector.shape_cast %3 : vector<1x128xf32> to vector<1x1x128xf32>
    %148 = vector.broadcast %147 : vector<1x1x128xf32> to vector<1x16x128xf32>
    %149 = arith.addf %146, %148 : vector<1x16x128xf32>
    %cst_46 = arith.constant 0.000000e+00 : f32
    %150 = vector.broadcast %cst_46 : f32 to vector<1x16x128xf32>
    %cst_47 = arith.constant 0.000000e+00 : f32
    %151 = vector.broadcast %cst_47 : f32 to vector<1x16x128xf32>
    %152 = tpu.concatenate %150, %149, %151 in 0 : vector<1x16x128xf32>, vector<1x16x128xf32>, vector<1x16x128xf32> -> vector<3x16x128xf32>
    %cst_48 = arith.constant 0.000000e+00 : f32
    %153 = vector.broadcast %cst_48 : f32 to vector<3x16x128xf32>
    %154 = arith.maximumf %152, %153 : vector<3x16x128xf32>
    %155 = arith.truncf %154 : vector<3x16x128xf32> to vector<3x16x128xbf16>
    %156 = vector.extract_strided_slice %155 {offsets = [0, 0, 0], sizes = [1, 16, 128], strides = [1, 1, 1]} : vector<3x16x128xbf16> to vector<1x16x128xbf16>
    %157 = vector.extract_strided_slice %155 {offsets = [1, 0, 0], sizes = [1, 16, 128], strides = [1, 1, 1]} : vector<3x16x128xbf16> to vector<1x16x128xbf16>
    %158 = vector.extract_strided_slice %155 {offsets = [2, 0, 0], sizes = [1, 16, 128], strides = [1, 1, 1]} : vector<3x16x128xbf16> to vector<1x16x128xbf16>
    %159 = tpu.concatenate %156, %157, %158 in 2 : vector<1x16x128xbf16>, vector<1x16x128xbf16>, vector<1x16x128xbf16> -> vector<1x16x384xbf16>
    "tpu.trace_start"() <{level = 10 : i32, message = "lbk,kf->lbf"}> : () -> ()
    %cst_49 = arith.constant dense<0.000000e+00> : vector<1x16x128xf32>
    %160 = tpu.matmul %159, %2, %cst_49 {dimension_numbers = #tpu.dot_dimension_numbers<[2], [0], [0, 1], [1], [0, 0, 0, 1, 1, 1], [], []>} : vector<1x16x384xbf16>, vector<384x128xbf16>, vector<1x16x128xf32> -> vector<1x16x128xf32>
    "tpu.trace_stop"() : () -> ()
    %161 = vector.shape_cast %3 : vector<1x128xf32> to vector<1x1x128xf32>
    %162 = vector.broadcast %161 : vector<1x1x128xf32> to vector<1x16x128xf32>
    %163 = arith.addf %160, %162 : vector<1x16x128xf32>
    %164 = arith.addf %163, %135 : vector<1x16x128xf32>
    %165 = vector.shape_cast %164 : vector<1x16x128xf32> to vector<16x128xf32>
    %166 = arith.truncf %165 : vector<16x128xf32> to vector<16x128xbf16>
    %cst_50 = arith.constant dense<0.000000e+00> : vector<16x128xf32>
    %167 = tpu.matmul %166, %4, %cst_50 {dimension_numbers = #tpu.dot_dimension_numbers<[1], [0], [0], [1], [0, 0, 1, 1], [], []>} : vector<16x128xbf16>, vector<128x128xbf16>, vector<16x128xf32> -> vector<16x128xf32>
    %168 = vector.broadcast %5 : vector<1x128xf32> to vector<16x128xf32>
    %169 = arith.addf %167, %168 : vector<16x128xf32>
    %c0_51 = arith.constant 0 : index
    %c0_52 = arith.constant 0 : index
    %170 = vector.load %arg8[%c0_51, %c0_52] : memref<16x128xf32, #tpu.memory_space<vmem>>, vector<16x128xf32>
    tpu.vector_store %arg8[%c0_51, %c0_52], %169 {strides = array<i32>} : memref<16x128xf32, #tpu.memory_space<vmem>>, vector<16x128xf32>,
    return
  }
  func.func @transform_0(%arg0: i32) -> (i32, i32, i32) {
    %c0_i32 = arith.constant 0 : i32
    %c0_i32_0 = arith.constant 0 : i32
    %c0_i32_1 = arith.constant 0 : i32
    return %c0_i32, %arg0, %c0_i32_0 : i32, i32, i32
  }
  func.func @transform_1(%arg0: i32) -> (i32, i32) {
    %c0_i32 = arith.constant 0 : i32
    %c0_i32_0 = arith.constant 0 : i32
    %c0_i32_1 = arith.constant 0 : i32
    return %c0_i32, %c0_i32_0 : i32, i32
  }
  func.func @transform_2(%arg0: i32) -> (i32, i32) {
    %c0_i32 = arith.constant 0 : i32
    %c0_i32_0 = arith.constant 0 : i32
    %c0_i32_1 = arith.constant 0 : i32
    return %c0_i32, %c0_i32_0 : i32, i32
  }
  func.func @transform_3(%arg0: i32) -> (i32, i32) {
    %c0_i32 = arith.constant 0 : i32
    %c0_i32_0 = arith.constant 0 : i32
    %c0_i32_1 = arith.constant 0 : i32
    return %c0_i32, %c0_i32_0 : i32, i32
  }
  func.func @transform_4(%arg0: i32) -> (i32, i32) {
    %c0_i32 = arith.constant 0 : i32
    %c0_i32_0 = arith.constant 0 : i32
    %c0_i32_1 = arith.constant 0 : i32
    return %c0_i32, %c0_i32_0 : i32, i32
  }
  func.func @transform_5(%arg0: i32) -> (i32, i32) {
    %c0_i32 = arith.constant 0 : i32
    %c0_i32_0 = arith.constant 0 : i32
    %c0_i32_1 = arith.constant 0 : i32
    return %c0_i32, %c0_i32_0 : i32, i32
  }
  func.func @transform_6(%arg0: i32) -> (i32, i32) {
    %c0_i32 = arith.constant 0 : i32
    %c0_i32_0 = arith.constant 0 : i32
    %c0_i32_1 = arith.constant 0 : i32
    return %c0_i32, %c0_i32_0 : i32, i32
  }
  func.func @transform_7(%arg0: i32) -> (i32, i32) {
    %c0_i32 = arith.constant 0 : i32
    %c0_i32_0 = arith.constant 0 : i32
    return %arg0, %c0_i32 : i32, i32
  }
}

</mosaic_0001>

<llo_original>
// kernel: dpcnn_forward.1
$region0: #{dpcnn_forward.1}
  #allocation0 [shape = 'u32[]', space=smem, size = 0x4, offset = 0x4, fixed_abs, tag = 'smem constant byte address 0x4 - core index']
  #allocation1 [shape = 'u32[144,128]{1,0:T(1,128)}', space=vmem, size = 0x12000, scoped, tag = 'internal scratch']
  %s0 = inlined_call_operand.vmem [shape: bf16[16,32,128], index: 0, kind: input, shape index: {}]
  %s1 = inlined_call_operand.vmem [shape: bf16[384,128], index: 1, kind: input, shape index: {}]
  %s2 = inlined_call_operand.vmem [shape: f32[1,128], index: 2, kind: input, shape index: {}]
  %s3 = inlined_call_operand.vmem [shape: bf16[384,128], index: 3, kind: input, shape index: {}]
  %s4 = inlined_call_operand.vmem [shape: f32[1,128], index: 4, kind: input, shape index: {}]
  %s5 = inlined_call_operand.vmem [shape: bf16[128,128], index: 5, kind: input, shape index: {}]
  %s6 = inlined_call_operand.vmem [shape: f32[1,128], index: 6, kind: input, shape index: {}]
  %s7 = inlined_call_operand.vmem [shape: f32[32,128], index: 7, kind: output, shape index: {}]
  %s8 = sld [smem:[#allocation0]]
  $region102: #{dpcnn_forward.1} parent=0
    _
  %s10 = ssub.s32 1, %s8
  %s11 = scalar_select 0, %s10, %s8
  $region1: #{dpcnn_forward.1} parent=0
    #allocation2 [shape = 'u8[131072]{0}', space=vmem, size = 0x20000, scoped, tag = 'input window, operand 0']
    loop: start=0, step=1, limit=4
    $region2: #{dpcnn_forward.1} parent=1 // loop_pre_header
      _
    $region3: #{dpcnn_forward.1} parent=1 // loop_header
      %s13 = sphi 0, %s17
      %p14 = scmp.ge.s32.totalorder %s13, 4
      %s23 = sphi 0, %s25
      %s26 = sphi 0, %s23
      %s27 = sphi 0, %s26
      %s43 = sphi 0, %s27
      %s47 = sphi 0, %s47
      %s49 = sphi 0, %s47
      %s50 = sphi 0, %s49
      %s64 = sphi 0, %s50
      %s68 = sphi 0, %s68
      %s70 = sphi 0, %s68
      %s71 = sphi 0, %s70
      %s85 = sphi 0, %s71
      %s89 = sphi 0, %s89
      %s91 = sphi 0, %s89
      %s92 = sphi 0, %s91
      %s106 = sphi 0, %s92
      %s110 = sphi 0, %s110
      %s112 = sphi 0, %s110
      %s113 = sphi 0, %s112
      %s127 = sphi 0, %s113
      %s131 = sphi 0, %s131
      %s133 = sphi 0, %s131
      %s134 = sphi 0, %s133
      %s148 = sphi 0, %s134
      %s152 = sphi 0, %s152
      %s154 = sphi 0, %s152
      %s155 = sphi 0, %s154
      %s169 = sphi 0, %s155
      %s175 = sphi 0, %s177
      %s178 = sphi 0, %s175
      %s179 = sphi 0, %s178
      %s195 = sphi 0, %s179
    $region4: #{dpcnn_forward.1} parent=1 // loop_header_branch
      %16 = sbr.rel (%p14) target = $region8
    $region5: #{dpcnn_forward.1} parent=1 // loop_body
      %s18 = ssub.s32 %s13, 1
      %s19 = ssub.s32 %s13, 2
      %s20 = sadd.s32 %s13, 1
      %s21 = ssub.s32 %s13, %s20
      %p22 = scmp.eq.s32.totalorder %s21, 0
      %s24 = sadd.s32 %s23, 1
      %s25 = scalar_select %p22, %s23, %s24
      %p28 = pneg %p22
      %p29 = scmp.eq.s32.totalorder %s13, 1
      %p30 = por %p28, %p29
      %p31 = scmp.ne.s32.totalorder %s23, %s26
      %p32 = scmp.eq.s32.totalorder %s13, 0
      %p33 = por %p31, %p32
      %p34 = scmp.ne.s32.totalorder %s23, %s26
      %p35 = scmp.eq.s32.totalorder %s18, 1
      %p36 = por %p34, %p35
      %p37 = scmp.ne.s32.totalorder %s26, %s27
      %p38 = scmp.eq.s32.totalorder %s18, 0
      %p39 = por %p37, %p38
      %p40 = scmp.ne.s32.totalorder %s26, %s27
      %p41 = scmp.eq.s32.totalorder %s19, 1
      %p42 = por %p40, %p41
      %p44 = scmp.ne.s32.totalorder %s27, %s43
      %p45 = scmp.eq.s32.totalorder %s19, 0
      %p46 = por %p44, %p45
      %s48 = sadd.s32 %s47, 1
      %p51 = scmp.eq.s32.totalorder %s13, 1
      %p52 = scmp.ne.s32.totalorder %s47, %s49
      %p53 = scmp.eq.s32.totalorder %s13, 0
      %p54 = por %p52, %p53
      %p55 = scmp.ne.s32.totalorder %s47, %s49
      %p56 = scmp.eq.s32.totalorder %s18, 1
      %p57 = por %p55, %p56
      %p58 = scmp.ne.s32.totalorder %s49, %s50
      %p59 = scmp.eq.s32.totalorder %s18, 0
      %p60 = por %p58, %p59
      %p61 = scmp.ne.s32.totalorder %s49, %s50
      %p62 = scmp.eq.s32.totalorder %s19, 1
      %p63 = por %p61, %p62
      %p65 = scmp.ne.s32.totalorder %s50, %s64
      %p66 = scmp.eq.s32.totalorder %s19, 0
      %p67 = por %p65, %p66
      %s69 = sadd.s32 %s68, 1
      %p72 = scmp.eq.s32.totalorder %s13, 1
      %p73 = scmp.ne.s32.totalorder %s68, %s70
      %p74 = scmp.eq.s32.totalorder %s13, 0
      %p75 = por %p73, %p74
      %p76 = scmp.ne.s32.totalorder %s68, %s70
      %p77 = scmp.eq.s32.totalorder %s18, 1
      %p78 = por %p76, %p77
      %p79 = scmp.ne.s32.totalorder %s70, %s71
      %p80 = scmp.eq.s32.totalorder %s18, 0
      %p81 = por %p79, %p80
      %p82 = scmp.ne.s32.totalorder %s70, %s71
      %p83 = scmp.eq.s32.totalorder %s19, 1
      %p84 = por %p82, %p83
      %p86 = scmp.ne.s32.totalorder %s71, %s85
      %p87 = scmp.eq.s32.totalorder %s19, 0
      %p88 = por %p86, %p87
      %s90 = sadd.s32 %s89, 1
      %p93 = scmp.eq.s32.totalorder %s13, 1
      %p94 = scmp.ne.s32.totalorder %s89, %s91
      %p95 = scmp.eq.s32.totalorder %s13, 0
      %p96 = por %p94, %p95
      %p97 = scmp.ne.s32.totalorder %s89, %s91
      %p98 = scmp.eq.s32.totalorder %s18, 1
      %p99 = por %p97, %p98
      %p100 = scmp.ne.s32.totalorder %s91, %s92
      %p101 = scmp.eq.s32.totalorder %s18, 0
      %p102 = por %p100, %p101
      %p103 = scmp.ne.s32.totalorder %s91, %s92
      %p104 = scmp.eq.s32.totalorder %s19, 1
      %p105 = por %p103, %p104
      %p107 = scmp.ne.s32.totalorder %s92, %s106
      %p108 = scmp.eq.s32.totalorder %s19, 0
      %p109 = por %p107, %p108
      %s111 = sadd.s32 %s110, 1
      %p114 = scmp.eq.s32.totalorder %s13, 1
      %p115 = scmp.ne.s32.totalorder %s110, %s112
      %p116 = scmp.eq.s32.totalorder %s13, 0
      %p117 = por %p115, %p116
      %p118 = scmp.ne.s32.totalorder %s110, %s112
      %p119 = scmp.eq.s32.totalorder %s18, 1
      %p120 = por %p118, %p119
      %p121 = scmp.ne.s32.totalorder %s112, %s113
      %p122 = scmp.eq.s32.totalorder %s18, 0
      %p123 = por %p121, %p122
      %p124 = scmp.ne.s32.totalorder %s112, %s113
      %p125 = scmp.eq.s32.totalorder %s19, 1
      %p126 = por %p124, %p125
      %p128 = scmp.ne.s32.totalorder %s113, %s127
      %p129 = scmp.eq.s32.totalorder %s19, 0
      %p130 = por %p128, %p129
      %s132 = sadd.s32 %s131, 1
      %p135 = scmp.eq.s32.totalorder %s13, 1
      %p136 = scmp.ne.s32.totalorder %s131, %s133
      %p137 = scmp.eq.s32.totalorder %s13, 0
      %p138 = por %p136, %p137
      %p139 = scmp.ne.s32.totalorder %s131, %s133
      %p140 = scmp.eq.s32.totalorder %s18, 1
      %p141 = por %p139, %p140
      %p142 = scmp.ne.s32.totalorder %s133, %s134
      %p143 = scmp.eq.s32.totalorder %s18, 0
      %p144 = por %p142, %p143
      %p145 = scmp.ne.s32.totalorder %s133, %s134
      %p146 = scmp.eq.s32.totalorder %s19, 1
      %p147 = por %p145, %p146
      %p149 = scmp.ne.s32.totalorder %s134, %s148
      %p150 = scmp.eq.s32.totalorder %s19, 0
      %p151 = por %p149, %p150
      %s153 = sadd.s32 %s152, 1
      %p156 = scmp.eq.s32.totalorder %s13, 1
      %p157 = scmp.ne.s32.totalorder %s152, %s154
      %p158 = scmp.eq.s32.totalorder %s13, 0
      %p159 = por %p157, %p158
      %p160 = scmp.ne.s32.totalorder %s152, %s154
      %p161 = scmp.eq.s32.totalorder %s18, 1
      %p162 = por %p160, %p161
      %p163 = scmp.ne.s32.totalorder %s154, %s155
      %p164 = scmp.eq.s32.totalorder %s18, 0
      %p165 = por %p163, %p164
      %p166 = scmp.ne.s32.totalorder %s154, %s155
      %p167 = scmp.eq.s32.totalorder %s19, 1
      %p168 = por %p166, %p167
      %p170 = scmp.ne.s32.totalorder %s155, %s169
      %p171 = scmp.eq.s32.totalorder %s19, 0
      %p172 = por %p170, %p171
      %s173 = ssub.s32 %s13, %s20
      %p174 = scmp.eq.s32.totalorder %s173, 0
      %s176 = sadd.s32 %s175, 1
      %s177 = scalar_select %p174, %s175, %s176
      %p180 = pneg %p174
      %p181 = scmp.eq.s32.totalorder %s13, 1
      %p182 = por %p180, %p181
      %p183 = scmp.ne.s32.totalorder %s175, %s178
      %p184 = scmp.eq.s32.totalorder %s13, 0
      %p185 = por %p183, %p184
      %p186 = scmp.ne.s32.totalorder %s175, %s178
      %p187 = scmp.eq.s32.totalorder %s18, 1
      %p188 = por %p186, %p187
      %p189 = scmp.ne.s32.totalorder %s178, %s179
      %p190 = scmp.eq.s32.totalorder %s18, 0
      %p191 = por %p189, %p190
      %p192 = scmp.ne.s32.totalorder %s178, %s179
      %p193 = scmp.eq.s32.totalorder %s19, 1
      %p194 = por %p192, %p193
      %p196 = scmp.ne.s32.totalorder %s179, %s195
      %p197 = scmp.eq.s32.totalorder %s19, 0
      %p198 = por %p196, %p197
      %p199 = scmp.le.s32.totalorder 1, %s13
      %p200 = scmp.lt.s32.totalorder %s13, 3
      %p201 = pnand %p199, %p200
      %p202 = pneg %p201
      // Predicated region
      $region9: #{dpcnn_forward.1} parent=5 // pred_check
        _
      $region10: #{dpcnn_forward.1} parent=5 // pred_check_branch
        %204 = sbr.rel (%p201) target = $region12
      $region11: #{dpcnn_forward.1} parent=5 // pred_region
        %s205 = ssub.s32 %s13, 1
        // Predicated region
        $region13: #{dpcnn_forward.1} parent=11 // pred_check
          %p206 = pneg %p60
        $region14: #{dpcnn_forward.1} parent=11 // pred_check_branch
          %208 = sbr.rel (%p206) target = $region16
        $region15: #{dpcnn_forward.1} parent=11 // pred_region
          _
        $region16: #{dpcnn_forward.1} parent=11 // pred_fallthru
          _
        // Predicated region
        $region17: #{dpcnn_forward.1} parent=11 // pred_check
          %p209 = pneg %p81
        $region18: #{dpcnn_forward.1} parent=11 // pred_check_branch
          %211 = sbr.rel (%p209) target = $region20
        $region19: #{dpcnn_forward.1} parent=11 // pred_region
          _
        $region20: #{dpcnn_forward.1} parent=11 // pred_fallthru
          _
        // Predicated region
        $region21: #{dpcnn_forward.1} parent=11 // pred_check
          %p212 = pneg %p102
        $region22: #{dpcnn_forward.1} parent=11 // pred_check_branch
          %214 = sbr.rel (%p212) target = $region24
        $region23: #{dpcnn_forward.1} parent=11 // pred_region
          _
        $region24: #{dpcnn_forward.1} parent=11 // pred_fallthru
          _
        // Predicated region
        $region25: #{dpcnn_forward.1} parent=11 // pred_check
          %p215 = pneg %p123
        $region26: #{dpcnn_forward.1} parent=11 // pred_check_branch
          %217 = sbr.rel (%p215) target = $region28
        $region27: #{dpcnn_forward.1} parent=11 // pred_region
          _
        $region28: #{dpcnn_forward.1} parent=11 // pred_fallthru
          _
        // Predicated region
        $region29: #{dpcnn_forward.1} parent=11 // pred_check
          %p218 = pneg %p144
        $region30: #{dpcnn_forward.1} parent=11 // pred_check_branch
          %220 = sbr.rel (%p218) target = $region32
        $region31: #{dpcnn_forward.1} parent=11 // pred_region
          _
        $region32: #{dpcnn_forward.1} parent=11 // pred_fallthru
          _
        // Predicated region
        $region33: #{dpcnn_forward.1} parent=11 // pred_check
          %p221 = pneg %p165
        $region34: #{dpcnn_forward.1} parent=11 // pred_check_branch
          %223 = sbr.rel (%p221) target = $region36
        $region35: #{dpcnn_forward.1} parent=11 // pred_region
          _
        $region36: #{dpcnn_forward.1} parent=11 // pred_fallthru
          _
      $region12: #{dpcnn_forward.1} parent=5 // pred_fallthru
        _
      %p224 = scmp.lt.s32.totalorder %s13, 2
      // Predicated region
      $region37: #{dpcnn_forward.1} parent=5 // pred_check
        %p225 = pneg %p224
      $region38: #{dpcnn_forward.1} parent=5 // pred_check_branch
        %227 = sbr.rel (%p225) target = $region40
      $region39: #{dpcnn_forward.1} parent=5 // pred_region
        // Predicated region
        $region41: #{dpcnn_forward.1} parent=39 // pred_check
          %p228 = pneg %p33
        $region42: #{dpcnn_forward.1} parent=39 // pred_check_branch
          %230 = sbr.rel (%p228) target = $region44
        $region43: #{dpcnn_forward.1} parent=39 // pred_region
          %s231 = sand.u32 %s23, 1
          %s232 = sand.u32 %s23, 1
          %s233 = smul.addr %s232, 128
          %s234 = scalar_lea.vmem [#allocation2], %s233
          %s235 = smul.u32 2, %s13
          %s236 = smul.addr %s235, 4
          %s237 = scalar_lea.vmem %s0, %s236
          // Predicated region
          $region45: #{dpcnn_forward.1} parent=43 // pred_check
            _
          $region46: #{dpcnn_forward.1} parent=43 // pred_check_branch
            %239 = sbr.rel (0) target = $region48
          $region47: #{dpcnn_forward.1} parent=43 // pred_region
            // Predicated region
            $region49: #{dpcnn_forward.1} parent=47 // pred_check
              _
            $region50: #{dpcnn_forward.1} parent=47 // pred_check_branch
              %241 = sbr.rel target = $region52
            $region51: #{dpcnn_forward.1} parent=47 // pred_region
              // Predicated region
              $region64: #{dpcnn_forward.1} parent=51 // pred_check
                _
              $region65: #{dpcnn_forward.1} parent=51 // pred_check_branch
                %318 = sbr.rel (0) target = $region67
              $region66: #{dpcnn_forward.1} parent=51 // pred_region
                loop: start=0, step=1, limit=1
                $region68: #{dpcnn_forward.1} parent=66 // loop_pre_header
                  _
                $region69: #{dpcnn_forward.1} parent=66 // loop_header
                  %s320 = sphi 0, %s324
                  %p321 = scmp.ge.s32.totalorder %s320, 1
                  %s325 = sphi %s237, %s237
                  %s326 = sphi %s234, %s234
                $region70: #{dpcnn_forward.1} parent=66 // loop_header_branch
                  %323 = sbr.rel (%p321) target = $region74
                $region71: #{dpcnn_forward.1} parent=66 // loop_body
                  _
                $region72: #{dpcnn_forward.1} parent=66 // loop_footer
                  %s324 = sadd.s32 1, %s320
                $region73: #{dpcnn_forward.1} parent=66 // loop_footer_branch
                  %319 = sbr.rel target = $region69
                $region74: #{dpcnn_forward.1} parent=66 // loop_exit
                  _
                loop: start=0, step=1, limit=1
                $region75: #{dpcnn_forward.1} parent=66 // loop_pre_header
                  _
                $region76: #{dpcnn_forward.1} parent=66 // loop_header
                  %s329 = sphi 0, %s333
                  %p330 = scmp.ge.s32.totalorder %s329, 1
                  %s334 = sphi %s237, %s237
                  %s335 = sphi %s234, %s234
                $region77: #{dpcnn_forward.1} parent=66 // loop_header_branch
                  %332 = sbr.rel (%p330) target = $region81
                $region78: #{dpcnn_forward.1} parent=66 // loop_body
                  %v336 = vld [vmem:[%s334] sm:$0xf]
                  %337 = vst [vmem:[%s335] sm:$0xf] %v336
                  %v338 = vld [vmem:[%s334 + $0x4] sm:$0xf]
                  %339 = vst [vmem:[%s335 + $0x4] sm:$0xf] %v338
                  %v340 = vld [vmem:[%s334 + $0x10] sm:$0xf]
                  %341 = vst [vmem:[%s335 + $0x8] sm:$0xf] %v340
                  %v342 = vld [vmem:[%s334 + $0x14] sm:$0xf]
                  %343 = vst [vmem:[%s335 + $0xc] sm:$0xf] %v342
                  %v344 = vld [vmem:[%s334 + $0x20] sm:$0xf]
                  %345 = vst [vmem:[%s335 + $0x10] sm:$0xf] %v344
                  %v346 = vld [vmem:[%s334 + $0x24] sm:$0xf]
                  %347 = vst [vmem:[%s335 + $0x14] sm:$0xf] %v346
                  %v348 = vld [vmem:[%s334 + $0x30] sm:$0xf]
                  %349 = vst [vmem:[%s335 + $0x18] sm:$0xf] %v348
                  %v350 = vld [vmem:[%s334 + $0x34] sm:$0xf]
                  %351 = vst [vmem:[%s335 + $0x1c] sm:$0xf] %v350
                  %v352 = vld [vmem:[%s334 + $0x40] sm:$0xf]
                  %353 = vst [vmem:[%s335 + $0x20] sm:$0xf] %v352
                  %v354 = vld [vmem:[%s334 + $0x44] sm:$0xf]
                  %355 = vst [vmem:[%s335 + $0x24] sm:$0xf] %v354
                  %v356 = vld [vmem:[%s334 + $0x50] sm:$0xf]
                  %357 = vst [vmem:[%s335 + $0x28] sm:$0xf] %v356
                  %v358 = vld [vmem:[%s334 + $0x54] sm:$0xf]
                  %359 = vst [vmem:[%s335 + $0x2c] sm:$0xf] %v358
                  %v360 = vld [vmem:[%s334 + $0x60] sm:$0xf]
                  %361 = vst [vmem:[%s335 + $0x30] sm:$0xf] %v360
                  %v362 = vld [vmem:[%s334 + $0x64] sm:$0xf]
                  %363 = vst [vmem:[%s335 + $0x34] sm:$0xf] %v362
                  %v364 = vld [vmem:[%s334 + $0x70] sm:$0xf]
                  %365 = vst [vmem:[%s335 + $0x38] sm:$0xf] %v364
                  %v366 = vld [vmem:[%s334 + $0x74] sm:$0xf]
                  %367 = vst [vmem:[%s335 + $0x3c] sm:$0xf] %v366
                  %v368 = vld [vmem:[%s334 + $0x80] sm:$0xf]
                  %369 = vst [vmem:[%s335 + $0x40] sm:$0xf] %v368
                  %v370 = vld [vmem:[%s334 + $0x84] sm:$0xf]
                  %371 = vst [vmem:[%s335 + $0x44] sm:$0xf] %v370
                  %v372 = vld [vmem:[%s334 + $0x90] sm:$0xf]
                  %373 = vst [vmem:[%s335 + $0x48] sm:$0xf] %v372
                  %v374 = vld [vmem:[%s334 + $0x94] sm:$0xf]
                  %375 = vst [vmem:[%s335 + $0x4c] sm:$0xf] %v374
                  %v376 = vld [vmem:[%s334 + $0xa0] sm:$0xf]
                  %377 = vst [vmem:[%s335 + $0x50] sm:$0xf] %v376
                  %v378 = vld [vmem:[%s334 + $0xa4] sm:$0xf]
                  %379 = vst [vmem:[%s335 + $0x54] sm:$0xf] %v378
                  %v380 = vld [vmem:[%s334 + $0xb0] sm:$0xf]
                  %381 = vst [vmem:[%s335 + $0x58] sm:$0xf] %v380
                  %v382 = vld [vmem:[%s334 + $0xb4] sm:$0xf]
                  %383 = vst [vmem:[%s335 + $0x5c] sm:$0xf] %v382
                  %v384 = vld [vmem:[%s334 + $0xc0] sm:$0xf]
                  %385 = vst [vmem:[%s335 + $0x60] sm:$0xf] %v384
                  %v386 = vld [vmem:[%s334 + $0xc4] sm:$0xf]
                  %387 = vst [vmem:[%s335 + $0x64] sm:$0xf] %v386
                  %v388 = vld [vmem:[%s334 + $0xd0] sm:$0xf]
                  %389 = vst [vmem:[%s335 + $0x68] sm:$0xf] %v388
                  %v390 = vld [vmem:[%s334 + $0xd4] sm:$0xf]
                  %391 = vst [vmem:[%s335 + $0x6c] sm:$0xf] %v390
                  %v392 = vld [vmem:[%s334 + $0xe0] sm:$0xf]
                  %393 = vst [vmem:[%s335 + $0x70] sm:$0xf] %v392
                  %v394 = vld [vmem:[%s334 + $0xe4] sm:$0xf]
                  %395 = vst [vmem:[%s335 + $0x74] sm:$0xf] %v394
                  %v396 = vld [vmem:[%s334 + $0xf0] sm:$0xf]
                  %397 = vst [vmem:[%s335 + $0x78] sm:$0xf] %v396
                  %v398 = vld [vmem:[%s334 + $0xf4] sm:$0xf]
                  %399 = vst [vmem:[%s335 + $0x7c] sm:$0xf] %v398
                $region79: #{dpcnn_forward.1} parent=66 // loop_footer
                  %s333 = sadd.s32 1, %s329
                $region80: #{dpcnn_forward.1} parent=66 // loop_footer_branch
                  %328 = sbr.rel target = $region76
                $region81: #{dpcnn_forward.1} parent=66 // loop_exit
                  _
              $region67: #{dpcnn_forward.1} parent=51 // pred_fallthru
                _
            $region52: #{dpcnn_forward.1} parent=47 // pred_fallthru
              _
            // Predicated region
            $region53: #{dpcnn_forward.1} parent=47 // pred_check
              _
            $region54: #{dpcnn_forward.1} parent=47 // pred_check_branch
              %243 = sbr.rel (0) target = $region56
            $region55: #{dpcnn_forward.1} parent=47 // pred_region
              loop: start=0, step=1, limit=1
              $region57: #{dpcnn_forward.1} parent=55 // loop_pre_header
                _
              $region58: #{dpcnn_forward.1} parent=55 // loop_header
                %s246 = sphi 0, %s250
                %p247 = scmp.ge.s32.totalorder %s246, 1
                %s251 = sphi %s237, %s237
                %s252 = sphi %s234, %s234
              $region59: #{dpcnn_forward.1} parent=55 // loop_header_branch
                %249 = sbr.rel (%p247) target = $region63
              $region60: #{dpcnn_forward.1} parent=55 // loop_body
                %v253 = vld [vmem:[%s251] sm:$0xf]
                %254 = vst [vmem:[%s252] sm:$0xf] %v253
                %v255 = vld [vmem:[%s251 + $0x4] sm:$0xf]
                %256 = vst [vmem:[%s252 + $0x4] sm:$0xf] %v255
                %v257 = vld [vmem:[%s251 + $0x10] sm:$0xf]
                %258 = vst [vmem:[%s252 + $0x8] sm:$0xf] %v257
                %v259 = vld [vmem:[%s251 + $0x14] sm:$0xf]
                %260 = vst [vmem:[%s252 + $0xc] sm:$0xf] %v259
                %v261 = vld [vmem:[%s251 + $0x20] sm:$0xf]
                %262 = vst [vmem:[%s252 + $0x10] sm:$0xf] %v261
                %v263 = vld [vmem:[%s251 + $0x24] sm:$0xf]
                %264 = vst [vmem:[%s252 + $0x14] sm:$0xf] %v263
                %v265 = vld [vmem:[%s251 + $0x30] sm:$0xf]
                %266 = vst [vmem:[%s252 + $0x18] sm:$0xf] %v265
                %v267 = vld [vmem:[%s251 + $0x34] sm:$0xf]
                %268 = vst [vmem:[%s252 + $0x1c] sm:$0xf] %v267
                %v269 = vld [vmem:[%s251 + $0x40] sm:$0xf]
                %270 = vst [vmem:[%s252 + $0x20] sm:$0xf] %v269
                %v271 = vld [vmem:[%s251 + $0x44] sm:$0xf]
                %272 = vst [vmem:[%s252 + $0x24] sm:$0xf] %v271
                %v273 = vld [vmem:[%s251 + $0x50] sm:$0xf]
                %274 = vst [vmem:[%s252 + $0x28] sm:$0xf] %v273
                %v275 = vld [vmem:[%s251 + $0x54] sm:$0xf]
                %276 = vst [vmem:[%s252 + $0x2c] sm:$0xf] %v275
                %v277 = vld [vmem:[%s251 + $0x60] sm:$0xf]
                %278 = vst [vmem:[%s252 + $0x30] sm:$0xf] %v277
                %v279 = vld [vmem:[%s251 + $0x64] sm:$0xf]
                %280 = vst [vmem:[%s252 + $0x34] sm:$0xf] %v279
                %v281 = vld [vmem:[%s251 + $0x70] sm:$0xf]
                %282 = vst [vmem:[%s252 + $0x38] sm:$0xf] %v281
                %v283 = vld [vmem:[%s251 + $0x74] sm:$0xf]
                %284 = vst [vmem:[%s252 + $0x3c] sm:$0xf] %v283
                %v285 = vld [vmem:[%s251 + $0x80] sm:$0xf]
                %286 = vst [vmem:[%s252 + $0x40] sm:$0xf] %v285
                %v287 = vld [vmem:[%s251 + $0x84] sm:$0xf]
                %288 = vst [vmem:[%s252 + $0x44] sm:$0xf] %v287
                %v289 = vld [vmem:[%s251 + $0x90] sm:$0xf]
                %290 = vst [vmem:[%s252 + $0x48] sm:$0xf] %v289
                %v291 = vld [vmem:[%s251 + $0x94] sm:$0xf]
                %292 = vst [vmem:[%s252 + $0x4c] sm:$0xf] %v291
                %v293 = vld [vmem:[%s251 + $0xa0] sm:$0xf]
                %294 = vst [vmem:[%s252 + $0x50] sm:$0xf] %v293
                %v295 = vld [vmem:[%s251 + $0xa4] sm:$0xf]
                %296 = vst [vmem:[%s252 + $0x54] sm:$0xf] %v295
                %v297 = vld [vmem:[%s251 + $0xb0] sm:$0xf]
                %298 = vst [vmem:[%s252 + $0x58] sm:$0xf] %v297
                %v299 = vld [vmem:[%s251 + $0xb4] sm:$0xf]
                %300 = vst [vmem:[%s252 + $0x5c] sm:$0xf] %v299
                %v301 = vld [vmem:[%s251 + $0xc0] sm:$0xf]
                %302 = vst [vmem:[%s252 + $0x60] sm:$0xf] %v301
                %v303 = vld [vmem:[%s251 + $0xc4] sm:$0xf]
                %304 = vst [vmem:[%s252 + $0x64] sm:$0xf] %v303
                %v305 = vld [vmem:[%s251 + $0xd0] sm:$0xf]
                %306 = vst [vmem:[%s252 + $0x68] sm:$0xf] %v305
                %v307 = vld [vmem:[%s251 + $0xd4] sm:$0xf]
                %308 = vst [vmem:[%s252 + $0x6c] sm:$0xf] %v307
                %v309 = vld [vmem:[%s251 + $0xe0] sm:$0xf]
                %310 = vst [vmem:[%s252 + $0x70] sm:$0xf] %v309
                %v311 = vld [vmem:[%s251 + $0xe4] sm:$0xf]
                %312 = vst [vmem:[%s252 + $0x74] sm:$0xf] %v311
                %v313 = vld [vmem:[%s251 + $0xf0] sm:$0xf]
                %314 = vst [vmem:[%s252 + $0x78] sm:$0xf] %v313
                %v315 = vld [vmem:[%s251 + $0xf4] sm:$0xf]
                %316 = vst [vmem:[%s252 + $0x7c] sm:$0xf] %v315
              $region61: #{dpcnn_forward.1} parent=55 // loop_footer
                %s250 = sadd.s32 1, %s246
              $region62: #{dpcnn_forward.1} parent=55 // loop_footer_branch
                %245 = sbr.rel target = $region58
              $region63: #{dpcnn_forward.1} parent=55 // loop_exit
                _
            $region56: #{dpcnn_forward.1} parent=47 // pred_fallthru
              _
          $region48: #{dpcnn_forward.1} parent=43 // pred_fallthru
            _
          %400 = vnop
        $region44: #{dpcnn_forward.1} parent=39 // pred_fallthru
          _
      $region40: #{dpcnn_forward.1} parent=5 // pred_fallthru
        _
      %p401 = scmp.le.s32.totalorder 1, %s13
      %p402 = scmp.lt.s32.totalorder %s13, 3
      %p403 = pnand %p401, %p402
      %p404 = pneg %p403
      // Predicated region
      $region82: #{dpcnn_forward.1} parent=5 // pred_check
        _
      $region83: #{dpcnn_forward.1} parent=5 // pred_check_branch
        %406 = sbr.rel (%p403) target = $region85
      $region84: #{dpcnn_forward.1} parent=5 // pred_region
        %s407 = ssub.s32 %s13, 1
        %s408 = sand.u32 %s26, 1
        %s409 = sand.u32 %s26, 1
        %s410 = smul.addr %s409, 128
        %s411 = scalar_lea.vmem [#allocation2], %s410
        // Predicated region
        $region86: #{dpcnn_forward.1} parent=84 // pred_check
          %p412 = pneg %p39
        $region87: #{dpcnn_forward.1} parent=84 // pred_check_branch
          %414 = sbr.rel (%p412) target = $region89
        $region88: #{dpcnn_forward.1} parent=84 // pred_region
          _
        $region89: #{dpcnn_forward.1} parent=84 // pred_fallthru
          _
        %s415 = sand.u32 %s26, 1
        %s416 = sand.u32 %s26, 1
        %s417 = smul.addr %s416, 128
        %s418 = scalar_lea.vmem [#allocation2], %s417
        %p419 = pneg %p39
        %p420 = pneg %p36
        %p421 = pneg %p60
        %p422 = pneg %p57
        %p423 = pneg %p81
        %p424 = pneg %p78
        %p425 = pneg %p102
        %p426 = pneg %p99
        %p427 = pneg %p123
        %p428 = pneg %p120
        %p429 = pneg %p144
        %p430 = pneg %p141
        %p431 = pneg %p165
        %p432 = pneg %p162
        %p433 = pneg %p191
        %p434 = pneg %p188
        %s435 = smul.u32 2, %s18
        %p436 = scmp.lt.s32.totalorder %s435, 3
        %s437 = scalar_select %p436, %s435, 3
        %s438 = smul.addr %s437, 8
        %s439 = scalar_lea.vmem %s7, %s438
        %s440 = smul.u32 2, %s18
        %s441 = smul.u32 2, %s18
        %p442 = scmp.lt.s32.totalorder %s441, 3
        %s443 = scalar_select %p442, %s441, 3
        %s444 = smul.addr %s443, 8
        %s445 = scalar_lea.vmem %s7, %s444
        %s446 = smul.u32 2, %s18
        %v448 = vld [vmem:[%s1] sm:$0xf]
        %v449 = vld [vmem:[%s1 + $0x4] sm:$0xf]
        %v450 = vld [vmem:[%s1 + $0x8] sm:$0xf]
        %v451 = vld [vmem:[%s1 + $0xc] sm:$0xf]
        %v452 = vld [vmem:[%s1 + $0x10] sm:$0xf]
        %v453 = vld [vmem:[%s1 + $0x14] sm:$0xf]
        %v454 = vld [vmem:[%s1 + $0x18] sm:$0xf]
        %v455 = vld [vmem:[%s1 + $0x1c] sm:$0xf]
        %v456 = vld [vmem:[%s1 + $0x20] sm:$0xf]
        %v457 = vld [vmem:[%s1 + $0x24] sm:$0xf]
        %v458 = vld [vmem:[%s1 + $0x28] sm:$0xf]
        %v459 = vld [vmem:[%s1 + $0x2c] sm:$0xf]
        %v460 = vld [vmem:[%s1 + $0x30] sm:$0xf]
        %v461 = vld [vmem:[%s1 + $0x34] sm:$0xf]
        %v462 = vld [vmem:[%s1 + $0x38] sm:$0xf]
        %v463 = vld [vmem:[%s1 + $0x3c] sm:$0xf]
        %v464 = vld [vmem:[%s1 + $0x40] sm:$0xf]
        %v465 = vld [vmem:[%s1 + $0x44] sm:$0xf]
        %v466 = vld [vmem:[%s1 + $0x48] sm:$0xf]
        %v467 = vld [vmem:[%s1 + $0x4c] sm:$0xf]
        %v468 = vld [vmem:[%s1 + $0x50] sm:$0xf]
        %v469 = vld [vmem:[%s1 + $0x54] sm:$0xf]
        %v470 = vld [vmem:[%s1 + $0x58] sm:$0xf]
        %v471 = vld [vmem:[%s1 + $0x5c] sm:$0xf]
        %v472 = vld [vmem:[%s1 + $0x60] sm:$0xf]
        %v473 = vld [vmem:[%s1 + $0x64] sm:$0xf]
        %v474 = vld [vmem:[%s1 + $0x68] sm:$0xf]
        %v475 = vld [vmem:[%s1 + $0x6c] sm:$0xf]
        %v476 = vld [vmem:[%s1 + $0x70] sm:$0xf]
        %v477 = vld [vmem:[%s1 + $0x74] sm:$0xf]
        %v478 = vld [vmem:[%s1 + $0x78] sm:$0xf]
        %v479 = vld [vmem:[%s1 + $0x7c] sm:$0xf]
        %v480 = vld [vmem:[%s1 + $0x80] sm:$0xf]
        %v481 = vld [vmem:[%s1 + $0x84] sm:$0xf]
        %v482 = vld [vmem:[%s1 + $0x88] sm:$0xf]
        %v483 = vld [vmem:[%s1 + $0x8c] sm:$0xf]
        %v484 = vld [vmem:[%s1 + $0x90] sm:$0xf]
        %v485 = vld [vmem:[%s1 + $0x94] sm:$0xf]
        %v486 = vld [vmem:[%s1 + $0x98] sm:$0xf]
        %v487 = vld [vmem:[%s1 + $0x9c] sm:$0xf]
        %v488 = vld [vmem:[%s1 + $0xa0] sm:$0xf]
        %v489 = vld [vmem:[%s1 + $0xa4] sm:$0xf]
        %v490 = vld [vmem:[%s1 + $0xa8] sm:$0xf]
        %v491 = vld [vmem:[%s1 + $0xac] sm:$0xf]
        %v492 = vld [vmem:[%s1 + $0xb0] sm:$0xf]
        %v493 = vld [vmem:[%s1 + $0xb4] sm:$0xf]
        %v494 = vld [vmem:[%s1 + $0xb8] sm:$0xf]
        %v495 = vld [vmem:[%s1 + $0xbc] sm:$0xf]
        %v496 = vld [vmem:[%s2] sm:$0x1]
        %v497 = vld [vmem:[%s3] sm:$0xf]
        %v498 = vld [vmem:[%s3 + $0x4] sm:$0xf]
        %v499 = vld [vmem:[%s3 + $0x8] sm:$0xf]
        %v500 = vld [vmem:[%s3 + $0xc] sm:$0xf]
        %v501 = vld [vmem:[%s3 + $0x10] sm:$0xf]
        %v502 = vld [vmem:[%s3 + $0x14] sm:$0xf]
        %v503 = vld [vmem:[%s3 + $0x18] sm:$0xf]
        %v504 = vld [vmem:[%s3 + $0x1c] sm:$0xf]
        %v505 = vld [vmem:[%s3 + $0x20] sm:$0xf]
        %v506 = vld [vmem:[%s3 + $0x24] sm:$0xf]
        %v507 = vld [vmem:[%s3 + $0x28] sm:$0xf]
        %v508 = vld [vmem:[%s3 + $0x2c] sm:$0xf]
        %v509 = vld [vmem:[%s3 + $0x30] sm:$0xf]
        %v510 = vld [vmem:[%s3 + $0x34] sm:$0xf]
        %v511 = vld [vmem:[%s3 + $0x38] sm:$0xf]
        %v512 = vld [vmem:[%s3 + $0x3c] sm:$0xf]
        %v513 = vld [vmem:[%s3 + $0x40] sm:$0xf]
        %v514 = vld [vmem:[%s3 + $0x44] sm:$0xf]
        %v515 = vld [vmem:[%s3 + $0x48] sm:$0xf]
        %v516 = vld [vmem:[%s3 + $0x4c] sm:$0xf]
        %v517 = vld [vmem:[%s3 + $0x50] sm:$0xf]
        %v518 = vld [vmem:[%s3 + $0x54] sm:$0xf]
        %v519 = vld [vmem:[%s3 + $0x58] sm:$0xf]
        %v520 = vld [vmem:[%s3 + $0x5c] sm:$0xf]
        %v521 = vld [vmem:[%s3 + $0x60] sm:$0xf]
        %v522 = vld [vmem:[%s3 + $0x64] sm:$0xf]
        %v523 = vld [vmem:[%s3 + $0x68] sm:$0xf]
        %v524 = vld [vmem:[%s3 + $0x6c] sm:$0xf]
        %v525 = vld [vmem:[%s3 + $0x70] sm:$0xf]
        %v526 = vld [vmem:[%s3 + $0x74] sm:$0xf]
        %v527 = vld [vmem:[%s3 + $0x78] sm:$0xf]
        %v528 = vld [vmem:[%s3 + $0x7c] sm:$0xf]
        %v529 = vld [vmem:[%s3 + $0x80] sm:$0xf]
        %v530 = vld [vmem:[%s3 + $0x84] sm:$0xf]
        %v531 = vld [vmem:[%s3 + $0x88] sm:$0xf]
        %v532 = vld [vmem:[%s3 + $0x8c] sm:$0xf]
        %v533 = vld [vmem:[%s3 + $0x90] sm:$0xf]
        %v534 = vld [vmem:[%s3 + $0x94] sm:$0xf]
        %v535 = vld [vmem:[%s3 + $0x98] sm:$0xf]
        %v536 = vld [vmem:[%s3 + $0x9c] sm:$0xf]
        %v537 = vld [vmem:[%s3 + $0xa0] sm:$0xf]
        %v538 = vld [vmem:[%s3 + $0xa4] sm:$0xf]
        %v539 = vld [vmem:[%s3 + $0xa8] sm:$0xf]
        %v540 = vld [vmem:[%s3 + $0xac] sm:$0xf]
        %v541 = vld [vmem:[%s3 + $0xb0] sm:$0xf]
        %v542 = vld [vmem:[%s3 + $0xb4] sm:$0xf]
        %v543 = vld [vmem:[%s3 + $0xb8] sm:$0xf]
        %v544 = vld [vmem:[%s3 + $0xbc] sm:$0xf]
        %v545 = vld [vmem:[%s4] sm:$0x1]
        %v546 = vld [vmem:[%s5] sm:$0xf]
        %v547 = vld [vmem:[%s5 + $0x4] sm:$0xf]
        %v548 = vld [vmem:[%s5 + $0x8] sm:$0xf]
        %v549 = vld [vmem:[%s5 + $0xc] sm:$0xf]
        %v550 = vld [vmem:[%s5 + $0x10] sm:$0xf]
        %v551 = vld [vmem:[%s5 + $0x14] sm:$0xf]
        %v552 = vld [vmem:[%s5 + $0x18] sm:$0xf]
        %v553 = vld [vmem:[%s5 + $0x1c] sm:$0xf]
        %v554 = vld [vmem:[%s5 + $0x20] sm:$0xf]
        %v555 = vld [vmem:[%s5 + $0x24] sm:$0xf]
        %v556 = vld [vmem:[%s5 + $0x28] sm:$0xf]
        %v557 = vld [vmem:[%s5 + $0x2c] sm:$0xf]
        %v558 = vld [vmem:[%s5 + $0x30] sm:$0xf]
        %v559 = vld [vmem:[%s5 + $0x34] sm:$0xf]
        %v560 = vld [vmem:[%s5 + $0x38] sm:$0xf]
        %v561 = vld [vmem:[%s5 + $0x3c] sm:$0xf]
        %v562 = vld [vmem:[%s6] sm:$0x1]
        %v563 = vld [vmem:[%s411] sm:$0xf]
        %v564 = vld [vmem:[%s411 + $0x4] sm:$0xf]
        %v565 = vld [vmem:[%s411 + $0x8] sm:$0xf]
        %v566 = vld [vmem:[%s411 + $0xc] sm:$0xf]
        %v567 = vld [vmem:[%s411 + $0x10] sm:$0xf]
        %v568 = vld [vmem:[%s411 + $0x14] sm:$0xf]
        %v569 = vld [vmem:[%s411 + $0x18] sm:$0xf]
        %v570 = vld [vmem:[%s411 + $0x1c] sm:$0xf]
        %v571 = vld [vmem:[%s411 + $0x20] sm:$0xf]
        %v572 = vld [vmem:[%s411 + $0x24] sm:$0xf]
        %v573 = vld [vmem:[%s411 + $0x28] sm:$0xf]
        %v574 = vld [vmem:[%s411 + $0x2c] sm:$0xf]
        %v575 = vld [vmem:[%s411 + $0x30] sm:$0xf]
        %v576 = vld [vmem:[%s411 + $0x34] sm:$0xf]
        %v577 = vld [vmem:[%s411 + $0x38] sm:$0xf]
        %v578 = vld [vmem:[%s411 + $0x3c] sm:$0xf]
        %v579 = vld [vmem:[%s411 + $0x40] sm:$0xf]
        %v580 = vld [vmem:[%s411 + $0x44] sm:$0xf]
        %v581 = vld [vmem:[%s411 + $0x48] sm:$0xf]
        %v582 = vld [vmem:[%s411 + $0x4c] sm:$0xf]
        %v583 = vld [vmem:[%s411 + $0x50] sm:$0xf]
        %v584 = vld [vmem:[%s411 + $0x54] sm:$0xf]
        %v585 = vld [vmem:[%s411 + $0x58] sm:$0xf]
        %v586 = vld [vmem:[%s411 + $0x5c] sm:$0xf]
        %v587 = vld [vmem:[%s411 + $0x60] sm:$0xf]
        %v588 = vld [vmem:[%s411 + $0x64] sm:$0xf]
        %v589 = vld [vmem:[%s411 + $0x68] sm:$0xf]
        %v590 = vld [vmem:[%s411 + $0x6c] sm:$0xf]
        %v591 = vld [vmem:[%s411 + $0x70] sm:$0xf]
        %v592 = vld [vmem:[%s411 + $0x74] sm:$0xf]
        %v593 = vld [vmem:[%s411 + $0x78] sm:$0xf]
        %v594 = vld [vmem:[%s411 + $0x7c] sm:$0xf]
        %v623 = vunpack.c.l.b16 %v563
        %v624 = vunpack.c.l.b16 %v564
        %v625 = vunpack.c.l.b16 %v565
        %v626 = vunpack.c.l.b16 %v566
        %v627 = vunpack.c.l.b16 %v567
        %v628 = vunpack.c.l.b16 %v568
        %v629 = vunpack.c.l.b16 %v569
        %v630 = vunpack.c.l.b16 %v570
        %v631 = vunpack.c.l.b16 %v571
        %v632 = vunpack.c.l.b16 %v572
        %v633 = vunpack.c.l.b16 %v573
        %v634 = vunpack.c.l.b16 %v574
        %v635 = vunpack.c.l.b16 %v575
        %v636 = vunpack.c.l.b16 %v576
        %v637 = vunpack.c.l.b16 %v577
        %v638 = vunpack.c.l.b16 %v578
        %v639 = vunpack.c.l.b16 %v579
        %v640 = vunpack.c.l.b16 %v580
        %v641 = vunpack.c.l.b16 %v581
        %v642 = vunpack.c.l.b16 %v582
        %v643 = vunpack.c.l.b16 %v583
        %v644 = vunpack.c.l.b16 %v584
        %v645 = vunpack.c.l.b16 %v585
        %v646 = vunpack.c.l.b16 %v586
        %v647 = vunpack.c.l.b16 %v587
        %v648 = vunpack.c.l.b16 %v588
        %v649 = vunpack.c.l.b16 %v589
        %v650 = vunpack.c.l.b16 %v590
        %v651 = vpack.c.b16 %v624, %v623
        %v652 = vpack.c.b16 %v626, %v625
        %v653 = vpack.c.b16 %v628, %v627
        %v654 = vpack.c.b16 %v630, %v629
        %v655 = vpack.c.b16 %v632, %v631
        %v656 = vpack.c.b16 %v634, %v633
        %v657 = vpack.c.b16 %v636, %v635
        %v658 = vpack.c.b16 %v638, %v637
        %v659 = vpack.c.b16 %v640, %v639
        %v660 = vpack.c.b16 %v642, %v641
        %v661 = vpack.c.b16 %v644, %v643
        %v662 = vpack.c.b16 %v646, %v645
        %v663 = vpack.c.b16 %v648, %v647
        %v664 = vpack.c.b16 %v650, %v649
        %v681 = vunpack.c.l.b16 %v591
        %v682 = vunpack.c.l.b16 %v592
        %v683 = vpack.c.b16 %v682, %v681
        %v687 = vunpack.c.l.b16 %v593
        %v688 = vunpack.c.l.b16 %v594
        %v689 = vpack.c.b16 %v688, %v687
        %v692 = vlaneseq
        %v693 = vshrl.u32 %v692, 7
        %v694 = vsub.s32 0, %v693
        %v695 = vrot.slane %v496, %v694
        %v745 = vunpack.c.l.b16 %v448
        %v746 = vunpack.c.l.b16 %v449
        %v747 = vunpack.c.l.b16 %v450
        %v748 = vunpack.c.l.b16 %v451
        %v749 = vunpack.c.l.b16 %v452
        %v750 = vunpack.c.l.b16 %v453
        %v751 = vunpack.c.l.b16 %v454
        %v752 = vunpack.c.l.b16 %v455
        %v753 = vunpack.c.l.b16 %v456
        %v754 = vunpack.c.l.b16 %v457
        %v755 = vunpack.c.l.b16 %v458
        %v756 = vunpack.c.l.b16 %v459
        %v757 = vunpack.c.l.b16 %v460
        %v758 = vunpack.c.l.b16 %v461
        %v759 = vunpack.c.l.b16 %v462
        %v760 = vunpack.c.l.b16 %v463
        %v761 = vunpack.c.l.b16 %v464
        %v762 = vunpack.c.l.b16 %v465
        %v763 = vunpack.c.l.b16 %v466
        %v764 = vunpack.c.l.b16 %v467
        %v765 = vunpack.c.l.b16 %v468
        %v766 = vunpack.c.l.b16 %v469
        %v767 = vunpack.c.l.b16 %v470
        %v768 = vunpack.c.l.b16 %v471
        %v769 = vunpack.c.l.b16 %v472
        %v770 = vunpack.c.l.b16 %v473
        %v771 = vunpack.c.l.b16 %v474
        %v772 = vunpack.c.l.b16 %v475
        %v773 = vunpack.c.l.b16 %v476
        %v774 = vunpack.c.l.b16 %v477
        %v775 = vunpack.c.l.b16 %v478
        %v776 = vunpack.c.l.b16 %v479
        %v777 = vunpack.c.l.b16 %v480
        %v778 = vunpack.c.l.b16 %v481
        %v779 = vunpack.c.l.b16 %v482
        %v780 = vunpack.c.l.b16 %v483
        %v781 = vunpack.c.l.b16 %v484
        %v782 = vunpack.c.l.b16 %v485
        %v783 = vunpack.c.l.b16 %v486
        %v784 = vunpack.c.l.b16 %v487
        %v785 = vunpack.c.l.b16 %v488
        %v786 = vunpack.c.l.b16 %v489
        %v787 = vunpack.c.l.b16 %v490
        %v788 = vunpack.c.l.b16 %v491
        %v789 = vunpack.c.l.b16 %v492
        %v790 = vunpack.c.l.b16 %v493
        %v791 = vunpack.c.l.b16 %v494
        %v792 = vunpack.c.l.b16 %v495
        %v793 = vpack.c.b16 %v746, %v745
        %v794 = vpack.c.b16 %v748, %v747
        %v795 = vpack.c.b16 %v750, %v749
        %v796 = vpack.c.b16 %v752, %v751
        %v797 = vpack.c.b16 %v754, %v753
        %v798 = vpack.c.b16 %v756, %v755
        %v799 = vpack.c.b16 %v758, %v757
        %v800 = vpack.c.b16 %v760, %v759
        %v801 = vpack.c.b16 %v762, %v761
        %v802 = vpack.c.b16 %v764, %v763
        %v803 = vpack.c.b16 %v766, %v765
        %v804 = vpack.c.b16 %v768, %v767
        %v805 = vpack.c.b16 %v770, %v769
        %v806 = vpack.c.b16 %v772, %v771
        %v807 = vpack.c.b16 %v774, %v773
        %v808 = vpack.c.b16 %v776, %v775
        %v809 = vpack.c.b16 %v778, %v777
        %v810 = vpack.c.b16 %v780, %v779
        %v811 = vpack.c.b16 %v782, %v781
        %v812 = vpack.c.b16 %v784, %v783
        %v813 = vpack.c.b16 %v786, %v785
        %v814 = vpack.c.b16 %v788, %v787
        %v815 = vpack.c.b16 %v790, %v789
        %v816 = vpack.c.b16 %v792, %v791
        %841 = vmatprep.subr.bf16.mxu0 0
        %842 = vmatpush1.bf16.msra.mxu0 %v793
        %843 = vmatprep.subr.bf16.mxu0 0
        %844 = vmatpush1.bf16.msra.mxu0 %v794
        %845 = vmatprep.subr.bf16.mxu0 0
        %846 = vmatpush1.bf16.msra.mxu0 %v795
        %847 = vmatprep.subr.bf16.mxu0 0
        %848 = vmatpush1.bf16.msra.mxu0 %v796
        %849 = vmatprep.subr.bf16.mxu0 0
        %850 = vmatpush1.bf16.msra.mxu0 %v797
        %851 = vmatprep.subr.bf16.mxu0 0
        %852 = vmatpush1.bf16.msra.mxu0 %v798
        %853 = vmatprep.subr.bf16.mxu0 0
        %854 = vmatpush1.bf16.msra.mxu0 %v799
        %855 = vmatprep.subr.bf16.mxu0 0
        %856 = vmatpush1.bf16.msra.mxu0 %v800
        %857 = vmatprep.subr.bf16.mxu0 0
        %858 = vmatpush1.bf16.msra.mxu0 %v801
        %859 = vmatprep.subr.bf16.mxu0 0
        %860 = vmatpush1.bf16.msra.mxu0 %v802
        %861 = vmatprep.subr.bf16.mxu0 0
        %862 = vmatpush1.bf16.msra.mxu0 %v803
        %863 = vmatprep.subr.bf16.mxu0 0
        %864 = vmatpush1.bf16.msra.mxu0 %v804
        %865 = vmatprep.subr.bf16.mxu0 0
        %866 = vmatpush1.bf16.msra.mxu0 %v805
        %867 = vmatprep.subr.bf16.mxu0 0
        %868 = vmatpush1.bf16.msra.mxu0 %v806
        %869 = vmatprep.subr.bf16.mxu0 0
        %870 = vmatpush1.bf16.msra.mxu0 %v807
        %871 = vmatprep.subr.bf16.mxu0 0
        %872 = vmatpush1.bf16.msra.mxu0 %v808
        %873 = vmatprep.mubr.bf16.mxu0 %v652
        %874 = vmatmul.mubr.bf16.gmra.mrb[0].mxu0 %v651
        %v875 = vpop.f32.mrb[0].mxu0
        %v876 = vadd.f32 %v695, %v875
        %v877 = vpop.f32.mrb[0].mxu0
        %v878 = vpop.f32.mrb[0].mxu0
        %v879 = vadd.f32 %v695, %v878
        %v880 = vpop.f32.mrb[0].mxu0
        %881 = vmatprep.mubr.bf16.mxu0 %v653
        %882 = vmatmul.mubr.bf16.gmra.mrb[0].mxu0 %v652
        %v883 = vpop.f32.mrb[0].mxu0
        %v884 = vadd.f32 %v695, %v883
        %v885 = vpop.f32.mrb[0].mxu0
        %v886 = vpop.f32.mrb[0].mxu0
        %v887 = vadd.f32 %v695, %v886
        %v888 = vpop.f32.mrb[0].mxu0
        %889 = vmatprep.mubr.bf16.mxu0 %v654
        %890 = vmatmul.mubr.bf16.gmra.mrb[0].mxu0 %v653
        %v891 = vpop.f32.mrb[0].mxu0
        %v892 = vadd.f32 %v695, %v891
        %v893 = vpop.f32.mrb[0].mxu0
        %v894 = vpop.f32.mrb[0].mxu0
        %v895 = vadd.f32 %v695, %v894
        %v896 = vpop.f32.mrb[0].mxu0
        %897 = vmatprep.mubr.bf16.mxu0 %v655
        %898 = vmatmul.mubr.bf16.gmra.mrb[0].mxu0 %v654
        %v899 = vpop.f32.mrb[0].mxu0
        %v900 = vadd.f32 %v695, %v899
        %v901 = vpop.f32.mrb[0].mxu0
        %v902 = vpop.f32.mrb[0].mxu0
        %v903 = vadd.f32 %v695, %v902
        %v904 = vpop.f32.mrb[0].mxu0
        %905 = vmatprep.mubr.bf16.mxu0 %v656
        %906 = vmatmul.mubr.bf16.gmra.mrb[0].mxu0 %v655
        %v907 = vpop.f32.mrb[0].mxu0
        %v908 = vadd.f32 %v695, %v907
        %v909 = vpop.f32.mrb[0].mxu0
        %v910 = vpop.f32.mrb[0].mxu0
        %v911 = vadd.f32 %v695, %v910
        %v912 = vpop.f32.mrb[0].mxu0
        %913 = vmatprep.mubr.bf16.mxu0 %v657
        %914 = vmatmul.mubr.bf16.gmra.mrb[0].mxu0 %v656
        %v915 = vpop.f32.mrb[0].mxu0
        %v916 = vadd.f32 %v695, %v915
        %v917 = vpop.f32.mrb[0].mxu0
        %v918 = vpop.f32.mrb[0].mxu0
        %v919 = vadd.f32 %v695, %v918
        %v920 = vpop.f32.mrb[0].mxu0
        %921 = vmatprep.mubr.bf16.mxu0 %v658
        %922 = vmatmul.mubr.bf16.gmra.mrb[0].mxu0 %v657
        %v923 = vpop.f32.mrb[0].mxu0
        %v924 = vadd.f32 %v695, %v923
        %v925 = vpop.f32.mrb[0].mxu0
        %v926 = vpop.f32.mrb[0].mxu0
        %v927 = vadd.f32 %v695, %v926
        %v928 = vpop.f32.mrb[0].mxu0
        %929 = vmatprep.mubr.bf16.mxu0 %v659
        %930 = vmatmul.mubr.bf16.gmra.mrb[0].mxu0 %v658
        %v931 = vpop.f32.mrb[0].mxu0
        %v932 = vadd.f32 %v695, %v931
        %v933 = vpop.f32.mrb[0].mxu0
        %v934 = vpop.f32.mrb[0].mxu0
        %v935 = vadd.f32 %v695, %v934
        %v936 = vpop.f32.mrb[0].mxu0
        %937 = vmatprep.mubr.bf16.mxu0 %v660
        %938 = vmatmul.mubr.bf16.gmra.mrb[0].mxu0 %v659
        %v939 = vpop.f32.mrb[0].mxu0
        %v940 = vadd.f32 %v695, %v939
        %v941 = vpop.f32.mrb[0].mxu0
        %v942 = vpop.f32.mrb[0].mxu0
        %v943 = vadd.f32 %v695, %v942
        %v944 = vpop.f32.mrb[0].mxu0
        %945 = vmatprep.mubr.bf16.mxu0 %v661
        %946 = vmatmul.mubr.bf16.gmra.mrb[0].mxu0 %v660
        %v947 = vpop.f32.mrb[0].mxu0
        %v948 = vadd.f32 %v695, %v947
        %v949 = vpop.f32.mrb[0].mxu0
        %v950 = vpop.f32.mrb[0].mxu0
        %v951 = vadd.f32 %v695, %v950
        %v952 = vpop.f32.mrb[0].mxu0
        %953 = vmatprep.mubr.bf16.mxu0 %v662
        %954 = vmatmul.mubr.bf16.gmra.mrb[0].mxu0 %v661
        %v955 = vpop.f32.mrb[0].mxu0
        %v956 = vadd.f32 %v695, %v955
        %v957 = vpop.f32.mrb[0].mxu0
        %v958 = vpop.f32.mrb[0].mxu0
        %v959 = vadd.f32 %v695, %v958
        %v960 = vpop.f32.mrb[0].mxu0
        %961 = vmatprep.mubr.bf16.mxu0 %v663
        %962 = vmatmul.mubr.bf16.gmra.mrb[0].mxu0 %v662
        %v963 = vpop.f32.mrb[0].mxu0
        %v964 = vadd.f32 %v695, %v963
        %v965 = vpop.f32.mrb[0].mxu0
        %v966 = vpop.f32.mrb[0].mxu0
        %v967 = vadd.f32 %v695, %v966
        %v968 = vpop.f32.mrb[0].mxu0
        %969 = vmatprep.mubr.bf16.mxu0 %v664
        %970 = vmatmul.mubr.bf16.gmra.mrb[0].mxu0 %v663
        %v971 = vpop.f32.mrb[0].mxu0
        %v972 = vadd.f32 %v695, %v971
        %v973 = vpop.f32.mrb[0].mxu0
        %v974 = vpop.f32.mrb[0].mxu0
        %v975 = vadd.f32 %v695, %v974
        %v976 = vpop.f32.mrb[0].mxu0
        %977 = vmatprep.mubr.bf16.mxu0 %v683
        %978 = vmatmul.mubr.bf16.gmra.mrb[0].mxu0 %v664
        %v979 = vpop.f32.mrb[0].mxu0
        %v980 = vadd.f32 %v695, %v979
        %v981 = vpop.f32.mrb[0].mxu0
        %v982 = vpop.f32.mrb[0].mxu0
        %v983 = vadd.f32 %v695, %v982
        %v984 = vpop.f32.mrb[0].mxu0
        %985 = vdwg.mxu0
        %986 = vmatprep.subr.bf16.mxu0 0
        %987 = vmatpush1.bf16.msra.mxu0 %v809
        %988 = vmatprep.subr.bf16.mxu0 0
        %989 = vmatpush1.bf16.msra.mxu0 %v810
        %990 = vmatprep.subr.bf16.mxu0 0
        %991 = vmatpush1.bf16.msra.mxu0 %v811
        %992 = vmatprep.subr.bf16.mxu0 0
        %993 = vmatpush1.bf16.msra.mxu0 %v812
        %994 = vmatprep.subr.bf16.mxu0 0
        %995 = vmatpush1.bf16.msra.mxu0 %v813
        %996 = vmatprep.subr.bf16.mxu0 0
        %997 = vmatpush1.bf16.msra.mxu0 %v814
        %998 = vmatprep.subr.bf16.mxu0 0
        %999 = vmatpush1.bf16.msra.mxu0 %v815
        %1000 = vmatprep.subr.bf16.mxu0 0
        %1001 = vmatpush1.bf16.msra.mxu0 %v816
        %1002 = vmatprep.subr.bf16.mxu0 0
        %1003 = vmatpush1.bf16.msra.mxu0 0
        %1004 = vmatprep.subr.bf16.mxu0 0
        %1005 = vmatpush1.bf16.msra.mxu0 0
        %1006 = vmatprep.subr.bf16.mxu0 0
        %1007 = vmatpush1.bf16.msra.mxu0 0
        %1008 = vmatprep.subr.bf16.mxu0 0
        %1009 = vmatpush1.bf16.msra.mxu0 0
        %1010 = vmatprep.subr.bf16.mxu0 0
        %1011 = vmatpush1.bf16.msra.mxu0 0
        %1012 = vmatprep.subr.bf16.mxu0 0
        %1013 = vmatpush1.bf16.msra.mxu0 0
        %1014 = vmatprep.subr.bf16.mxu0 0
        %1015 = vmatpush1.bf16.msra.mxu0 0
        %1016 = vmatprep.subr.bf16.mxu0 0
        %1017 = vmatpush1.bf16.msra.mxu0 0
        %1018 = vmatprep.mubr.bf16.mxu0 0
        %1019 = vmatmul.mubr.bf16.gmra.mrb[0].mxu0 %v653
        %v1020 = vpop.f32.mrb[0].mxu0
        %v1021 = vadd.f32 %v876, %v1020
        %v1022 = vpop.f32.mrb[0].mxu0
        %v1023 = vpop.f32.mrb[0].mxu0
        %v1024 = vadd.f32 %v879, %v1023
        %v1025 = vpop.f32.mrb[0].mxu0
        %1026 = vmatprep.mubr.bf16.mxu0 0
        %1027 = vmatmul.mubr.bf16.gmra.mrb[0].mxu0 %v654
        %v1028 = vpop.f32.mrb[0].mxu0
        %v1029 = vadd.f32 %v884, %v1028
        %v1030 = vpop.f32.mrb[0].mxu0
        %v1031 = vpop.f32.mrb[0].mxu0
        %v1032 = vadd.f32 %v887, %v1031
        %v1033 = vpop.f32.mrb[0].mxu0
        %1034 = vmatprep.mubr.bf16.mxu0 0
        %1035 = vmatmul.mubr.bf16.gmra.mrb[0].mxu0 %v655
        %v1036 = vpop.f32.mrb[0].mxu0
        %v1037 = vadd.f32 %v892, %v1036
        %v1038 = vpop.f32.mrb[0].mxu0
        %v1039 = vpop.f32.mrb[0].mxu0
        %v1040 = vadd.f32 %v895, %v1039
        %v1041 = vpop.f32.mrb[0].mxu0
        %1042 = vmatprep.mubr.bf16.mxu0 0
        %1043 = vmatmul.mubr.bf16.gmra.mrb[0].mxu0 %v656
        %v1044 = vpop.f32.mrb[0].mxu0
        %v1045 = vadd.f32 %v900, %v1044
        %v1046 = vpop.f32.mrb[0].mxu0
        %v1047 = vpop.f32.mrb[0].mxu0
        %v1048 = vadd.f32 %v903, %v1047
        %v1049 = vpop.f32.mrb[0].mxu0
        %1050 = vmatprep.mubr.bf16.mxu0 0
        %1051 = vmatmul.mubr.bf16.gmra.mrb[0].mxu0 %v657
        %v1052 = vpop.f32.mrb[0].mxu0
        %v1053 = vadd.f32 %v908, %v1052
        %v1054 = vpop.f32.mrb[0].mxu0
        %v1055 = vpop.f32.mrb[0].mxu0
        %v1056 = vadd.f32 %v911, %v1055
        %v1057 = vpop.f32.mrb[0].mxu0
        %1058 = vmatprep.mubr.bf16.mxu0 0
        %1059 = vmatmul.mubr.bf16.gmra.mrb[0].mxu0 %v658
        %v1060 = vpop.f32.mrb[0].mxu0
        %v1061 = vadd.f32 %v916, %v1060
        %v1062 = vpop.f32.mrb[0].mxu0
        %v1063 = vpop.f32.mrb[0].mxu0
        %v1064 = vadd.f32 %v919, %v1063
        %v1065 = vpop.f32.mrb[0].mxu0
        %1066 = vmatprep.mubr.bf16.mxu0 0
        %1067 = vmatmul.mubr.bf16.gmra.mrb[0].mxu0 %v659
        %v1068 = vpop.f32.mrb[0].mxu0
        %v1069 = vadd.f32 %v924, %v1068
        %v1070 = vpop.f32.mrb[0].mxu0
        %v1071 = vpop.f32.mrb[0].mxu0
        %v1072 = vadd.f32 %v927, %v1071
        %v1073 = vpop.f32.mrb[0].mxu0
        %1074 = vmatprep.mubr.bf16.mxu0 0
        %1075 = vmatmul.mubr.bf16.gmra.mrb[0].mxu0 %v660
        %v1076 = vpop.f32.mrb[0].mxu0
        %v1077 = vadd.f32 %v932, %v1076
        %v1078 = vpop.f32.mrb[0].mxu0
        %v1079 = vpop.f32.mrb[0].mxu0
        %v1080 = vadd.f32 %v935, %v1079
        %v1081 = vpop.f32.mrb[0].mxu0
        %1082 = vmatprep.mubr.bf16.mxu0 0
        %1083 = vmatmul.mubr.bf16.gmra.mrb[0].mxu0 %v661
        %v1084 = vpop.f32.mrb[0].mxu0
        %v1085 = vadd.f32 %v940, %v1084
        %v1086 = vpop.f32.mrb[0].mxu0
        %v1087 = vpop.f32.mrb[0].mxu0
        %v1088 = vadd.f32 %v943, %v1087
        %v1089 = vpop.f32.mrb[0].mxu0
        %1090 = vmatprep.mubr.bf16.mxu0 0
        %1091 = vmatmul.mubr.bf16.gmra.mrb[0].mxu0 %v662
        %v1092 = vpop.f32.mrb[0].mxu0
        %v1093 = vadd.f32 %v948, %v1092
        %v1094 = vpop.f32.mrb[0].mxu0
        %v1095 = vpop.f32.mrb[0].mxu0
        %v1096 = vadd.f32 %v951, %v1095
        %v1097 = vpop.f32.mrb[0].mxu0
        %1098 = vmatprep.mubr.bf16.mxu0 0
        %1099 = vmatmul.mubr.bf16.gmra.mrb[0].mxu0 %v663
        %v1100 = vpop.f32.mrb[0].mxu0
        %v1101 = vadd.f32 %v956, %v1100
        %v1102 = vpop.f32.mrb[0].mxu0
        %v1103 = vpop.f32.mrb[0].mxu0
        %v1104 = vadd.f32 %v959, %v1103
        %v1105 = vpop.f32.mrb[0].mxu0
        %1106 = vmatprep.mubr.bf16.mxu0 0
        %1107 = vmatmul.mubr.bf16.gmra.mrb[0].mxu0 %v664
        %v1108 = vpop.f32.mrb[0].mxu0
        %v1109 = vadd.f32 %v964, %v1108
        %v1110 = vpop.f32.mrb[0].mxu0
        %v1111 = vpop.f32.mrb[0].mxu0
        %v1112 = vadd.f32 %v967, %v1111
        %v1113 = vpop.f32.mrb[0].mxu0
        %1114 = vmatprep.mubr.bf16.mxu0 0
        %1115 = vmatmul.mubr.bf16.gmra.mrb[0].mxu0 %v683
        %v1116 = vpop.f32.mrb[0].mxu0
        %v1117 = vadd.f32 %v972, %v1116
        %v1118 = vpop.f32.mrb[0].mxu0
        %v1119 = vpop.f32.mrb[0].mxu0
        %v1120 = vadd.f32 %v975, %v1119
        %v1121 = vpop.f32.mrb[0].mxu0
        %1122 = vmatprep.mubr.bf16.mxu0 0
        %1123 = vmatmul.mubr.bf16.gmra.mrb[0].mxu0 %v689
        %v1124 = vpop.f32.mrb[0].mxu0
        %v1125 = vadd.f32 %v980, %v1124
        %v1126 = vpop.f32.mrb[0].mxu0
        %v1127 = vpop.f32.mrb[0].mxu0
        %v1128 = vadd.f32 %v983, %v1127
        %v1129 = vpop.f32.mrb[0].mxu0
        %1130 = vdwg.mxu0
        %v1131 = vmax.f32 %v1021, 0.0
        %v1132 = vmax.f32 %v1024, 0.0
        %v1133 = vmax.f32 %v1029, 0.0
        %v1134 = vmax.f32 %v1032, 0.0
        %v1135 = vmax.f32 %v1037, 0.0
        %v1136 = vmax.f32 %v1040, 0.0
        %v1137 = vmax.f32 %v1045, 0.0
        %v1138 = vmax.f32 %v1048, 0.0
        %v1139 = vmax.f32 %v1053, 0.0
        %v1140 = vmax.f32 %v1056, 0.0
        %v1141 = vmax.f32 %v1061, 0.0
        %v1142 = vmax.f32 %v1064, 0.0
        %v1143 = vmax.f32 %v1069, 0.0
        %v1144 = vmax.f32 %v1072, 0.0
        %v1145 = vmax.f32 %v1077, 0.0
        %v1146 = vmax.f32 %v1080, 0.0
        %v1147 = vmax.f32 %v1085, 0.0
        %v1148 = vmax.f32 %v1088, 0.0
        %v1149 = vmax.f32 %v1093, 0.0
        %v1150 = vmax.f32 %v1096, 0.0
        %v1151 = vmax.f32 %v1101, 0.0
        %v1152 = vmax.f32 %v1104, 0.0
        %v1153 = vmax.f32 %v1109, 0.0
        %v1154 = vmax.f32 %v1112, 0.0
        %v1155 = vmax.f32 %v1117, 0.0
        %v1156 = vmax.f32 %v1120, 0.0
        %v1157 = vmax.f32 %v1125, 0.0
        %v1158 = vmax.f32 %v1128, 0.0
        %v1159 = vpack.c.bf16 0.0, 0.0
        %v1160 = vpack.c.bf16 %v1132, %v1131
        %v1161 = vpack.c.bf16 %v1134, %v1133
        %v1162 = vpack.c.bf16 %v1136, %v1135
        %v1163 = vpack.c.bf16 %v1138, %v1137
        %v1164 = vpack.c.bf16 %v1140, %v1139
        %v1165 = vpack.c.bf16 %v1142, %v1141
        %v1166 = vpack.c.bf16 %v1144, %v1143
        %v1167 = vpack.c.bf16 %v1146, %v1145
        %v1168 = vpack.c.bf16 %v1148, %v1147
        %v1169 = vpack.c.bf16 %v1150, %v1149
        %v1170 = vpack.c.bf16 %v1152, %v1151
        %v1171 = vpack.c.bf16 %v1154, %v1153
        %v1172 = vpack.c.bf16 %v1156, %v1155
        %v1173 = vpack.c.bf16 %v1158, %v1157
        %v1175 = vlaneseq
        %v1176 = vshrl.u32 %v1175, 7
        %v1177 = vsub.s32 0, %v1176
        %v1178 = vrot.slane %v545, %v1177
        %v1228 = vunpack.c.l.b16 %v497
        %v1229 = vunpack.c.l.b16 %v498
        %v1230 = vunpack.c.l.b16 %v499
        %v1231 = vunpack.c.l.b16 %v500
        %v1232 = vunpack.c.l.b16 %v501
        %v1233 = vunpack.c.l.b16 %v502
        %v1234 = vunpack.c.l.b16 %v503
        %v1235 = vunpack.c.l.b16 %v504
        %v1236 = vunpack.c.l.b16 %v505
        %v1237 = vunpack.c.l.b16 %v506
        %v1238 = vunpack.c.l.b16 %v507
        %v1239 = vunpack.c.l.b16 %v508
        %v1240 = vunpack.c.l.b16 %v509
        %v1241 = vunpack.c.l.b16 %v510
        %v1242 = vunpack.c.l.b16 %v511
        %v1243 = vunpack.c.l.b16 %v512
        %v1244 = vunpack.c.l.b16 %v513
        %v1245 = vunpack.c.l.b16 %v514
        %v1246 = vunpack.c.l.b16 %v515
        %v1247 = vunpack.c.l.b16 %v516
        %v1248 = vunpack.c.l.b16 %v517
        %v1249 = vunpack.c.l.b16 %v518
        %v1250 = vunpack.c.l.b16 %v519
        %v1251 = vunpack.c.l.b16 %v520
        %v1252 = vunpack.c.l.b16 %v521
        %v1253 = vunpack.c.l.b16 %v522
        %v1254 = vunpack.c.l.b16 %v523
        %v1255 = vunpack.c.l.b16 %v524
        %v1256 = vunpack.c.l.b16 %v525
        %v1257 = vunpack.c.l.b16 %v526
        %v1258 = vunpack.c.l.b16 %v527
        %v1259 = vunpack.c.l.b16 %v528
        %v1260 = vunpack.c.l.b16 %v529
        %v1261 = vunpack.c.l.b16 %v530
        %v1262 = vunpack.c.l.b16 %v531
        %v1263 = vunpack.c.l.b16 %v532
        %v1264 = vunpack.c.l.b16 %v533
        %v1265 = vunpack.c.l.b16 %v534
        %v1266 = vunpack.c.l.b16 %v535
        %v1267 = vunpack.c.l.b16 %v536
        %v1268 = vunpack.c.l.b16 %v537
        %v1269 = vunpack.c.l.b16 %v538
        %v1270 = vunpack.c.l.b16 %v539
        %v1271 = vunpack.c.l.b16 %v540
        %v1272 = vunpack.c.l.b16 %v541
        %v1273 = vunpack.c.l.b16 %v542
        %v1274 = vunpack.c.l.b16 %v543
        %v1275 = vunpack.c.l.b16 %v544
        %v1276 = vpack.c.b16 %v1229, %v1228
        %v1277 = vpack.c.b16 %v1231, %v1230
        %v1278 = vpack.c.b16 %v1233, %v1232
        %v1279 = vpack.c.b16 %v1235, %v1234
        %v1280 = vpack.c.b16 %v1237, %v1236
        %v1281 = vpack.c.b16 %v1239, %v1238
        %v1282 = vpack.c.b16 %v1241, %v1240
        %v1283 = vpack.c.b16 %v1243, %v1242
        %v1284 = vpack.c.b16 %v1245, %v1244
        %v1285 = vpack.c.b16 %v1247, %v1246
        %v1286 = vpack.c.b16 %v1249, %v1248
        %v1287 = vpack.c.b16 %v1251, %v1250
        %v1288 = vpack.c.b16 %v1253, %v1252
        %v1289 = vpack.c.b16 %v1255, %v1254
        %v1290 = vpack.c.b16 %v1257, %v1256
        %v1291 = vpack.c.b16 %v1259, %v1258
        %v1292 = vpack.c.b16 %v1261, %v1260
        %v1293 = vpack.c.b16 %v1263, %v1262
        %v1294 = vpack.c.b16 %v1265, %v1264
        %v1295 = vpack.c.b16 %v1267, %v1266
        %v1296 = vpack.c.b16 %v1269, %v1268
        %v1297 = vpack.c.b16 %v1271, %v1270
        %v1298 = vpack.c.b16 %v1273, %v1272
        %v1299 = vpack.c.b16 %v1275, %v1274
        %1324 = vmatprep.subr.bf16.mxu0 0
        %1325 = vmatpush1.bf16.msra.mxu0 %v1276
        %1326 = vmatprep.subr.bf16.mxu0 0
        %1327 = vmatpush1.bf16.msra.mxu0 %v1277
        %1328 = vmatprep.subr.bf16.mxu0 0
        %1329 = vmatpush1.bf16.msra.mxu0 %v1278
        %1330 = vmatprep.subr.bf16.mxu0 0
        %1331 = vmatpush1.bf16.msra.mxu0 %v1279
        %1332 = vmatprep.subr.bf16.mxu0 0
        %1333 = vmatpush1.bf16.msra.mxu0 %v1280
        %1334 = vmatprep.subr.bf16.mxu0 0
        %1335 = vmatpush1.bf16.msra.mxu0 %v1281
        %1336 = vmatprep.subr.bf16.mxu0 0
        %1337 = vmatpush1.bf16.msra.mxu0 %v1282
        %1338 = vmatprep.subr.bf16.mxu0 0
        %1339 = vmatpush1.bf16.msra.mxu0 %v1283
        %1340 = vmatprep.subr.bf16.mxu0 0
        %1341 = vmatpush1.bf16.msra.mxu0 %v1284
        %1342 = vmatprep.subr.bf16.mxu0 0
        %1343 = vmatpush1.bf16.msra.mxu0 %v1285
        %1344 = vmatprep.subr.bf16.mxu0 0
        %1345 = vmatpush1.bf16.msra.mxu0 %v1286
        %1346 = vmatprep.subr.bf16.mxu0 0
        %1347 = vmatpush1.bf16.msra.mxu0 %v1287
        %1348 = vmatprep.subr.bf16.mxu0 0
        %1349 = vmatpush1.bf16.msra.mxu0 %v1288
        %1350 = vmatprep.subr.bf16.mxu0 0
        %1351 = vmatpush1.bf16.msra.mxu0 %v1289
        %1352 = vmatprep.subr.bf16.mxu0 0
        %1353 = vmatpush1.bf16.msra.mxu0 %v1290
        %1354 = vmatprep.subr.bf16.mxu0 0
        %1355 = vmatpush1.bf16.msra.mxu0 %v1291
        %1356 = vmatprep.mubr.bf16.mxu0 %v1160
        %1357 = vmatmul.mubr.bf16.gmra.mrb[0].mxu0 %v1159
        %v1358 = vpop.f32.mrb[0].mxu0
        %v1359 = vadd.f32 %v1178, %v1358
        %v1360 = vpop.f32.mrb[0].mxu0
        %v1361 = vpop.f32.mrb[0].mxu0
        %v1362 = vadd.f32 %v1178, %v1361
        %v1363 = vpop.f32.mrb[0].mxu0
        %1364 = vmatprep.mubr.bf16.mxu0 %v1161
        %1365 = vmatmul.mubr.bf16.gmra.mrb[0].mxu0 %v1160
        %v1366 = vpop.f32.mrb[0].mxu0
        %v1367 = vadd.f32 %v1178, %v1366
        %v1368 = vpop.f32.mrb[0].mxu0
        %v1369 = vpop.f32.mrb[0].mxu0
        %v1370 = vadd.f32 %v1178, %v1369
        %v1371 = vpop.f32.mrb[0].mxu0
        %1372 = vmatprep.mubr.bf16.mxu0 %v1162
        %1373 = vmatmul.mubr.bf16.gmra.mrb[0].mxu0 %v1161
        %v1374 = vpop.f32.mrb[0].mxu0
        %v1375 = vadd.f32 %v1178, %v1374
        %v1376 = vpop.f32.mrb[0].mxu0
        %v1377 = vpop.f32.mrb[0].mxu0
        %v1378 = vadd.f32 %v1178, %v1377
        %v1379 = vpop.f32.mrb[0].mxu0
        %1380 = vmatprep.mubr.bf16.mxu0 %v1163
        %1381 = vmatmul.mubr.bf16.gmra.mrb[0].mxu0 %v1162
        %v1382 = vpop.f32.mrb[0].mxu0
        %v1383 = vadd.f32 %v1178, %v1382
        %v1384 = vpop.f32.mrb[0].mxu0
        %v1385 = vpop.f32.mrb[0].mxu0
        %v1386 = vadd.f32 %v1178, %v1385
        %v1387 = vpop.f32.mrb[0].mxu0
        %1388 = vmatprep.mubr.bf16.mxu0 %v1164
        %1389 = vmatmul.mubr.bf16.gmra.mrb[0].mxu0 %v1163
        %v1390 = vpop.f32.mrb[0].mxu0
        %v1391 = vadd.f32 %v1178, %v1390
        %v1392 = vpop.f32.mrb[0].mxu0
        %v1393 = vpop.f32.mrb[0].mxu0
        %v1394 = vadd.f32 %v1178, %v1393
        %v1395 = vpop.f32.mrb[0].mxu0
        %1396 = vmatprep.mubr.bf16.mxu0 %v1165
        %1397 = vmatmul.mubr.bf16.gmra.mrb[0].mxu0 %v1164
        %v1398 = vpop.f32.mrb[0].mxu0
        %v1399 = vadd.f32 %v1178, %v1398
        %v1400 = vpop.f32.mrb[0].mxu0
        %v1401 = vpop.f32.mrb[0].mxu0
        %v1402 = vadd.f32 %v1178, %v1401
        %v1403 = vpop.f32.mrb[0].mxu0
        %1404 = vmatprep.mubr.bf16.mxu0 %v1166
        %1405 = vmatmul.mubr.bf16.gmra.mrb[0].mxu0 %v1165
        %v1406 = vpop.f32.mrb[0].mxu0
        %v1407 = vadd.f32 %v1178, %v1406
        %v1408 = vpop.f32.mrb[0].mxu0
        %v1409 = vpop.f32.mrb[0].mxu0
        %v1410 = vadd.f32 %v1178, %v1409
        %v1411 = vpop.f32.mrb[0].mxu0
        %1412 = vmatprep.mubr.bf16.mxu0 %v1167
        %1413 = vmatmul.mubr.bf16.gmra.mrb[0].mxu0 %v1166
        %v1414 = vpop.f32.mrb[0].mxu0
        %v1415 = vadd.f32 %v1178, %v1414
        %v1416 = vpop.f32.mrb[0].mxu0
        %v1417 = vpop.f32.mrb[0].mxu0
        %v1418 = vadd.f32 %v1178, %v1417
        %v1419 = vpop.f32.mrb[0].mxu0
        %1420 = vmatprep.mubr.bf16.mxu0 %v1168
        %1421 = vmatmul.mubr.bf16.gmra.mrb[0].mxu0 %v1167
        %v1422 = vpop.f32.mrb[0].mxu0
        %v1423 = vadd.f32 %v1178, %v1422
        %v1424 = vpop.f32.mrb[0].mxu0
        %v1425 = vpop.f32.mrb[0].mxu0
        %v1426 = vadd.f32 %v1178, %v1425
        %v1427 = vpop.f32.mrb[0].mxu0
        %1428 = vmatprep.mubr.bf16.mxu0 %v1169
        %1429 = vmatmul.mubr.bf16.gmra.mrb[0].mxu0 %v1168
        %v1430 = vpop.f32.mrb[0].mxu0
        %v1431 = vadd.f32 %v1178, %v1430
        %v1432 = vpop.f32.mrb[0].mxu0
        %v1433 = vpop.f32.mrb[0].mxu0
        %v1434 = vadd.f32 %v1178, %v1433
        %v1435 = vpop.f32.mrb[0].mxu0
        %1436 = vmatprep.mubr.bf16.mxu0 %v1170
        %1437 = vmatmul.mubr.bf16.gmra.mrb[0].mxu0 %v1169
        %v1438 = vpop.f32.mrb[0].mxu0
        %v1439 = vadd.f32 %v1178, %v1438
        %v1440 = vpop.f32.mrb[0].mxu0
        %v1441 = vpop.f32.mrb[0].mxu0
        %v1442 = vadd.f32 %v1178, %v1441
        %v1443 = vpop.f32.mrb[0].mxu0
        %1444 = vmatprep.mubr.bf16.mxu0 %v1171
        %1445 = vmatmul.mubr.bf16.gmra.mrb[0].mxu0 %v1170
        %v1446 = vpop.f32.mrb[0].mxu0
        %v1447 = vadd.f32 %v1178, %v1446
        %v1448 = vpop.f32.mrb[0].mxu0
        %v1449 = vpop.f32.mrb[0].mxu0
        %v1450 = vadd.f32 %v1178, %v1449
        %v1451 = vpop.f32.mrb[0].mxu0
        %1452 = vmatprep.mubr.bf16.mxu0 %v1172
        %1453 = vmatmul.mubr.bf16.gmra.mrb[0].mxu0 %v1171
        %v1454 = vpop.f32.mrb[0].mxu0
        %v1455 = vadd.f32 %v1178, %v1454
        %v1456 = vpop.f32.mrb[0].mxu0
        %v1457 = vpop.f32.mrb[0].mxu0
        %v1458 = vadd.f32 %v1178, %v1457
        %v1459 = vpop.f32.mrb[0].mxu0
        %1460 = vmatprep.mubr.bf16.mxu0 %v1173
        %1461 = vmatmul.mubr.bf16.gmra.mrb[0].mxu0 %v1172
        %v1462 = vpop.f32.mrb[0].mxu0
        %v1463 = vadd.f32 %v1178, %v1462
        %v1464 = vpop.f32.mrb[0].mxu0
        %v1465 = vpop.f32.mrb[0].mxu0
        %v1466 = vadd.f32 %v1178, %v1465
        %v1467 = vpop.f32.mrb[0].mxu0
        %1468 = vdwg.mxu0
        %1469 = vmatprep.subr.bf16.mxu0 0
        %1470 = vmatpush1.bf16.msra.mxu0 %v1292
        %1471 = vmatprep.subr.bf16.mxu0 0
        %1472 = vmatpush1.bf16.msra.mxu0 %v1293
        %1473 = vmatprep.subr.bf16.mxu0 0
        %1474 = vmatpush1.bf16.msra.mxu0 %v1294
        %1475 = vmatprep.subr.bf16.mxu0 0
        %1476 = vmatpush1.bf16.msra.mxu0 %v1295
        %1477 = vmatprep.subr.bf16.mxu0 0
        %1478 = vmatpush1.bf16.msra.mxu0 %v1296
        %1479 = vmatprep.subr.bf16.mxu0 0
        %1480 = vmatpush1.bf16.msra.mxu0 %v1297
        %1481 = vmatprep.subr.bf16.mxu0 0
        %1482 = vmatpush1.bf16.msra.mxu0 %v1298
        %1483 = vmatprep.subr.bf16.mxu0 0
        %1484 = vmatpush1.bf16.msra.mxu0 %v1299
        %1485 = vmatprep.subr.bf16.mxu0 0
        %1486 = vmatpush1.bf16.msra.mxu0 0
        %1487 = vmatprep.subr.bf16.mxu0 0
        %1488 = vmatpush1.bf16.msra.mxu0 0
        %1489 = vmatprep.subr.bf16.mxu0 0
        %1490 = vmatpush1.bf16.msra.mxu0 0
        %1491 = vmatprep.subr.bf16.mxu0 0
        %1492 = vmatpush1.bf16.msra.mxu0 0
        %1493 = vmatprep.subr.bf16.mxu0 0
        %1494 = vmatpush1.bf16.msra.mxu0 0
        %1495 = vmatprep.subr.bf16.mxu0 0
        %1496 = vmatpush1.bf16.msra.mxu0 0
        %1497 = vmatprep.subr.bf16.mxu0 0
        %1498 = vmatpush1.bf16.msra.mxu0 0
        %1499 = vmatprep.subr.bf16.mxu0 0
        %1500 = vmatpush1.bf16.msra.mxu0 0
        %1501 = vmatprep.mubr.bf16.mxu0 0
        %1502 = vmatmul.mubr.bf16.gmra.mrb[0].mxu0 %v1161
        %v1503 = vpop.f32.mrb[0].mxu0
        %v1504 = vadd.f32 %v1359, %v1503
        %v1505 = vpop.f32.mrb[0].mxu0
        %v1506 = vpop.f32.mrb[0].mxu0
        %v1507 = vadd.f32 %v1362, %v1506
        %v1508 = vpop.f32.mrb[0].mxu0
        %1509 = vmatprep.mubr.bf16.mxu0 0
        %1510 = vmatmul.mubr.bf16.gmra.mrb[0].mxu0 %v1162
        %v1511 = vpop.f32.mrb[0].mxu0
        %v1512 = vadd.f32 %v1367, %v1511
        %v1513 = vpop.f32.mrb[0].mxu0
        %v1514 = vpop.f32.mrb[0].mxu0
        %v1515 = vadd.f32 %v1370, %v1514
        %v1516 = vpop.f32.mrb[0].mxu0
        %1517 = vmatprep.mubr.bf16.mxu0 0
        %1518 = vmatmul.mubr.bf16.gmra.mrb[0].mxu0 %v1163
        %v1519 = vpop.f32.mrb[0].mxu0
        %v1520 = vadd.f32 %v1375, %v1519
        %v1521 = vpop.f32.mrb[0].mxu0
        %v1522 = vpop.f32.mrb[0].mxu0
        %v1523 = vadd.f32 %v1378, %v1522
        %v1524 = vpop.f32.mrb[0].mxu0
        %1525 = vmatprep.mubr.bf16.mxu0 0
        %1526 = vmatmul.mubr.bf16.gmra.mrb[0].mxu0 %v1164
        %v1527 = vpop.f32.mrb[0].mxu0
        %v1528 = vadd.f32 %v1383, %v1527
        %v1529 = vpop.f32.mrb[0].mxu0
        %v1530 = vpop.f32.mrb[0].mxu0
        %v1531 = vadd.f32 %v1386, %v1530
        %v1532 = vpop.f32.mrb[0].mxu0
        %1533 = vmatprep.mubr.bf16.mxu0 0
        %1534 = vmatmul.mubr.bf16.gmra.mrb[0].mxu0 %v1165
        %v1535 = vpop.f32.mrb[0].mxu0
        %v1536 = vadd.f32 %v1391, %v1535
        %v1537 = vpop.f32.mrb[0].mxu0
        %v1538 = vpop.f32.mrb[0].mxu0
        %v1539 = vadd.f32 %v1394, %v1538
        %v1540 = vpop.f32.mrb[0].mxu0
        %1541 = vmatprep.mubr.bf16.mxu0 0
        %1542 = vmatmul.mubr.bf16.gmra.mrb[0].mxu0 %v1166
        %v1543 = vpop.f32.mrb[0].mxu0
        %v1544 = vadd.f32 %v1399, %v1543
        %v1545 = vpop.f32.mrb[0].mxu0
        %v1546 = vpop.f32.mrb[0].mxu0
        %v1547 = vadd.f32 %v1402, %v1546
        %v1548 = vpop.f32.mrb[0].mxu0
        %1549 = vmatprep.mubr.bf16.mxu0 0
        %1550 = vmatmul.mubr.bf16.gmra.mrb[0].mxu0 %v1167
        %v1551 = vpop.f32.mrb[0].mxu0
        %v1552 = vadd.f32 %v1407, %v1551
        %v1553 = vpop.f32.mrb[0].mxu0
        %v1554 = vpop.f32.mrb[0].mxu0
        %v1555 = vadd.f32 %v1410, %v1554
        %v1556 = vpop.f32.mrb[0].mxu0
        %1557 = vmatprep.mubr.bf16.mxu0 0
        %1558 = vmatmul.mubr.bf16.gmra.mrb[0].mxu0 %v1168
        %v1559 = vpop.f32.mrb[0].mxu0
        %v1560 = vadd.f32 %v1415, %v1559
        %v1561 = vpop.f32.mrb[0].mxu0
        %v1562 = vpop.f32.mrb[0].mxu0
        %v1563 = vadd.f32 %v1418, %v1562
        %v1564 = vpop.f32.mrb[0].mxu0
        %1565 = vmatprep.mubr.bf16.mxu0 0
        %1566 = vmatmul.mubr.bf16.gmra.mrb[0].mxu0 %v1169
        %v1567 = vpop.f32.mrb[0].mxu0
        %v1568 = vadd.f32 %v1423, %v1567
        %v1569 = vpop.f32.mrb[0].mxu0
        %v1570 = vpop.f32.mrb[0].mxu0
        %v1571 = vadd.f32 %v1426, %v1570
        %v1572 = vpop.f32.mrb[0].mxu0
        %1573 = vmatprep.mubr.bf16.mxu0 0
        %1574 = vmatmul.mubr.bf16.gmra.mrb[0].mxu0 %v1170
        %v1575 = vpop.f32.mrb[0].mxu0
        %v1576 = vadd.f32 %v1431, %v1575
        %v1577 = vpop.f32.mrb[0].mxu0
        %v1578 = vpop.f32.mrb[0].mxu0
        %v1579 = vadd.f32 %v1434, %v1578
        %v1580 = vpop.f32.mrb[0].mxu0
        %1581 = vmatprep.mubr.bf16.mxu0 0
        %1582 = vmatmul.mubr.bf16.gmra.mrb[0].mxu0 %v1171
        %v1583 = vpop.f32.mrb[0].mxu0
        %v1584 = vadd.f32 %v1439, %v1583
        %v1585 = vpop.f32.mrb[0].mxu0
        %v1586 = vpop.f32.mrb[0].mxu0
        %v1587 = vadd.f32 %v1442, %v1586
        %v1588 = vpop.f32.mrb[0].mxu0
        %1589 = vmatprep.mubr.bf16.mxu0 0
        %1590 = vmatmul.mubr.bf16.gmra.mrb[0].mxu0 %v1172
        %v1591 = vpop.f32.mrb[0].mxu0
        %v1592 = vadd.f32 %v1447, %v1591
        %v1593 = vpop.f32.mrb[0].mxu0
        %v1594 = vpop.f32.mrb[0].mxu0
        %v1595 = vadd.f32 %v1450, %v1594
        %v1596 = vpop.f32.mrb[0].mxu0
        %1597 = vmatprep.mubr.bf16.mxu0 0
        %1598 = vmatmul.mubr.bf16.gmra.mrb[0].mxu0 %v1173
        %v1599 = vpop.f32.mrb[0].mxu0
        %v1600 = vadd.f32 %v1455, %v1599
        %v1601 = vpop.f32.mrb[0].mxu0
        %v1602 = vpop.f32.mrb[0].mxu0
        %v1603 = vadd.f32 %v1458, %v1602
        %v1604 = vpop.f32.mrb[0].mxu0
        %1605 = vmatprep.mubr.bf16.mxu0 0
        %1606 = vmatmul.mubr.bf16.gmra.mrb[0].mxu0 %v1159
        %v1607 = vpop.f32.mrb[0].mxu0
        %v1608 = vadd.f32 %v1463, %v1607
        %v1609 = vpop.f32.mrb[0].mxu0
        %v1610 = vpop.f32.mrb[0].mxu0
        %v1611 = vadd.f32 %v1466, %v1610
        %v1612 = vpop.f32.mrb[0].mxu0
        %1613 = vdwg.mxu0
        %v1614 = vmax.f32 %v1504, 0.0
        %v1615 = vmax.f32 %v1507, 0.0
        %v1616 = vmax.f32 %v1512, 0.0
        %v1617 = vmax.f32 %v1515, 0.0
        %v1618 = vmax.f32 %v1520, 0.0
        %v1619 = vmax.f32 %v1523, 0.0
        %v1620 = vmax.f32 %v1528, 0.0
        %v1621 = vmax.f32 %v1531, 0.0
        %v1622 = vmax.f32 %v1536, 0.0
        %v1623 = vmax.f32 %v1539, 0.0
        %v1624 = vmax.f32 %v1544, 0.0
        %v1625 = vmax.f32 %v1547, 0.0
        %v1626 = vmax.f32 %v1552, 0.0
        %v1627 = vmax.f32 %v1555, 0.0
        %v1628 = vmax.f32 %v1560, 0.0
        %v1629 = vmax.f32 %v1563, 0.0
        %v1630 = vmax.f32 %v1568, 0.0
        %v1631 = vmax.f32 %v1571, 0.0
        %v1632 = vmax.f32 %v1576, 0.0
        %v1633 = vmax.f32 %v1579, 0.0
        %v1634 = vmax.f32 %v1584, 0.0
        %v1635 = vmax.f32 %v1587, 0.0
        %v1636 = vmax.f32 %v1592, 0.0
        %v1637 = vmax.f32 %v1595, 0.0
        %v1638 = vmax.f32 %v1600, 0.0
        %v1639 = vmax.f32 %v1603, 0.0
        %v1640 = vmax.f32 %v1608, 0.0
        %v1641 = vmax.f32 %v1611, 0.0
        %v1642 = vpack.c.bf16 %v1615, %v1614
        %v1643 = vpack.c.bf16 %v1617, %v1616
        %v1644 = vpack.c.bf16 %v1619, %v1618
        %v1645 = vpack.c.bf16 %v1621, %v1620
        %v1646 = vpack.c.bf16 %v1623, %v1622
        %v1647 = vpack.c.bf16 %v1625, %v1624
        %v1648 = vpack.c.bf16 %v1627, %v1626
        %v1649 = vpack.c.bf16 %v1629, %v1628
        %v1650 = vpack.c.bf16 %v1631, %v1630
        %v1651 = vpack.c.bf16 %v1633, %v1632
        %v1652 = vpack.c.bf16 %v1635, %v1634
        %v1653 = vpack.c.bf16 %v1637, %v1636
        %v1654 = vpack.c.bf16 %v1639, %v1638
        %v1655 = vpack.c.bf16 %v1641, %v1640
        %1656 = vmatprep.subr.bf16.mxu0 0
        %1657 = vmatpush1.bf16.msra.mxu0 %v1276
        %1658 = vmatprep.subr.bf16.mxu0 0
        %1659 = vmatpush1.bf16.msra.mxu0 %v1277
        %1660 = vmatprep.subr.bf16.mxu0 0
        %1661 = vmatpush1.bf16.msra.mxu0 %v1278
        %1662 = vmatprep.subr.bf16.mxu0 0
        %1663 = vmatpush1.bf16.msra.mxu0 %v1279
        %1664 = vmatprep.subr.bf16.mxu0 0
        %1665 = vmatpush1.bf16.msra.mxu0 %v1280
        %1666 = vmatprep.subr.bf16.mxu0 0
        %1667 = vmatpush1.bf16.msra.mxu0 %v1281
        %1668 = vmatprep.subr.bf16.mxu0 0
        %1669 = vmatpush1.bf16.msra.mxu0 %v1282
        %1670 = vmatprep.subr.bf16.mxu0 0
        %1671 = vmatpush1.bf16.msra.mxu0 %v1283
        %1672 = vmatprep.subr.bf16.mxu0 0
        %1673 = vmatpush1.bf16.msra.mxu0 %v1284
        %1674 = vmatprep.subr.bf16.mxu0 0
        %1675 = vmatpush1.bf16.msra.mxu0 %v1285
        %1676 = vmatprep.subr.bf16.mxu0 0
        %1677 = vmatpush1.bf16.msra.mxu0 %v1286
        %1678 = vmatprep.subr.bf16.mxu0 0
        %1679 = vmatpush1.bf16.msra.mxu0 %v1287
        %1680 = vmatprep.subr.bf16.mxu0 0
        %1681 = vmatpush1.bf16.msra.mxu0 %v1288
        %1682 = vmatprep.subr.bf16.mxu0 0
        %1683 = vmatpush1.bf16.msra.mxu0 %v1289
        %1684 = vmatprep.subr.bf16.mxu0 0
        %1685 = vmatpush1.bf16.msra.mxu0 %v1290
        %1686 = vmatprep.subr.bf16.mxu0 0
        %1687 = vmatpush1.bf16.msra.mxu0 %v1291
        %1688 = vmatprep.mubr.bf16.mxu0 %v1642
        %1689 = vmatmul.mubr.bf16.gmra.mrb[0].mxu0 %v1159
        %v1690 = vpop.f32.mrb[0].mxu0
        %v1691 = vadd.f32 %v1178, %v1690
        %v1692 = vpop.f32.mrb[0].mxu0
        %v1693 = vpop.f32.mrb[0].mxu0
        %v1694 = vadd.f32 %v1178, %v1693
        %v1695 = vpop.f32.mrb[0].mxu0
        %1696 = vmatprep.mubr.bf16.mxu0 %v1643
        %1697 = vmatmul.mubr.bf16.gmra.mrb[0].mxu0 %v1642
        %v1698 = vpop.f32.mrb[0].mxu0
        %v1699 = vadd.f32 %v1178, %v1698
        %v1700 = vpop.f32.mrb[0].mxu0
        %v1701 = vpop.f32.mrb[0].mxu0
        %v1702 = vadd.f32 %v1178, %v1701
        %v1703 = vpop.f32.mrb[0].mxu0
        %1704 = vmatprep.mubr.bf16.mxu0 %v1644
        %1705 = vmatmul.mubr.bf16.gmra.mrb[0].mxu0 %v1643
        %v1706 = vpop.f32.mrb[0].mxu0
        %v1707 = vadd.f32 %v1178, %v1706
        %v1708 = vpop.f32.mrb[0].mxu0
        %v1709 = vpop.f32.mrb[0].mxu0
        %v1710 = vadd.f32 %v1178, %v1709
        %v1711 = vpop.f32.mrb[0].mxu0
        %1712 = vmatprep.mubr.bf16.mxu0 %v1645
        %1713 = vmatmul.mubr.bf16.gmra.mrb[0].mxu0 %v1644
        %v1714 = vpop.f32.mrb[0].mxu0
        %v1715 = vadd.f32 %v1178, %v1714
        %v1716 = vpop.f32.mrb[0].mxu0
        %v1717 = vpop.f32.mrb[0].mxu0
        %v1718 = vadd.f32 %v1178, %v1717
        %v1719 = vpop.f32.mrb[0].mxu0
        %1720 = vmatprep.mubr.bf16.mxu0 %v1646
        %1721 = vmatmul.mubr.bf16.gmra.mrb[0].mxu0 %v1645
        %v1722 = vpop.f32.mrb[0].mxu0
        %v1723 = vadd.f32 %v1178, %v1722
        %v1724 = vpop.f32.mrb[0].mxu0
        %v1725 = vpop.f32.mrb[0].mxu0
        %v1726 = vadd.f32 %v1178, %v1725
        %v1727 = vpop.f32.mrb[0].mxu0
        %1728 = vmatprep.mubr.bf16.mxu0 %v1647
        %1729 = vmatmul.mubr.bf16.gmra.mrb[0].mxu0 %v1646
        %v1730 = vpop.f32.mrb[0].mxu0
        %v1731 = vadd.f32 %v1178, %v1730
        %v1732 = vpop.f32.mrb[0].mxu0
        %v1733 = vpop.f32.mrb[0].mxu0
        %v1734 = vadd.f32 %v1178, %v1733
        %v1735 = vpop.f32.mrb[0].mxu0
        %1736 = vmatprep.mubr.bf16.mxu0 %v1648
        %1737 = vmatmul.mubr.bf16.gmra.mrb[0].mxu0 %v1647
        %v1738 = vpop.f32.mrb[0].mxu0
        %v1739 = vadd.f32 %v1178, %v1738
        %v1740 = vpop.f32.mrb[0].mxu0
        %v1741 = vpop.f32.mrb[0].mxu0
        %v1742 = vadd.f32 %v1178, %v1741
        %v1743 = vpop.f32.mrb[0].mxu0
        %1744 = vmatprep.mubr.bf16.mxu0 %v1649
        %1745 = vmatmul.mubr.bf16.gmra.mrb[0].mxu0 %v1648
        %v1746 = vpop.f32.mrb[0].mxu0
        %v1747 = vadd.f32 %v1178, %v1746
        %v1748 = vpop.f32.mrb[0].mxu0
        %v1749 = vpop.f32.mrb[0].mxu0
        %v1750 = vadd.f32 %v1178, %v1749
        %v1751 = vpop.f32.mrb[0].mxu0
        %1752 = vmatprep.mubr.bf16.mxu0 %v1650
        %1753 = vmatmul.mubr.bf16.gmra.mrb[0].mxu0 %v1649
        %v1754 = vpop.f32.mrb[0].mxu0
        %v1755 = vadd.f32 %v1178, %v1754
        %v1756 = vpop.f32.mrb[0].mxu0
        %v1757 = vpop.f32.mrb[0].mxu0
        %v1758 = vadd.f32 %v1178, %v1757
        %v1759 = vpop.f32.mrb[0].mxu0
        %1760 = vmatprep.mubr.bf16.mxu0 %v1651
        %1761 = vmatmul.mubr.bf16.gmra.mrb[0].mxu0 %v1650
        %v1762 = vpop.f32.mrb[0].mxu0
        %v1763 = vadd.f32 %v1178, %v1762
        %v1764 = vpop.f32.mrb[0].mxu0
        %v1765 = vpop.f32.mrb[0].mxu0
        %v1766 = vadd.f32 %v1178, %v1765
        %v1767 = vpop.f32.mrb[0].mxu0
        %1768 = vmatprep.mubr.bf16.mxu0 %v1652
        %1769 = vmatmul.mubr.bf16.gmra.mrb[0].mxu0 %v1651
        %v1770 = vpop.f32.mrb[0].mxu0
        %v1771 = vadd.f32 %v1178, %v1770
        %v1772 = vpop.f32.mrb[0].mxu0
        %v1773 = vpop.f32.mrb[0].mxu0
        %v1774 = vadd.f32 %v1178, %v1773
        %v1775 = vpop.f32.mrb[0].mxu0
        %1776 = vmatprep.mubr.bf16.mxu0 %v1653
        %1777 = vmatmul.mubr.bf16.gmra.mrb[0].mxu0 %v1652
        %v1778 = vpop.f32.mrb[0].mxu0
        %v1779 = vadd.f32 %v1178, %v1778
        %v1780 = vpop.f32.mrb[0].mxu0
        %v1781 = vpop.f32.mrb[0].mxu0
        %v1782 = vadd.f32 %v1178, %v1781
        %v1783 = vpop.f32.mrb[0].mxu0
        %1784 = vmatprep.mubr.bf16.mxu0 %v1654
        %1785 = vmatmul.mubr.bf16.gmra.mrb[0].mxu0 %v1653
        %v1786 = vpop.f32.mrb[0].mxu0
        %v1787 = vadd.f32 %v1178, %v1786
        %v1788 = vpop.f32.mrb[0].mxu0
        %v1789 = vpop.f32.mrb[0].mxu0
        %v1790 = vadd.f32 %v1178, %v1789
        %v1791 = vpop.f32.mrb[0].mxu0
        %1792 = vmatprep.mubr.bf16.mxu0 %v1655
        %1793 = vmatmul.mubr.bf16.gmra.mrb[0].mxu0 %v1654
        %v1794 = vpop.f32.mrb[0].mxu0
        %v1795 = vadd.f32 %v1178, %v1794
        %v1796 = vpop.f32.mrb[0].mxu0
        %v1797 = vpop.f32.mrb[0].mxu0
        %v1798 = vadd.f32 %v1178, %v1797
        %v1799 = vpop.f32.mrb[0].mxu0
        %1800 = vdwg.mxu0
        %1801 = vmatprep.subr.bf16.mxu0 0
        %1802 = vmatpush1.bf16.msra.mxu0 %v1292
        %1803 = vmatprep.subr.bf16.mxu0 0
        %1804 = vmatpush1.bf16.msra.mxu0 %v1293
        %1805 = vmatprep.subr.bf16.mxu0 0
        %1806 = vmatpush1.bf16.msra.mxu0 %v1294
        %1807 = vmatprep.subr.bf16.mxu0 0
        %1808 = vmatpush1.bf16.msra.mxu0 %v1295
        %1809 = vmatprep.subr.bf16.mxu0 0
        %1810 = vmatpush1.bf16.msra.mxu0 %v1296
        %1811 = vmatprep.subr.bf16.mxu0 0
        %1812 = vmatpush1.bf16.msra.mxu0 %v1297
        %1813 = vmatprep.subr.bf16.mxu0 0
        %1814 = vmatpush1.bf16.msra.mxu0 %v1298
        %1815 = vmatprep.subr.bf16.mxu0 0
        %1816 = vmatpush1.bf16.msra.mxu0 %v1299
        %1817 = vmatprep.subr.bf16.mxu0 0
        %1818 = vmatpush1.bf16.msra.mxu0 0
        %1819 = vmatprep.subr.bf16.mxu0 0
        %1820 = vmatpush1.bf16.msra.mxu0 0
        %1821 = vmatprep.subr.bf16.mxu0 0
        %1822 = vmatpush1.bf16.msra.mxu0 0
        %1823 = vmatprep.subr.bf16.mxu0 0
        %1824 = vmatpush1.bf16.msra.mxu0 0
        %1825 = vmatprep.subr.bf16.mxu0 0
        %1826 = vmatpush1.bf16.msra.mxu0 0
        %1827 = vmatprep.subr.bf16.mxu0 0
        %1828 = vmatpush1.bf16.msra.mxu0 0
        %1829 = vmatprep.subr.bf16.mxu0 0
        %1830 = vmatpush1.bf16.msra.mxu0 0
        %1831 = vmatprep.subr.bf16.mxu0 0
        %1832 = vmatpush1.bf16.msra.mxu0 0
        %1833 = vmatprep.mubr.bf16.mxu0 0
        %1834 = vmatmul.mubr.bf16.gmra.mrb[0].mxu0 %v1643
        %v1835 = vpop.f32.mrb[0].mxu0
        %v1836 = vadd.f32 %v1691, %v1835
        %v1837 = vpop.f32.mrb[0].mxu0
        %v1838 = vpop.f32.mrb[0].mxu0
        %v1839 = vadd.f32 %v1694, %v1838
        %v1840 = vpop.f32.mrb[0].mxu0
        %1841 = vmatprep.mubr.bf16.mxu0 0
        %1842 = vmatmul.mubr.bf16.gmra.mrb[0].mxu0 %v1644
        %v1843 = vpop.f32.mrb[0].mxu0
        %v1844 = vadd.f32 %v1699, %v1843
        %v1845 = vpop.f32.mrb[0].mxu0
        %v1846 = vpop.f32.mrb[0].mxu0
        %v1847 = vadd.f32 %v1702, %v1846
        %v1848 = vpop.f32.mrb[0].mxu0
        %1849 = vmatprep.mubr.bf16.mxu0 0
        %1850 = vmatmul.mubr.bf16.gmra.mrb[0].mxu0 %v1645
        %v1851 = vpop.f32.mrb[0].mxu0
        %v1852 = vadd.f32 %v1707, %v1851
        %v1853 = vpop.f32.mrb[0].mxu0
        %v1854 = vpop.f32.mrb[0].mxu0
        %v1855 = vadd.f32 %v1710, %v1854
        %v1856 = vpop.f32.mrb[0].mxu0
        %1857 = vmatprep.mubr.bf16.mxu0 0
        %1858 = vmatmul.mubr.bf16.gmra.mrb[0].mxu0 %v1646
        %v1859 = vpop.f32.mrb[0].mxu0
        %v1860 = vadd.f32 %v1715, %v1859
        %v1861 = vpop.f32.mrb[0].mxu0
        %v1862 = vpop.f32.mrb[0].mxu0
        %v1863 = vadd.f32 %v1718, %v1862
        %v1864 = vpop.f32.mrb[0].mxu0
        %1865 = vmatprep.mubr.bf16.mxu0 0
        %1866 = vmatmul.mubr.bf16.gmra.mrb[0].mxu0 %v1647
        %v1867 = vpop.f32.mrb[0].mxu0
        %v1868 = vadd.f32 %v1723, %v1867
        %v1869 = vpop.f32.mrb[0].mxu0
        %v1870 = vpop.f32.mrb[0].mxu0
        %v1871 = vadd.f32 %v1726, %v1870
        %v1872 = vpop.f32.mrb[0].mxu0
        %1873 = vmatprep.mubr.bf16.mxu0 0
        %1874 = vmatmul.mubr.bf16.gmra.mrb[0].mxu0 %v1648
        %v1875 = vpop.f32.mrb[0].mxu0
        %v1876 = vadd.f32 %v1731, %v1875
        %v1877 = vpop.f32.mrb[0].mxu0
        %v1878 = vpop.f32.mrb[0].mxu0
        %v1879 = vadd.f32 %v1734, %v1878
        %v1880 = vpop.f32.mrb[0].mxu0
        %1881 = vmatprep.mubr.bf16.mxu0 0
        %1882 = vmatmul.mubr.bf16.gmra.mrb[0].mxu0 %v1649
        %v1883 = vpop.f32.mrb[0].mxu0
        %v1884 = vadd.f32 %v1739, %v1883
        %v1885 = vpop.f32.mrb[0].mxu0
        %v1886 = vpop.f32.mrb[0].mxu0
        %v1887 = vadd.f32 %v1742, %v1886
        %v1888 = vpop.f32.mrb[0].mxu0
        %1889 = vmatprep.mubr.bf16.mxu0 0
        %1890 = vmatmul.mubr.bf16.gmra.mrb[0].mxu0 %v1650
        %v1891 = vpop.f32.mrb[0].mxu0
        %v1892 = vadd.f32 %v1747, %v1891
        %v1893 = vpop.f32.mrb[0].mxu0
        %v1894 = vpop.f32.mrb[0].mxu0
        %v1895 = vadd.f32 %v1750, %v1894
        %v1896 = vpop.f32.mrb[0].mxu0
        %1897 = vmatprep.mubr.bf16.mxu0 0
        %1898 = vmatmul.mubr.bf16.gmra.mrb[0].mxu0 %v1651
        %v1899 = vpop.f32.mrb[0].mxu0
        %v1900 = vadd.f32 %v1755, %v1899
        %v1901 = vpop.f32.mrb[0].mxu0
        %v1902 = vpop.f32.mrb[0].mxu0
        %v1903 = vadd.f32 %v1758, %v1902
        %v1904 = vpop.f32.mrb[0].mxu0
        %1905 = vmatprep.mubr.bf16.mxu0 0
        %1906 = vmatmul.mubr.bf16.gmra.mrb[0].mxu0 %v1652
        %v1907 = vpop.f32.mrb[0].mxu0
        %v1908 = vadd.f32 %v1763, %v1907
        %v1909 = vpop.f32.mrb[0].mxu0
        %v1910 = vpop.f32.mrb[0].mxu0
        %v1911 = vadd.f32 %v1766, %v1910
        %v1912 = vpop.f32.mrb[0].mxu0
        %1913 = vmatprep.mubr.bf16.mxu0 0
        %1914 = vmatmul.mubr.bf16.gmra.mrb[0].mxu0 %v1653
        %v1915 = vpop.f32.mrb[0].mxu0
        %v1916 = vadd.f32 %v1771, %v1915
        %v1917 = vpop.f32.mrb[0].mxu0
        %v1918 = vpop.f32.mrb[0].mxu0
        %v1919 = vadd.f32 %v1774, %v1918
        %v1920 = vpop.f32.mrb[0].mxu0
        %1921 = vmatprep.mubr.bf16.mxu0 0
        %1922 = vmatmul.mubr.bf16.gmra.mrb[0].mxu0 %v1654
        %v1923 = vpop.f32.mrb[0].mxu0
        %v1924 = vadd.f32 %v1779, %v1923
        %v1925 = vpop.f32.mrb[0].mxu0
        %v1926 = vpop.f32.mrb[0].mxu0
        %v1927 = vadd.f32 %v1782, %v1926
        %v1928 = vpop.f32.mrb[0].mxu0
        %1929 = vmatprep.mubr.bf16.mxu0 0
        %1930 = vmatmul.mubr.bf16.gmra.mrb[0].mxu0 %v1655
        %v1931 = vpop.f32.mrb[0].mxu0
        %v1932 = vadd.f32 %v1787, %v1931
        %v1933 = vpop.f32.mrb[0].mxu0
        %v1934 = vpop.f32.mrb[0].mxu0
        %v1935 = vadd.f32 %v1790, %v1934
        %v1936 = vpop.f32.mrb[0].mxu0
        %1937 = vmatprep.mubr.bf16.mxu0 0
        %1938 = vmatmul.mubr.bf16.gmra.mrb[0].mxu0 %v1159
        %v1939 = vpop.f32.mrb[0].mxu0
        %v1940 = vadd.f32 %v1795, %v1939
        %v1941 = vpop.f32.mrb[0].mxu0
        %v1942 = vpop.f32.mrb[0].mxu0
        %v1943 = vadd.f32 %v1798, %v1942
        %v1944 = vpop.f32.mrb[0].mxu0
        %1945 = vdwg.mxu0
        %v1946 = vmax.f32 %v1836, %v1844
        %v1947 = vmax.f32 %v1839, %v1847
        %v1948 = vmax.f32 %v1852, %v1860
        %v1949 = vmax.f32 %v1855, %v1863
        %v1950 = vmax.f32 %v1868, %v1876
        %v1951 = vmax.f32 %v1871, %v1879
        %v1952 = vmax.f32 %v1884, %v1892
        %v1953 = vmax.f32 %v1887, %v1895
        %v1954 = vmax.f32 %v1900, %v1908
        %v1955 = vmax.f32 %v1903, %v1911
        %v1956 = vmax.f32 %v1916, %v1924
        %v1957 = vmax.f32 %v1919, %v1927
        %v1958 = vmax.f32 %v1932, %v1940
        %v1959 = vmax.f32 %v1935, %v1943
        %v1960 = vmax.f32 %v1946, %v1852
        %v1961 = vmax.f32 %v1947, %v1855
        %v1962 = vmax.f32 %v1948, %v1868
        %v1963 = vmax.f32 %v1949, %v1871
        %v1964 = vmax.f32 %v1950, %v1884
        %v1965 = vmax.f32 %v1951, %v1887
        %v1966 = vmax.f32 %v1952, %v1900
        %v1967 = vmax.f32 %v1953, %v1903
        %v1968 = vmax.f32 %v1954, %v1916
        %v1969 = vmax.f32 %v1955, %v1919
        %v1970 = vmax.f32 %v1956, %v1932
        %v1971 = vmax.f32 %v1957, %v1935
        %v1972 = vmax.f32 %v1958, 0.0
        %v1973 = vmax.f32 %v1959, 0.0
        %v1974 = vmax.f32 %v1960, 0.0
        %v1975 = vmax.f32 %v1961, 0.0
        %v1976 = vmax.f32 %v1962, 0.0
        %v1977 = vmax.f32 %v1963, 0.0
        %v1978 = vmax.f32 %v1964, 0.0
        %v1979 = vmax.f32 %v1965, 0.0
        %v1980 = vmax.f32 %v1966, 0.0
        %v1981 = vmax.f32 %v1967, 0.0
        %v1982 = vmax.f32 %v1968, 0.0
        %v1983 = vmax.f32 %v1969, 0.0
        %v1984 = vmax.f32 %v1970, 0.0
        %v1985 = vmax.f32 %v1971, 0.0
        %v1986 = vmax.f32 %v1972, 0.0
        %v1987 = vmax.f32 %v1973, 0.0
        %v1988 = vpack.c.bf16 %v1975, %v1974
        %v1989 = vpack.c.bf16 %v1977, %v1976
        %v1990 = vpack.c.bf16 %v1979, %v1978
        %v1991 = vpack.c.bf16 %v1981, %v1980
        %v1992 = vpack.c.bf16 %v1983, %v1982
        %v1993 = vpack.c.bf16 %v1985, %v1984
        %v1994 = vpack.c.bf16 %v1987, %v1986
        %1995 = vmatprep.subr.bf16.mxu0 0
        %1996 = vmatpush1.bf16.msra.mxu0 %v1276
        %1997 = vmatprep.subr.bf16.mxu0 0
        %1998 = vmatpush1.bf16.msra.mxu0 %v1277
        %1999 = vmatprep.subr.bf16.mxu0 0
        %2000 = vmatpush1.bf16.msra.mxu0 %v1278
        %2001 = vmatprep.subr.bf16.mxu0 0
        %2002 = vmatpush1.bf16.msra.mxu0 %v1279
        %2003 = vmatprep.subr.bf16.mxu0 0
        %2004 = vmatpush1.bf16.msra.mxu0 %v1280
        %2005 = vmatprep.subr.bf16.mxu0 0
        %2006 = vmatpush1.bf16.msra.mxu0 %v1281
        %2007 = vmatprep.subr.bf16.mxu0 0
        %2008 = vmatpush1.bf16.msra.mxu0 %v1282
        %2009 = vmatprep.subr.bf16.mxu0 0
        %2010 = vmatpush1.bf16.msra.mxu0 %v1283
        %2011 = vmatprep.subr.bf16.mxu0 0
        %2012 = vmatpush1.bf16.msra.mxu0 %v1284
        %2013 = vmatprep.subr.bf16.mxu0 0
        %2014 = vmatpush1.bf16.msra.mxu0 %v1285
        %2015 = vmatprep.subr.bf16.mxu0 0
        %2016 = vmatpush1.bf16.msra.mxu0 %v1286
        %2017 = vmatprep.subr.bf16.mxu0 0
        %2018 = vmatpush1.bf16.msra.mxu0 %v1287
        %2019 = vmatprep.subr.bf16.mxu0 0
        %2020 = vmatpush1.bf16.msra.mxu0 %v1288
        %2021 = vmatprep.subr.bf16.mxu0 0
        %2022 = vmatpush1.bf16.msra.mxu0 %v1289
        %2023 = vmatprep.subr.bf16.mxu0 0
        %2024 = vmatpush1.bf16.msra.mxu0 %v1290
        %2025 = vmatprep.subr.bf16.mxu0 0
        %2026 = vmatpush1.bf16.msra.mxu0 %v1291
        %2027 = vmatprep.mubr.bf16.mxu0 %v1988
        %2028 = vmatmul.mubr.bf16.gmra.mrb[0].mxu0 %v1159
        %v2029 = vpop.f32.mrb[0].mxu0
        %v2030 = vadd.f32 %v1178, %v2029
        %v2031 = vpop.f32.mrb[0].mxu0
        %v2032 = vpop.f32.mrb[0].mxu0
        %v2033 = vadd.f32 %v1178, %v2032
        %v2034 = vpop.f32.mrb[0].mxu0
        %2035 = vmatprep.mubr.bf16.mxu0 %v1989
        %2036 = vmatmul.mubr.bf16.gmra.mrb[0].mxu0 %v1988
        %v2037 = vpop.f32.mrb[0].mxu0
        %v2038 = vadd.f32 %v1178, %v2037
        %v2039 = vpop.f32.mrb[0].mxu0
        %v2040 = vpop.f32.mrb[0].mxu0
        %v2041 = vadd.f32 %v1178, %v2040
        %v2042 = vpop.f32.mrb[0].mxu0
        %2043 = vmatprep.mubr.bf16.mxu0 %v1990
        %2044 = vmatmul.mubr.bf16.gmra.mrb[0].mxu0 %v1989
        %v2045 = vpop.f32.mrb[0].mxu0
        %v2046 = vadd.f32 %v1178, %v2045
        %v2047 = vpop.f32.mrb[0].mxu0
        %v2048 = vpop.f32.mrb[0].mxu0
        %v2049 = vadd.f32 %v1178, %v2048
        %v2050 = vpop.f32.mrb[0].mxu0
        %2051 = vmatprep.mubr.bf16.mxu0 %v1991
        %2052 = vmatmul.mubr.bf16.gmra.mrb[0].mxu0 %v1990
        %v2053 = vpop.f32.mrb[0].mxu0
        %v2054 = vadd.f32 %v1178, %v2053
        %v2055 = vpop.f32.mrb[0].mxu0
        %v2056 = vpop.f32.mrb[0].mxu0
        %v2057 = vadd.f32 %v1178, %v2056
        %v2058 = vpop.f32.mrb[0].mxu0
        %2059 = vmatprep.mubr.bf16.mxu0 %v1992
        %2060 = vmatmul.mubr.bf16.gmra.mrb[0].mxu0 %v1991
        %v2061 = vpop.f32.mrb[0].mxu0
        %v2062 = vadd.f32 %v1178, %v2061
        %v2063 = vpop.f32.mrb[0].mxu0
        %v2064 = vpop.f32.mrb[0].mxu0
        %v2065 = vadd.f32 %v1178, %v2064
        %v2066 = vpop.f32.mrb[0].mxu0
        %2067 = vmatprep.mubr.bf16.mxu0 %v1993
        %2068 = vmatmul.mubr.bf16.gmra.mrb[0].mxu0 %v1992
        %v2069 = vpop.f32.mrb[0].mxu0
        %v2070 = vadd.f32 %v1178, %v2069
        %v2071 = vpop.f32.mrb[0].mxu0
        %v2072 = vpop.f32.mrb[0].mxu0
        %v2073 = vadd.f32 %v1178, %v2072
        %v2074 = vpop.f32.mrb[0].mxu0
        %2075 = vmatprep.mubr.bf16.mxu0 %v1994
        %2076 = vmatmul.mubr.bf16.gmra.mrb[0].mxu0 %v1993
        %v2077 = vpop.f32.mrb[0].mxu0
        %v2078 = vadd.f32 %v1178, %v2077
        %v2079 = vpop.f32.mrb[0].mxu0
        %v2080 = vpop.f32.mrb[0].mxu0
        %v2081 = vadd.f32 %v1178, %v2080
        %v2082 = vpop.f32.mrb[0].mxu0
        %2083 = vdwg.mxu0
        %2084 = vmatprep.subr.bf16.mxu0 0
        %2085 = vmatpush1.bf16.msra.mxu0 %v1292
        %2086 = vmatprep.subr.bf16.mxu0 0
        %2087 = vmatpush1.bf16.msra.mxu0 %v1293
        %2088 = vmatprep.subr.bf16.mxu0 0
        %2089 = vmatpush1.bf16.msra.mxu0 %v1294
        %2090 = vmatprep.subr.bf16.mxu0 0
        %2091 = vmatpush1.bf16.msra.mxu0 %v1295
        %2092 = vmatprep.subr.bf16.mxu0 0
        %2093 = vmatpush1.bf16.msra.mxu0 %v1296
        %2094 = vmatprep.subr.bf16.mxu0 0
        %2095 = vmatpush1.bf16.msra.mxu0 %v1297
        %2096 = vmatprep.subr.bf16.mxu0 0
        %2097 = vmatpush1.bf16.msra.mxu0 %v1298
        %2098 = vmatprep.subr.bf16.mxu0 0
        %2099 = vmatpush1.bf16.msra.mxu0 %v1299
        %2100 = vmatprep.subr.bf16.mxu0 0
        %2101 = vmatpush1.bf16.msra.mxu0 0
        %2102 = vmatprep.subr.bf16.mxu0 0
        %2103 = vmatpush1.bf16.msra.mxu0 0
        %2104 = vmatprep.subr.bf16.mxu0 0
        %2105 = vmatpush1.bf16.msra.mxu0 0
        %2106 = vmatprep.subr.bf16.mxu0 0
        %2107 = vmatpush1.bf16.msra.mxu0 0
        %2108 = vmatprep.subr.bf16.mxu0 0
        %2109 = vmatpush1.bf16.msra.mxu0 0
        %2110 = vmatprep.subr.bf16.mxu0 0
        %2111 = vmatpush1.bf16.msra.mxu0 0
        %2112 = vmatprep.subr.bf16.mxu0 0
        %2113 = vmatpush1.bf16.msra.mxu0 0
        %2114 = vmatprep.subr.bf16.mxu0 0
        %2115 = vmatpush1.bf16.msra.mxu0 0
        %2116 = vmatprep.mubr.bf16.mxu0 0
        %2117 = vmatmul.mubr.bf16.gmra.mrb[0].mxu0 %v1989
        %v2118 = vpop.f32.mrb[0].mxu0
        %v2119 = vadd.f32 %v2030, %v2118
        %v2120 = vpop.f32.mrb[0].mxu0
        %v2121 = vpop.f32.mrb[0].mxu0
        %v2122 = vadd.f32 %v2033, %v2121
        %v2123 = vpop.f32.mrb[0].mxu0
        %2124 = vmatprep.mubr.bf16.mxu0 0
        %2125 = vmatmul.mubr.bf16.gmra.mrb[0].mxu0 %v1990
        %v2126 = vpop.f32.mrb[0].mxu0
        %v2127 = vadd.f32 %v2038, %v2126
        %v2128 = vpop.f32.mrb[0].mxu0
        %v2129 = vpop.f32.mrb[0].mxu0
        %v2130 = vadd.f32 %v2041, %v2129
        %v2131 = vpop.f32.mrb[0].mxu0
        %2132 = vmatprep.mubr.bf16.mxu0 0
        %2133 = vmatmul.mubr.bf16.gmra.mrb[0].mxu0 %v1991
        %v2134 = vpop.f32.mrb[0].mxu0
        %v2135 = vadd.f32 %v2046, %v2134
        %v2136 = vpop.f32.mrb[0].mxu0
        %v2137 = vpop.f32.mrb[0].mxu0
        %v2138 = vadd.f32 %v2049, %v2137
        %v2139 = vpop.f32.mrb[0].mxu0
        %2140 = vmatprep.mubr.bf16.mxu0 0
        %2141 = vmatmul.mubr.bf16.gmra.mrb[0].mxu0 %v1992
        %v2142 = vpop.f32.mrb[0].mxu0
        %v2143 = vadd.f32 %v2054, %v2142
        %v2144 = vpop.f32.mrb[0].mxu0
        %v2145 = vpop.f32.mrb[0].mxu0
        %v2146 = vadd.f32 %v2057, %v2145
        %v2147 = vpop.f32.mrb[0].mxu0
        %2148 = vmatprep.mubr.bf16.mxu0 0
        %2149 = vmatmul.mubr.bf16.gmra.mrb[0].mxu0 %v1993
        %v2150 = vpop.f32.mrb[0].mxu0
        %v2151 = vadd.f32 %v2062, %v2150
        %v2152 = vpop.f32.mrb[0].mxu0
        %v2153 = vpop.f32.mrb[0].mxu0
        %v2154 = vadd.f32 %v2065, %v2153
        %v2155 = vpop.f32.mrb[0].mxu0
        %2156 = vmatprep.mubr.bf16.mxu0 0
        %2157 = vmatmul.mubr.bf16.gmra.mrb[0].mxu0 %v1994
        %v2158 = vpop.f32.mrb[0].mxu0
        %v2159 = vadd.f32 %v2070, %v2158
        %v2160 = vpop.f32.mrb[0].mxu0
        %v2161 = vpop.f32.mrb[0].mxu0
        %v2162 = vadd.f32 %v2073, %v2161
        %v2163 = vpop.f32.mrb[0].mxu0
        %2164 = vmatprep.mubr.bf16.mxu0 0
        %2165 = vmatmul.mubr.bf16.gmra.mrb[0].mxu0 %v1159
        %v2166 = vpop.f32.mrb[0].mxu0
        %v2167 = vadd.f32 %v2078, %v2166
        %v2168 = vpop.f32.mrb[0].mxu0
        %v2169 = vpop.f32.mrb[0].mxu0
        %v2170 = vadd.f32 %v2081, %v2169
        %v2171 = vpop.f32.mrb[0].mxu0
        %2172 = vdwg.mxu0
        %v2173 = vmax.f32 %v2119, 0.0
        %v2174 = vmax.f32 %v2122, 0.0
        %v2175 = vmax.f32 %v2127, 0.0
        %v2176 = vmax.f32 %v2130, 0.0
        %v2177 = vmax.f32 %v2135, 0.0
        %v2178 = vmax.f32 %v2138, 0.0
        %v2179 = vmax.f32 %v2143, 0.0
        %v2180 = vmax.f32 %v2146, 0.0
        %v2181 = vmax.f32 %v2151, 0.0
        %v2182 = vmax.f32 %v2154, 0.0
        %v2183 = vmax.f32 %v2159, 0.0
        %v2184 = vmax.f32 %v2162, 0.0
        %v2185 = vmax.f32 %v2167, 0.0
        %v2186 = vmax.f32 %v2170, 0.0
        %v2187 = vpack.c.bf16 %v2174, %v2173
        %v2188 = vpack.c.bf16 %v2176, %v2175
        %v2189 = vpack.c.bf16 %v2178, %v2177
        %v2190 = vpack.c.bf16 %v2180, %v2179
        %v2191 = vpack.c.bf16 %v2182, %v2181
        %v2192 = vpack.c.bf16 %v2184, %v2183
        %v2193 = vpack.c.bf16 %v2186, %v2185
        %2194 = vmatprep.subr.bf16.mxu0 0
        %2195 = vmatpush1.bf16.msra.mxu0 %v1276
        %2196 = vmatprep.subr.bf16.mxu0 0
        %2197 = vmatpush1.bf16.msra.mxu0 %v1277
        %2198 = vmatprep.subr.bf16.mxu0 0
        %2199 = vmatpush1.bf16.msra.mxu0 %v1278
        %2200 = vmatprep.subr.bf16.mxu0 0
        %2201 = vmatpush1.bf16.msra.mxu0 %v1279
        %2202 = vmatprep.subr.bf16.mxu0 0
        %2203 = vmatpush1.bf16.msra.mxu0 %v1280
        %2204 = vmatprep.subr.bf16.mxu0 0
        %2205 = vmatpush1.bf16.msra.mxu0 %v1281
        %2206 = vmatprep.subr.bf16.mxu0 0
        %2207 = vmatpush1.bf16.msra.mxu0 %v1282
        %2208 = vmatprep.subr.bf16.mxu0 0
        %2209 = vmatpush1.bf16.msra.mxu0 %v1283
        %2210 = vmatprep.subr.bf16.mxu0 0
        %2211 = vmatpush1.bf16.msra.mxu0 %v1284
        %2212 = vmatprep.subr.bf16.mxu0 0
        %2213 = vmatpush1.bf16.msra.mxu0 %v1285
        %2214 = vmatprep.subr.bf16.mxu0 0
        %2215 = vmatpush1.bf16.msra.mxu0 %v1286
        %2216 = vmatprep.subr.bf16.mxu0 0
        %2217 = vmatpush1.bf16.msra.mxu0 %v1287
        %2218 = vmatprep.subr.bf16.mxu0 0
        %2219 = vmatpush1.bf16.msra.mxu0 %v1288
        %2220 = vmatprep.subr.bf16.mxu0 0
        %2221 = vmatpush1.bf16.msra.mxu0 %v1289
        %2222 = vmatprep.subr.bf16.mxu0 0
        %2223 = vmatpush1.bf16.msra.mxu0 %v1290
        %2224 = vmatprep.subr.bf16.mxu0 0
        %2225 = vmatpush1.bf16.msra.mxu0 %v1291
        %2226 = vmatprep.mubr.bf16.mxu0 %v2187
        %2227 = vmatmul.mubr.bf16.gmra.mrb[0].mxu0 %v1159
        %v2228 = vpop.f32.mrb[0].mxu0
        %v2229 = vadd.f32 %v1178, %v2228
        %v2230 = vpop.f32.mrb[0].mxu0
        %v2231 = vpop.f32.mrb[0].mxu0
        %v2232 = vadd.f32 %v1178, %v2231
        %v2233 = vpop.f32.mrb[0].mxu0
        %2234 = vmatprep.mubr.bf16.mxu0 %v2188
        %2235 = vmatmul.mubr.bf16.gmra.mrb[0].mxu0 %v2187
        %v2236 = vpop.f32.mrb[0].mxu0
        %v2237 = vadd.f32 %v1178, %v2236
        %v2238 = vpop.f32.mrb[0].mxu0
        %v2239 = vpop.f32.mrb[0].mxu0
        %v2240 = vadd.f32 %v1178, %v2239
        %v2241 = vpop.f32.mrb[0].mxu0
        %2242 = vmatprep.mubr.bf16.mxu0 %v2189
        %2243 = vmatmul.mubr.bf16.gmra.mrb[0].mxu0 %v2188
        %v2244 = vpop.f32.mrb[0].mxu0
        %v2245 = vadd.f32 %v1178, %v2244
        %v2246 = vpop.f32.mrb[0].mxu0
        %v2247 = vpop.f32.mrb[0].mxu0
        %v2248 = vadd.f32 %v1178, %v2247
        %v2249 = vpop.f32.mrb[0].mxu0
        %2250 = vmatprep.mubr.bf16.mxu0 %v2190
        %2251 = vmatmul.mubr.bf16.gmra.mrb[0].mxu0 %v2189
        %v2252 = vpop.f32.mrb[0].mxu0
        %v2253 = vadd.f32 %v1178, %v2252
        %v2254 = vpop.f32.mrb[0].mxu0
        %v2255 = vpop.f32.mrb[0].mxu0
        %v2256 = vadd.f32 %v1178, %v2255
        %v2257 = vpop.f32.mrb[0].mxu0
        %2258 = vmatprep.mubr.bf16.mxu0 %v2191
        %2259 = vmatmul.mubr.bf16.gmra.mrb[0].mxu0 %v2190
        %v2260 = vpop.f32.mrb[0].mxu0
        %v2261 = vadd.f32 %v1178, %v2260
        %v2262 = vpop.f32.mrb[0].mxu0
        %v2263 = vpop.f32.mrb[0].mxu0
        %v2264 = vadd.f32 %v1178, %v2263
        %v2265 = vpop.f32.mrb[0].mxu0
        %2266 = vmatprep.mubr.bf16.mxu0 %v2192
        %2267 = vmatmul.mubr.bf16.gmra.mrb[0].mxu0 %v2191
        %v2268 = vpop.f32.mrb[0].mxu0
        %v2269 = vadd.f32 %v1178, %v2268
        %v2270 = vpop.f32.mrb[0].mxu0
        %v2271 = vpop.f32.mrb[0].mxu0
        %v2272 = vadd.f32 %v1178, %v2271
        %v2273 = vpop.f32.mrb[0].mxu0
        %2274 = vmatprep.mubr.bf16.mxu0 %v2193
        %2275 = vmatmul.mubr.bf16.gmra.mrb[0].mxu0 %v2192
        %v2276 = vpop.f32.mrb[0].mxu0
        %v2277 = vadd.f32 %v1178, %v2276
        %v2278 = vpop.f32.mrb[0].mxu0
        %v2279 = vpop.f32.mrb[0].mxu0
        %v2280 = vadd.f32 %v1178, %v2279
        %v2281 = vpop.f32.mrb[0].mxu0
        %2282 = vdwg.mxu0
        %2283 = vmatprep.subr.bf16.mxu0 0
        %2284 = vmatpush1.bf16.msra.mxu0 %v1292
        %2285 = vmatprep.subr.bf16.mxu0 0
        %2286 = vmatpush1.bf16.msra.mxu0 %v1293
        %2287 = vmatprep.subr.bf16.mxu0 0
        %2288 = vmatpush1.bf16.msra.mxu0 %v1294
        %2289 = vmatprep.subr.bf16.mxu0 0
        %2290 = vmatpush1.bf16.msra.mxu0 %v1295
        %2291 = vmatprep.subr.bf16.mxu0 0
        %2292 = vmatpush1.bf16.msra.mxu0 %v1296
        %2293 = vmatprep.subr.bf16.mxu0 0
        %2294 = vmatpush1.bf16.msra.mxu0 %v1297
        %2295 = vmatprep.subr.bf16.mxu0 0
        %2296 = vmatpush1.bf16.msra.mxu0 %v1298
        %2297 = vmatprep.subr.bf16.mxu0 0
        %2298 = vmatpush1.bf16.msra.mxu0 %v1299
        %2299 = vmatprep.subr.bf16.mxu0 0
        %2300 = vmatpush1.bf16.msra.mxu0 0
        %2301 = vmatprep.subr.bf16.mxu0 0
        %2302 = vmatpush1.bf16.msra.mxu0 0
        %2303 = vmatprep.subr.bf16.mxu0 0
        %2304 = vmatpush1.bf16.msra.mxu0 0
        %2305 = vmatprep.subr.bf16.mxu0 0
        %2306 = vmatpush1.bf16.msra.mxu0 0
        %2307 = vmatprep.subr.bf16.mxu0 0
        %2308 = vmatpush1.bf16.msra.mxu0 0
        %2309 = vmatprep.subr.bf16.mxu0 0
        %2310 = vmatpush1.bf16.msra.mxu0 0
        %2311 = vmatprep.subr.bf16.mxu0 0
        %2312 = vmatpush1.bf16.msra.mxu0 0
        %2313 = vmatprep.subr.bf16.mxu0 0
        %2314 = vmatpush1.bf16.msra.mxu0 0
        %2315 = vmatprep.mubr.bf16.mxu0 0
        %2316 = vmatmul.mubr.bf16.gmra.mrb[0].mxu0 %v2188
        %v2317 = vpop.f32.mrb[0].mxu0
        %v2318 = vadd.f32 %v2229, %v2317
        %v2319 = vpop.f32.mrb[0].mxu0
        %v2320 = vpop.f32.mrb[0].mxu0
        %v2321 = vadd.f32 %v2232, %v2320
        %v2322 = vpop.f32.mrb[0].mxu0
        %2323 = vmatprep.mubr.bf16.mxu0 0
        %2324 = vmatmul.mubr.bf16.gmra.mrb[0].mxu0 %v2189
        %v2325 = vpop.f32.mrb[0].mxu0
        %v2326 = vadd.f32 %v2237, %v2325
        %v2327 = vpop.f32.mrb[0].mxu0
        %v2328 = vpop.f32.mrb[0].mxu0
        %v2329 = vadd.f32 %v2240, %v2328
        %v2330 = vpop.f32.mrb[0].mxu0
        %2331 = vmatprep.mubr.bf16.mxu0 0
        %2332 = vmatmul.mubr.bf16.gmra.mrb[0].mxu0 %v2190
        %v2333 = vpop.f32.mrb[0].mxu0
        %v2334 = vadd.f32 %v2245, %v2333
        %v2335 = vpop.f32.mrb[0].mxu0
        %v2336 = vpop.f32.mrb[0].mxu0
        %v2337 = vadd.f32 %v2248, %v2336
        %v2338 = vpop.f32.mrb[0].mxu0
        %2339 = vmatprep.mubr.bf16.mxu0 0
        %2340 = vmatmul.mubr.bf16.gmra.mrb[0].mxu0 %v2191
        %v2341 = vpop.f32.mrb[0].mxu0
        %v2342 = vadd.f32 %v2253, %v2341
        %v2343 = vpop.f32.mrb[0].mxu0
        %v2344 = vpop.f32.mrb[0].mxu0
        %v2345 = vadd.f32 %v2256, %v2344
        %v2346 = vpop.f32.mrb[0].mxu0
        %2347 = vmatprep.mubr.bf16.mxu0 0
        %2348 = vmatmul.mubr.bf16.gmra.mrb[0].mxu0 %v2192
        %v2349 = vpop.f32.mrb[0].mxu0
        %v2350 = vadd.f32 %v2261, %v2349
        %v2351 = vpop.f32.mrb[0].mxu0
        %v2352 = vpop.f32.mrb[0].mxu0
        %v2353 = vadd.f32 %v2264, %v2352
        %v2354 = vpop.f32.mrb[0].mxu0
        %2355 = vmatprep.mubr.bf16.mxu0 0
        %2356 = vmatmul.mubr.bf16.gmra.mrb[0].mxu0 %v2193
        %v2357 = vpop.f32.mrb[0].mxu0
        %v2358 = vadd.f32 %v2269, %v2357
        %v2359 = vpop.f32.mrb[0].mxu0
        %v2360 = vpop.f32.mrb[0].mxu0
        %v2361 = vadd.f32 %v2272, %v2360
        %v2362 = vpop.f32.mrb[0].mxu0
        %2363 = vmatprep.mubr.bf16.mxu0 0
        %2364 = vmatmul.mubr.bf16.gmra.mrb[0].mxu0 %v1159
        %v2365 = vpop.f32.mrb[0].mxu0
        %v2366 = vadd.f32 %v2277, %v2365
        %v2367 = vpop.f32.mrb[0].mxu0
        %v2368 = vpop.f32.mrb[0].mxu0
        %v2369 = vadd.f32 %v2280, %v2368
        %v2370 = vpop.f32.mrb[0].mxu0
        %2371 = vdwg.mxu0
        %v2372 = vadd.f32 %v2318, %v1960
        %v2373 = vadd.f32 %v2321, %v1961
        %v2374 = vadd.f32 %v2326, %v1962
        %v2375 = vadd.f32 %v2329, %v1963
        %v2376 = vadd.f32 %v2334, %v1964
        %v2377 = vadd.f32 %v2337, %v1965
        %v2378 = vadd.f32 %v2342, %v1966
        %v2379 = vadd.f32 %v2345, %v1967
        %v2380 = vadd.f32 %v2350, %v1968
        %v2381 = vadd.f32 %v2353, %v1969
        %v2382 = vadd.f32 %v2358, %v1970
        %v2383 = vadd.f32 %v2361, %v1971
        %v2384 = vadd.f32 %v2366, %v1972
        %v2385 = vadd.f32 %v2369, %v1973
        %v2386 = vmax.f32 %v2372, %v2374
        %v2387 = vmax.f32 %v2373, %v2375
        %v2388 = vmax.f32 %v2376, %v2378
        %v2389 = vmax.f32 %v2377, %v2379
        %v2390 = vmax.f32 %v2380, %v2382
        %v2391 = vmax.f32 %v2381, %v2383
        %v2392 = vmax.f32 %v2386, %v2376
        %v2393 = vmax.f32 %v2387, %v2377
        %v2394 = vmax.f32 %v2388, %v2380
        %v2395 = vmax.f32 %v2389, %v2381
        %v2396 = vmax.f32 %v2390, %v2384
        %v2397 = vmax.f32 %v2391, %v2385
        %v2398 = vmax.f32 %v2392, 0.0
        %v2399 = vmax.f32 %v2393, 0.0
        %v2400 = vmax.f32 %v2394, 0.0
        %v2401 = vmax.f32 %v2395, 0.0
        %v2402 = vmax.f32 %v2396, 0.0
        %v2403 = vmax.f32 %v2397, 0.0
        %v2404 = vpack.c.bf16 %v2399, %v2398
        %v2405 = vpack.c.bf16 %v2401, %v2400
        %v2406 = vpack.c.bf16 %v2403, %v2402
        %2407 = vmatprep.subr.bf16.mxu0 0
        %2408 = vmatpush1.bf16.msra.mxu0 %v1276
        %2409 = vmatprep.subr.bf16.mxu0 0
        %2410 = vmatpush1.bf16.msra.mxu0 %v1277
        %2411 = vmatprep.subr.bf16.mxu0 0
        %2412 = vmatpush1.bf16.msra.mxu0 %v1278
        %2413 = vmatprep.subr.bf16.mxu0 0
        %2414 = vmatpush1.bf16.msra.mxu0 %v1279
        %2415 = vmatprep.subr.bf16.mxu0 0
        %2416 = vmatpush1.bf16.msra.mxu0 %v1280
        %2417 = vmatprep.subr.bf16.mxu0 0
        %2418 = vmatpush1.bf16.msra.mxu0 %v1281
        %2419 = vmatprep.subr.bf16.mxu0 0
        %2420 = vmatpush1.bf16.msra.mxu0 %v1282
        %2421 = vmatprep.subr.bf16.mxu0 0
        %2422 = vmatpush1.bf16.msra.mxu0 %v1283
        %2423 = vmatprep.subr.bf16.mxu0 0
        %2424 = vmatpush1.bf16.msra.mxu0 %v1284
        %2425 = vmatprep.subr.bf16.mxu0 0
        %2426 = vmatpush1.bf16.msra.mxu0 %v1285
        %2427 = vmatprep.subr.bf16.mxu0 0
        %2428 = vmatpush1.bf16.msra.mxu0 %v1286
        %2429 = vmatprep.subr.bf16.mxu0 0
        %2430 = vmatpush1.bf16.msra.mxu0 %v1287
        %2431 = vmatprep.subr.bf16.mxu0 0
        %2432 = vmatpush1.bf16.msra.mxu0 %v1288
        %2433 = vmatprep.subr.bf16.mxu0 0
        %2434 = vmatpush1.bf16.msra.mxu0 %v1289
        %2435 = vmatprep.subr.bf16.mxu0 0
        %2436 = vmatpush1.bf16.msra.mxu0 %v1290
        %2437 = vmatprep.subr.bf16.mxu0 0
        %2438 = vmatpush1.bf16.msra.mxu0 %v1291
        %2439 = vmatprep.mubr.bf16.mxu0 %v2404
        %2440 = vmatmul.mubr.bf16.gmra.mrb[0].mxu0 %v1159
        %v2441 = vpop.f32.mrb[0].mxu0
        %v2442 = vadd.f32 %v1178, %v2441
        %v2443 = vpop.f32.mrb[0].mxu0
        %v2444 = vpop.f32.mrb[0].mxu0
        %v2445 = vadd.f32 %v1178, %v2444
        %v2446 = vpop.f32.mrb[0].mxu0
        %2447 = vmatprep.mubr.bf16.mxu0 %v2405
        %2448 = vmatmul.mubr.bf16.gmra.mrb[0].mxu0 %v2404
        %v2449 = vpop.f32.mrb[0].mxu0
        %v2450 = vadd.f32 %v1178, %v2449
        %v2451 = vpop.f32.mrb[0].mxu0
        %v2452 = vpop.f32.mrb[0].mxu0
        %v2453 = vadd.f32 %v1178, %v2452
        %v2454 = vpop.f32.mrb[0].mxu0
        %2455 = vmatprep.mubr.bf16.mxu0 %v2406
        %2456 = vmatmul.mubr.bf16.gmra.mrb[0].mxu0 %v2405
        %v2457 = vpop.f32.mrb[0].mxu0
        %v2458 = vadd.f32 %v1178, %v2457
        %v2459 = vpop.f32.mrb[0].mxu0
        %v2460 = vpop.f32.mrb[0].mxu0
        %v2461 = vadd.f32 %v1178, %v2460
        %v2462 = vpop.f32.mrb[0].mxu0
        %2463 = vdwg.mxu0
        %2464 = vmatprep.subr.bf16.mxu0 0
        %2465 = vmatpush1.bf16.msra.mxu0 %v1292
        %2466 = vmatprep.subr.bf16.mxu0 0
        %2467 = vmatpush1.bf16.msra.mxu0 %v1293
        %2468 = vmatprep.subr.bf16.mxu0 0
        %2469 = vmatpush1.bf16.msra.mxu0 %v1294
        %2470 = vmatprep.subr.bf16.mxu0 0
        %2471 = vmatpush1.bf16.msra.mxu0 %v1295
        %2472 = vmatprep.subr.bf16.mxu0 0
        %2473 = vmatpush1.bf16.msra.mxu0 %v1296
        %2474 = vmatprep.subr.bf16.mxu0 0
        %2475 = vmatpush1.bf16.msra.mxu0 %v1297
        %2476 = vmatprep.subr.bf16.mxu0 0
        %2477 = vmatpush1.bf16.msra.mxu0 %v1298
        %2478 = vmatprep.subr.bf16.mxu0 0
        %2479 = vmatpush1.bf16.msra.mxu0 %v1299
        %2480 = vmatprep.subr.bf16.mxu0 0
        %2481 = vmatpush1.bf16.msra.mxu0 0
        %2482 = vmatprep.subr.bf16.mxu0 0
        %2483 = vmatpush1.bf16.msra.mxu0 0
        %2484 = vmatprep.subr.bf16.mxu0 0
        %2485 = vmatpush1.bf16.msra.mxu0 0
        %2486 = vmatprep.subr.bf16.mxu0 0
        %2487 = vmatpush1.bf16.msra.mxu0 0
        %2488 = vmatprep.subr.bf16.mxu0 0
        %2489 = vmatpush1.bf16.msra.mxu0 0
        %2490 = vmatprep.subr.bf16.mxu0 0
        %2491 = vmatpush1.bf16.msra.mxu0 0
        %2492 = vmatprep.subr.bf16.mxu0 0
        %2493 = vmatpush1.bf16.msra.mxu0 0
        %2494 = vmatprep.subr.bf16.mxu0 0
        %2495 = vmatpush1.bf16.msra.mxu0 0
        %2496 = vmatprep.mubr.bf16.mxu0 0
        %2497 = vmatmul.mubr.bf16.gmra.mrb[0].mxu0 %v2405
        %v2498 = vpop.f32.mrb[0].mxu0
        %v2499 = vadd.f32 %v2442, %v2498
        %v2500 = vpop.f32.mrb[0].mxu0
        %v2501 = vpop.f32.mrb[0].mxu0
        %v2502 = vadd.f32 %v2445, %v2501
        %v2503 = vpop.f32.mrb[0].mxu0
        %2504 = vmatprep.mubr.bf16.mxu0 0
        %2505 = vmatmul.mubr.bf16.gmra.mrb[0].mxu0 %v2406
        %v2506 = vpop.f32.mrb[0].mxu0
        %v2507 = vadd.f32 %v2450, %v2506
        %v2508 = vpop.f32.mrb[0].mxu0
        %v2509 = vpop.f32.mrb[0].mxu0
        %v2510 = vadd.f32 %v2453, %v2509
        %v2511 = vpop.f32.mrb[0].mxu0
        %2512 = vmatprep.mubr.bf16.mxu0 0
        %2513 = vmatmul.mubr.bf16.gmra.mrb[0].mxu0 %v1159
        %v2514 = vpop.f32.mrb[0].mxu0
        %v2515 = vadd.f32 %v2458, %v2514
        %v2516 = vpop.f32.mrb[0].mxu0
        %v2517 = vpop.f32.mrb[0].mxu0
        %v2518 = vadd.f32 %v2461, %v2517
        %v2519 = vpop.f32.mrb[0].mxu0
        %2520 = vdwg.mxu0
        %v2521 = vmax.f32 %v2499, 0.0
        %v2522 = vmax.f32 %v2502, 0.0
        %v2523 = vmax.f32 %v2507, 0.0
        %v2524 = vmax.f32 %v2510, 0.0
        %v2525 = vmax.f32 %v2515, 0.0
        %v2526 = vmax.f32 %v2518, 0.0
        %v2527 = vpack.c.bf16 %v2522, %v2521
        %v2528 = vpack.c.bf16 %v2524, %v2523
        %v2529 = vpack.c.bf16 %v2526, %v2525
        %2530 = vmatprep.subr.bf16.mxu0 0
        %2531 = vmatpush1.bf16.msra.mxu0 %v1276
        %2532 = vmatprep.subr.bf16.mxu0 0
        %2533 = vmatpush1.bf16.msra.mxu0 %v1277
        %2534 = vmatprep.subr.bf16.mxu0 0
        %2535 = vmatpush1.bf16.msra.mxu0 %v1278
        %2536 = vmatprep.subr.bf16.mxu0 0
        %2537 = vmatpush1.bf16.msra.mxu0 %v1279
        %2538 = vmatprep.subr.bf16.mxu0 0
        %2539 = vmatpush1.bf16.msra.mxu0 %v1280
        %2540 = vmatprep.subr.bf16.mxu0 0
        %2541 = vmatpush1.bf16.msra.mxu0 %v1281
        %2542 = vmatprep.subr.bf16.mxu0 0
        %2543 = vmatpush1.bf16.msra.mxu0 %v1282
        %2544 = vmatprep.subr.bf16.mxu0 0
        %2545 = vmatpush1.bf16.msra.mxu0 %v1283
        %2546 = vmatprep.subr.bf16.mxu0 0
        %2547 = vmatpush1.bf16.msra.mxu0 %v1284
        %2548 = vmatprep.subr.bf16.mxu0 0
        %2549 = vmatpush1.bf16.msra.mxu0 %v1285
        %2550 = vmatprep.subr.bf16.mxu0 0
        %2551 = vmatpush1.bf16.msra.mxu0 %v1286
        %2552 = vmatprep.subr.bf16.mxu0 0
        %2553 = vmatpush1.bf16.msra.mxu0 %v1287
        %2554 = vmatprep.subr.bf16.mxu0 0
        %2555 = vmatpush1.bf16.msra.mxu0 %v1288
        %2556 = vmatprep.subr.bf16.mxu0 0
        %2557 = vmatpush1.bf16.msra.mxu0 %v1289
        %2558 = vmatprep.subr.bf16.mxu0 0
        %2559 = vmatpush1.bf16.msra.mxu0 %v1290
        %2560 = vmatprep.subr.bf16.mxu0 0
        %2561 = vmatpush1.bf16.msra.mxu0 %v1291
        %2562 = vmatprep.mubr.bf16.mxu0 %v2527
        %2563 = vmatmul.mubr.bf16.gmra.mrb[0].mxu0 %v1159
        %v2564 = vpop.f32.mrb[0].mxu0
        %v2565 = vadd.f32 %v1178, %v2564
        %v2566 = vpop.f32.mrb[0].mxu0
        %v2567 = vpop.f32.mrb[0].mxu0
        %v2568 = vadd.f32 %v1178, %v2567
        %v2569 = vpop.f32.mrb[0].mxu0
        %2570 = vmatprep.mubr.bf16.mxu0 %v2528
        %2571 = vmatmul.mubr.bf16.gmra.mrb[0].mxu0 %v2527
        %v2572 = vpop.f32.mrb[0].mxu0
        %v2573 = vadd.f32 %v1178, %v2572
        %v2574 = vpop.f32.mrb[0].mxu0
        %v2575 = vpop.f32.mrb[0].mxu0
        %v2576 = vadd.f32 %v1178, %v2575
        %v2577 = vpop.f32.mrb[0].mxu0
        %2578 = vmatprep.mubr.bf16.mxu0 %v2529
        %2579 = vmatmul.mubr.bf16.gmra.mrb[0].mxu0 %v2528
        %v2580 = vpop.f32.mrb[0].mxu0
        %v2581 = vadd.f32 %v1178, %v2580
        %v2582 = vpop.f32.mrb[0].mxu0
        %v2583 = vpop.f32.mrb[0].mxu0
        %v2584 = vadd.f32 %v1178, %v2583
        %v2585 = vpop.f32.mrb[0].mxu0
        %2586 = vdwg.mxu0
        %2587 = vmatprep.subr.bf16.mxu0 0
        %2588 = vmatpush1.bf16.msra.mxu0 %v1292
        %2589 = vmatprep.subr.bf16.mxu0 0
        %2590 = vmatpush1.bf16.msra.mxu0 %v1293
        %2591 = vmatprep.subr.bf16.mxu0 0
        %2592 = vmatpush1.bf16.msra.mxu0 %v1294
        %2593 = vmatprep.subr.bf16.mxu0 0
        %2594 = vmatpush1.bf16.msra.mxu0 %v1295
        %2595 = vmatprep.subr.bf16.mxu0 0
        %2596 = vmatpush1.bf16.msra.mxu0 %v1296
        %2597 = vmatprep.subr.bf16.mxu0 0
        %2598 = vmatpush1.bf16.msra.mxu0 %v1297
        %2599 = vmatprep.subr.bf16.mxu0 0
        %2600 = vmatpush1.bf16.msra.mxu0 %v1298
        %2601 = vmatprep.subr.bf16.mxu0 0
        %2602 = vmatpush1.bf16.msra.mxu0 %v1299
        %2603 = vmatprep.subr.bf16.mxu0 0
        %2604 = vmatpush1.bf16.msra.mxu0 0
        %2605 = vmatprep.subr.bf16.mxu0 0
        %2606 = vmatpush1.bf16.msra.mxu0 0
        %2607 = vmatprep.subr.bf16.mxu0 0
        %2608 = vmatpush1.bf16.msra.mxu0 0
        %2609 = vmatprep.subr.bf16.mxu0 0
        %2610 = vmatpush1.bf16.msra.mxu0 0
        %2611 = vmatprep.subr.bf16.mxu0 0
        %2612 = vmatpush1.bf16.msra.mxu0 0
        %2613 = vmatprep.subr.bf16.mxu0 0
        %2614 = vmatpush1.bf16.msra.mxu0 0
        %2615 = vmatprep.subr.bf16.mxu0 0
        %2616 = vmatpush1.bf16.msra.mxu0 0
        %2617 = vmatprep.subr.bf16.mxu0 0
        %2618 = vmatpush1.bf16.msra.mxu0 0
        %2619 = vmatprep.mubr.bf16.mxu0 0
        %2620 = vmatmul.mubr.bf16.gmra.mrb[0].mxu0 %v2528
        %v2621 = vpop.f32.mrb[0].mxu0
        %v2622 = vadd.f32 %v2565, %v2621
        %v2623 = vpop.f32.mrb[0].mxu0
        %v2624 = vpop.f32.mrb[0].mxu0
        %v2625 = vadd.f32 %v2568, %v2624
        %v2626 = vpop.f32.mrb[0].mxu0
        %2627 = vmatprep.mubr.bf16.mxu0 0
        %2628 = vmatmul.mubr.bf16.gmra.mrb[0].mxu0 %v2529
        %v2629 = vpop.f32.mrb[0].mxu0
        %v2630 = vadd.f32 %v2573, %v2629
        %v2631 = vpop.f32.mrb[0].mxu0
        %v2632 = vpop.f32.mrb[0].mxu0
        %v2633 = vadd.f32 %v2576, %v2632
        %v2634 = vpop.f32.mrb[0].mxu0
        %2635 = vmatprep.mubr.bf16.mxu0 0
        %2636 = vmatmul.mubr.bf16.gmra.mrb[0].mxu0 %v1159
        %v2637 = vpop.f32.mrb[0].mxu0
        %v2638 = vadd.f32 %v2581, %v2637
        %v2639 = vpop.f32.mrb[0].mxu0
        %v2640 = vpop.f32.mrb[0].mxu0
        %v2641 = vadd.f32 %v2584, %v2640
        %v2642 = vpop.f32.mrb[0].mxu0
        %2643 = vdwg.mxu0
        %v2644 = vadd.f32 %v2622, %v2392
        %v2645 = vadd.f32 %v2625, %v2393
        %v2646 = vadd.f32 %v2630, %v2394
        %v2647 = vadd.f32 %v2633, %v2395
        %v2648 = vadd.f32 %v2638, %v2396
        %v2649 = vadd.f32 %v2641, %v2397
        %v2650 = vmax.f32 %v2644, %v2646
        %v2651 = vmax.f32 %v2645, %v2647
        %v2652 = vmax.f32 %v2650, %v2648
        %v2653 = vmax.f32 %v2651, %v2649
        %v2654 = vmax.f32 %v2652, 0.0
        %v2655 = vmax.f32 %v2653, 0.0
        %v2656 = vpack.c.bf16 %v2655, %v2654
        %2657 = vmatprep.subr.bf16.mxu0 0
        %2658 = vmatpush1.bf16.msra.mxu0 %v1276
        %2659 = vmatprep.subr.bf16.mxu0 0
        %2660 = vmatpush1.bf16.msra.mxu0 %v1277
        %2661 = vmatprep.subr.bf16.mxu0 0
        %2662 = vmatpush1.bf16.msra.mxu0 %v1278
        %2663 = vmatprep.subr.bf16.mxu0 0
        %2664 = vmatpush1.bf16.msra.mxu0 %v1279
        %2665 = vmatprep.subr.bf16.mxu0 0
        %2666 = vmatpush1.bf16.msra.mxu0 %v1280
        %2667 = vmatprep.subr.bf16.mxu0 0
        %2668 = vmatpush1.bf16.msra.mxu0 %v1281
        %2669 = vmatprep.subr.bf16.mxu0 0
        %2670 = vmatpush1.bf16.msra.mxu0 %v1282
        %2671 = vmatprep.subr.bf16.mxu0 0
        %2672 = vmatpush1.bf16.msra.mxu0 %v1283
        %2673 = vmatprep.subr.bf16.mxu0 0
        %2674 = vmatpush1.bf16.msra.mxu0 %v1284
        %2675 = vmatprep.subr.bf16.mxu0 0
        %2676 = vmatpush1.bf16.msra.mxu0 %v1285
        %2677 = vmatprep.subr.bf16.mxu0 0
        %2678 = vmatpush1.bf16.msra.mxu0 %v1286
        %2679 = vmatprep.subr.bf16.mxu0 0
        %2680 = vmatpush1.bf16.msra.mxu0 %v1287
        %2681 = vmatprep.subr.bf16.mxu0 0
        %2682 = vmatpush1.bf16.msra.mxu0 %v1288
        %2683 = vmatprep.subr.bf16.mxu0 0
        %2684 = vmatpush1.bf16.msra.mxu0 %v1289
        %2685 = vmatprep.subr.bf16.mxu0 0
        %2686 = vmatpush1.bf16.msra.mxu0 %v1290
        %2687 = vmatprep.subr.bf16.mxu0 0
        %2688 = vmatpush1.bf16.msra.mxu0 %v1291
        %2689 = vmatprep.mubr.bf16.mxu0 %v2656
        %2690 = vmatmul.mubr.bf16.gmra.mrb[0].mxu0 %v1159
        %v2691 = vpop.f32.mrb[0].mxu0
        %v2692 = vadd.f32 %v1178, %v2691
        %v2693 = vpop.f32.mrb[0].mxu0
        %v2694 = vpop.f32.mrb[0].mxu0
        %v2695 = vadd.f32 %v1178, %v2694
        %v2696 = vpop.f32.mrb[0].mxu0
        %2697 = vdwg.mxu0
        %2698 = vmatprep.subr.bf16.mxu0 0
        %2699 = vmatpush1.bf16.msra.mxu0 %v1292
        %2700 = vmatprep.subr.bf16.mxu0 0
        %2701 = vmatpush1.bf16.msra.mxu0 %v1293
        %2702 = vmatprep.subr.bf16.mxu0 0
        %2703 = vmatpush1.bf16.msra.mxu0 %v1294
        %2704 = vmatprep.subr.bf16.mxu0 0
        %2705 = vmatpush1.bf16.msra.mxu0 %v1295
        %2706 = vmatprep.subr.bf16.mxu0 0
        %2707 = vmatpush1.bf16.msra.mxu0 %v1296
        %2708 = vmatprep.subr.bf16.mxu0 0
        %2709 = vmatpush1.bf16.msra.mxu0 %v1297
        %2710 = vmatprep.subr.bf16.mxu0 0
        %2711 = vmatpush1.bf16.msra.mxu0 %v1298
        %2712 = vmatprep.subr.bf16.mxu0 0
        %2713 = vmatpush1.bf16.msra.mxu0 %v1299
        %2714 = vmatprep.subr.bf16.mxu0 0
        %2715 = vmatpush1.bf16.msra.mxu0 0
        %2716 = vmatprep.subr.bf16.mxu0 0
        %2717 = vmatpush1.bf16.msra.mxu0 0
        %2718 = vmatprep.subr.bf16.mxu0 0
        %2719 = vmatpush1.bf16.msra.mxu0 0
        %2720 = vmatprep.subr.bf16.mxu0 0
        %2721 = vmatpush1.bf16.msra.mxu0 0
        %2722 = vmatprep.subr.bf16.mxu0 0
        %2723 = vmatpush1.bf16.msra.mxu0 0
        %2724 = vmatprep.subr.bf16.mxu0 0
        %2725 = vmatpush1.bf16.msra.mxu0 0
        %2726 = vmatprep.subr.bf16.mxu0 0
        %2727 = vmatpush1.bf16.msra.mxu0 0
        %2728 = vmatprep.subr.bf16.mxu0 0
        %2729 = vmatpush1.bf16.msra.mxu0 0
        %2730 = vmatprep.mubr.bf16.mxu0 0
        %2731 = vmatmul.mubr.bf16.gmra.mrb[0].mxu0 %v1159
        %v2732 = vpop.f32.mrb[0].mxu0
        %v2733 = vadd.f32 %v2692, %v2732
        %v2734 = vpop.f32.mrb[0].mxu0
        %v2735 = vpop.f32.mrb[0].mxu0
        %v2736 = vadd.f32 %v2695, %v2735
        %v2737 = vpop.f32.mrb[0].mxu0
        %2738 = vdwg.mxu0
        %v2739 = vmax.f32 %v2733, 0.0
        %v2740 = vmax.f32 %v2736, 0.0
        %v2741 = vpack.c.bf16 %v2740, %v2739
        %2742 = vmatprep.subr.bf16.mxu0 0
        %2743 = vmatpush1.bf16.msra.mxu0 %v1276
        %2744 = vmatprep.subr.bf16.mxu0 0
        %2745 = vmatpush1.bf16.msra.mxu0 %v1277
        %2746 = vmatprep.subr.bf16.mxu0 0
        %2747 = vmatpush1.bf16.msra.mxu0 %v1278
        %2748 = vmatprep.subr.bf16.mxu0 0
        %2749 = vmatpush1.bf16.msra.mxu0 %v1279
        %2750 = vmatprep.subr.bf16.mxu0 0
        %2751 = vmatpush1.bf16.msra.mxu0 %v1280
        %2752 = vmatprep.subr.bf16.mxu0 0
        %2753 = vmatpush1.bf16.msra.mxu0 %v1281
        %2754 = vmatprep.subr.bf16.mxu0 0
        %2755 = vmatpush1.bf16.msra.mxu0 %v1282
        %2756 = vmatprep.subr.bf16.mxu0 0
        %2757 = vmatpush1.bf16.msra.mxu0 %v1283
        %2758 = vmatprep.subr.bf16.mxu0 0
        %2759 = vmatpush1.bf16.msra.mxu0 %v1284
        %2760 = vmatprep.subr.bf16.mxu0 0
        %2761 = vmatpush1.bf16.msra.mxu0 %v1285
        %2762 = vmatprep.subr.bf16.mxu0 0
        %2763 = vmatpush1.bf16.msra.mxu0 %v1286
        %2764 = vmatprep.subr.bf16.mxu0 0
        %2765 = vmatpush1.bf16.msra.mxu0 %v1287
        %2766 = vmatprep.subr.bf16.mxu0 0
        %2767 = vmatpush1.bf16.msra.mxu0 %v1288
        %2768 = vmatprep.subr.bf16.mxu0 0
        %2769 = vmatpush1.bf16.msra.mxu0 %v1289
        %2770 = vmatprep.subr.bf16.mxu0 0
        %2771 = vmatpush1.bf16.msra.mxu0 %v1290
        %2772 = vmatprep.subr.bf16.mxu0 0
        %2773 = vmatpush1.bf16.msra.mxu0 %v1291
        %2774 = vmatprep.mubr.bf16.mxu0 %v2741
        %2775 = vmatmul.mubr.bf16.gmra.mrb[0].mxu0 %v1159
        %v2776 = vpop.f32.mrb[0].mxu0
        %v2777 = vadd.f32 %v1178, %v2776
        %v2778 = vpop.f32.mrb[0].mxu0
        %v2779 = vpop.f32.mrb[0].mxu0
        %v2780 = vadd.f32 %v1178, %v2779
        %v2781 = vpop.f32.mrb[0].mxu0
        %2782 = vdwg.mxu0
        %2783 = vmatprep.subr.bf16.mxu0 0
        %2784 = vmatpush1.bf16.msra.mxu0 %v1292
        %2785 = vmatprep.subr.bf16.mxu0 0
        %2786 = vmatpush1.bf16.msra.mxu0 %v1293
        %2787 = vmatprep.subr.bf16.mxu0 0
        %2788 = vmatpush1.bf16.msra.mxu0 %v1294
        %2789 = vmatprep.subr.bf16.mxu0 0
        %2790 = vmatpush1.bf16.msra.mxu0 %v1295
        %2791 = vmatprep.subr.bf16.mxu0 0
        %2792 = vmatpush1.bf16.msra.mxu0 %v1296
        %2793 = vmatprep.subr.bf16.mxu0 0
        %2794 = vmatpush1.bf16.msra.mxu0 %v1297
        %2795 = vmatprep.subr.bf16.mxu0 0
        %2796 = vmatpush1.bf16.msra.mxu0 %v1298
        %2797 = vmatprep.subr.bf16.mxu0 0
        %2798 = vmatpush1.bf16.msra.mxu0 %v1299
        %2799 = vmatprep.subr.bf16.mxu0 0
        %2800 = vmatpush1.bf16.msra.mxu0 0
        %2801 = vmatprep.subr.bf16.mxu0 0
        %2802 = vmatpush1.bf16.msra.mxu0 0
        %2803 = vmatprep.subr.bf16.mxu0 0
        %2804 = vmatpush1.bf16.msra.mxu0 0
        %2805 = vmatprep.subr.bf16.mxu0 0
        %2806 = vmatpush1.bf16.msra.mxu0 0
        %2807 = vmatprep.subr.bf16.mxu0 0
        %2808 = vmatpush1.bf16.msra.mxu0 0
        %2809 = vmatprep.subr.bf16.mxu0 0
        %2810 = vmatpush1.bf16.msra.mxu0 0
        %2811 = vmatprep.subr.bf16.mxu0 0
        %2812 = vmatpush1.bf16.msra.mxu0 0
        %2813 = vmatprep.subr.bf16.mxu0 0
        %2814 = vmatpush1.bf16.msra.mxu0 0
        %2815 = vmatprep.mubr.bf16.mxu0 0
        %2816 = vmatmul.mubr.bf16.gmra.mrb[0].mxu0 %v1159
        %v2817 = vpop.f32.mrb[0].mxu0
        %v2818 = vadd.f32 %v2777, %v2817
        %v2819 = vpop.f32.mrb[0].mxu0
        %v2820 = vpop.f32.mrb[0].mxu0
        %v2821 = vadd.f32 %v2780, %v2820
        %v2822 = vpop.f32.mrb[0].mxu0
        %2823 = vdwg.mxu0
        %v2824 = vadd.f32 %v2818, %v2652
        %v2825 = vadd.f32 %v2821, %v2653
        %v2826 = vpack.c.bf16 %v2825, %v2824
        %v2828 = vlaneseq
        %v2829 = vshrl.u32 %v2828, 7
        %v2830 = vsub.s32 0, %v2829
        %v2831 = vrot.slane %v562, %v2830
        %v2849 = vunpack.c.l.b16 %v546
        %v2850 = vunpack.c.l.b16 %v547
        %v2851 = vunpack.c.l.b16 %v548
        %v2852 = vunpack.c.l.b16 %v549
        %v2853 = vunpack.c.l.b16 %v550
        %v2854 = vunpack.c.l.b16 %v551
        %v2855 = vunpack.c.l.b16 %v552
        %v2856 = vunpack.c.l.b16 %v553
        %v2857 = vunpack.c.l.b16 %v554
        %v2858 = vunpack.c.l.b16 %v555
        %v2859 = vunpack.c.l.b16 %v556
        %v2860 = vunpack.c.l.b16 %v557
        %v2861 = vunpack.c.l.b16 %v558
        %v2862 = vunpack.c.l.b16 %v559
        %v2863 = vunpack.c.l.b16 %v560
        %v2864 = vunpack.c.l.b16 %v561
        %v2865 = vpack.c.b16 %v2850, %v2849
        %v2866 = vpack.c.b16 %v2852, %v2851
        %v2867 = vpack.c.b16 %v2854, %v2853
        %v2868 = vpack.c.b16 %v2856, %v2855
        %v2869 = vpack.c.b16 %v2858, %v2857
        %v2870 = vpack.c.b16 %v2860, %v2859
        %v2871 = vpack.c.b16 %v2862, %v2861
        %v2872 = vpack.c.b16 %v2864, %v2863
        %2881 = vmatprep.subr.bf16.mxu0 0
        %2882 = vmatpush1.bf16.msra.mxu0 %v2865
        %2883 = vmatprep.subr.bf16.mxu0 0
        %2884 = vmatpush1.bf16.msra.mxu0 %v2866
        %2885 = vmatprep.subr.bf16.mxu0 0
        %2886 = vmatpush1.bf16.msra.mxu0 %v2867
        %2887 = vmatprep.subr.bf16.mxu0 0
        %2888 = vmatpush1.bf16.msra.mxu0 %v2868
        %2889 = vmatprep.subr.bf16.mxu0 0
        %2890 = vmatpush1.bf16.msra.mxu0 %v2869
        %2891 = vmatprep.subr.bf16.mxu0 0
        %2892 = vmatpush1.bf16.msra.mxu0 %v2870
        %2893 = vmatprep.subr.bf16.mxu0 0
        %2894 = vmatpush1.bf16.msra.mxu0 %v2871
        %2895 = vmatprep.subr.bf16.mxu0 0
        %2896 = vmatpush1.bf16.msra.mxu0 %v2872
        %2897 = vmatprep.subr.bf16.mxu0 0
        %2898 = vmatpush1.bf16.msra.mxu0 0
        %2899 = vmatprep.subr.bf16.mxu0 0
        %2900 = vmatpush1.bf16.msra.mxu0 0
        %2901 = vmatprep.subr.bf16.mxu0 0
        %2902 = vmatpush1.bf16.msra.mxu0 0
        %2903 = vmatprep.subr.bf16.mxu0 0
        %2904 = vmatpush1.bf16.msra.mxu0 0
        %2905 = vmatprep.subr.bf16.mxu0 0
        %2906 = vmatpush1.bf16.msra.mxu0 0
        %2907 = vmatprep.subr.bf16.mxu0 0
        %2908 = vmatpush1.bf16.msra.mxu0 0
        %2909 = vmatprep.subr.bf16.mxu0 0
        %2910 = vmatpush1.bf16.msra.mxu0 0
        %2911 = vmatprep.subr.bf16.mxu0 0
        %2912 = vmatpush1.bf16.msra.mxu0 0
        %2913 = vmatprep.mubr.bf16.mxu0 0
        %2914 = vmatmul.mubr.bf16.gmra.mrb[0].mxu0 %v2826
        %v2915 = vpop.f32.mrb[0].mxu0
        %v2916 = vadd.f32 %v2831, %v2915
        %v2917 = vpop.f32.mrb[0].mxu0
        %v2918 = vpop.f32.mrb[0].mxu0
        %v2919 = vadd.f32 %v2831, %v2918
        %v2920 = vpop.f32.mrb[0].mxu0
        %2921 = vdwg.mxu0
        %2922 = vst [vmem:[%s445] sm:$0xff] %v2916
        %2923 = vst [vmem:[%s445 + $0x8] sm:$0xff] %v2919
        %s2924 = smul.u32 2, %s18
        %p2925 = scmp.lt.s32.totalorder %s2924, 3
        %s2926 = scalar_select %p2925, %s2924, 3
        %s2927 = smul.addr %s2926, 8
        %s2928 = scalar_lea.vmem %s7, %s2927
        // Predicated region
        $region90: #{dpcnn_forward.1} parent=84 // pred_check
          %p2929 = pneg %p188
        $region91: #{dpcnn_forward.1} parent=84 // pred_check_branch
          %2931 = sbr.rel (%p2929) target = $region93
        $region92: #{dpcnn_forward.1} parent=84 // pred_region
          %s2932 = smul.u32 2, %s18
        $region93: #{dpcnn_forward.1} parent=84 // pred_fallthru
          _
      $region85: #{dpcnn_forward.1} parent=5 // pred_fallthru
        _
      %p2933 = scmp.le.s32.totalorder 2, %s13
      // Predicated region
      $region94: #{dpcnn_forward.1} parent=5 // pred_check
        %p2934 = pneg %p2933
      $region95: #{dpcnn_forward.1} parent=5 // pred_check_branch
        %2936 = sbr.rel (%p2934) target = $region97
      $region96: #{dpcnn_forward.1} parent=5 // pred_region
        %s2937 = ssub.s32 %s13, 2
        // Predicated region
        $region98: #{dpcnn_forward.1} parent=96 // pred_check
          %p2938 = pneg %p194
        $region99: #{dpcnn_forward.1} parent=96 // pred_check_branch
          %2940 = sbr.rel (%p2938) target = $region101
        $region100: #{dpcnn_forward.1} parent=96 // pred_region
          %s2941 = smul.u32 2, %s19
          %p2942 = scmp.lt.s32.totalorder %s2941, 3
          %s2943 = scalar_select %p2942, %s2941, 3
          %s2944 = smul.addr %s2943, 8
          %s2945 = scalar_lea.vmem %s7, %s2944
        $region101: #{dpcnn_forward.1} parent=96 // pred_fallthru
          _
      $region97: #{dpcnn_forward.1} parent=5 // pred_fallthru
        _
    $region6: #{dpcnn_forward.1} parent=1 // loop_footer
      %s17 = sadd.s32 1, %s13
    $region7: #{dpcnn_forward.1} parent=1 // loop_footer_branch
      %12 = sbr.rel target = $region3
    $region8: #{dpcnn_forward.1} parent=1 // loop_exit
      _

</llo_original>
